<compile_context>
chip_gen: v6e
topology: v6e:2x2x1
jax: 0.10.0
libtpu: 0.0.40
codegen_flags: <defaults>
</compile_context>

<pallas_src>
import functools

import jax
import jax.numpy as jnp
from jax.experimental import pallas as pl
from jax.experimental.pallas import tpu as pltpu


# -----------------------------------------------------------------------------
# Kernel: the sequential 2-layer LSTM recurrence (everything parallel is hoisted
# to XLA around the pallas_call).
# -----------------------------------------------------------------------------
def _lstm_recurrence_kernel(
    g1_ref,     # (T, B, 4*Hp) f32 : precomputed x @ W_ih1 + b1 (gate-block padded)
    whh1_ref,   # (Hp, 4*Hp)   bf16
    w2_ref,     # (2*Hp, 4*Hp) bf16 : [W_ih2 ; W_hh2] fused
    b2_ref,     # (1, 4*Hp)    f32
    out_ref,    # (S, B, Hp)   f32 : h2 for the last S timesteps (lane-dense)
    *, hp, t_total, out_start, unroll,
):
    B = g1_ref.shape[1]
    f32, bf16 = jnp.float32, jnp.bfloat16
    zeros = jnp.zeros((B, hp), f32)
    # Hoist the bias broadcast out of the recurrence (broadcasts are not CSE'd).
    b2b = jnp.broadcast_to(b2_ref[...], (B, 4 * hp))

    def gates_to_hc(gates, c_prev):
        # Each slice is a full lane-aligned (B, Hp=128) tile (no sub-lane slicing).
        i = jax.nn.sigmoid(gates[:, 0 * hp:1 * hp])
        f = jax.nn.sigmoid(gates[:, 1 * hp:2 * hp])
        g = jnp.tanh(gates[:, 2 * hp:3 * hp])
        o = jax.nn.sigmoid(gates[:, 3 * hp:4 * hp])
        c_new = f * c_prev + i * g
        h_new = o * jnp.tanh(c_new)
        return h_new, c_new

    def step(t, carry, write):
        h1, c1, h2, c2 = carry
        # Layer 1: only the recurrent matmul (input projection precomputed).
        # bf16 x bf16 -> single MXU pass; f32 accumulation; gate math stays f32.
        g1 = g1_ref[t] + jnp.dot(h1.astype(bf16), whh1_ref[...],
                                 preferred_element_type=f32)
        h1n, c1n = gates_to_hc(g1, c1)
        # Layer 2: single fused matmul over [h1_new, h2_prev] (lane-aligned concat).
        cat = jnp.concatenate([h1n.astype(bf16), h2.astype(bf16)], axis=1)  # (B, 2*Hp)
        g2 = jnp.dot(cat, w2_ref[...], preferred_element_type=f32) + b2b
        h2n, c2n = gates_to_hc(g2, c2)
        if write:  # only the timesteps the head actually consumes are written
            out_ref[t - out_start] = h2n
        return (h1n, c1n, h2n, c2n)

    carry = (zeros, zeros, zeros, zeros)
    if out_start > 0:
        carry = jax.lax.fori_loop(
            0, out_start, functools.partial(step, write=False), carry,
            unroll=unroll)
    jax.lax.fori_loop(
        out_start, t_total, functools.partial(step, write=True), carry,
        unroll=unroll)


# -----------------------------------------------------------------------------
# Wrapper: weight re-packing, hoisted input projection, kernel call, head.
# -----------------------------------------------------------------------------
def quantile_lstm_forward(x_btd, params, quantiles, output_size):
    """x_btd: (B, T, Din) batch-first like PyTorch. Returns {str(q): (B, S)}."""
    B, T, Din = x_btd.shape
    H = params["whh1"].shape[0]
    Hp = ((H + 127) // 128) * 128           # pad hidden to full lane width
    S = min(T, output_size)
    out_start = T - S
    HI = jax.lax.Precision.HIGHEST

    # --- repack / zero-pad weights so each gate block (i,f,g,o) is Hp lanes ---
    # Pad lanes/rows are exact zeros (and stay exactly zero under the bf16 cast),
    # so padded hidden units provably remain h = c = 0 for every timestep.
    def pad_gates(w):                       # (..., 4H) -> (..., 4Hp)
        lead = w.shape[:-1]
        w4 = w.reshape(lead + (4, H))
        w4 = jnp.pad(w4, [(0, 0)] * len(lead) + [(0, 0), (0, Hp - H)])
        return w4.reshape(lead + (4 * Hp,))

    def pad_hidden_rows(w):                 # (H, X) -> (Hp, X)
        return jnp.pad(w, ((0, Hp - H), (0, 0)))

    wih1_p = pad_gates(params["wih1"])                      # (Din, 4Hp) f32
    b1_p = pad_gates(params["b1"])                          # (1, 4Hp)   f32
    whh1_p = pad_hidden_rows(pad_gates(params["whh1"]))     # (Hp, 4Hp)
    wih2_p = pad_hidden_rows(pad_gates(params["wih2"]))     # (Hp, 4Hp)
    whh2_p = pad_hidden_rows(pad_gates(params["whh2"]))     # (Hp, 4Hp)
    w2cat = jnp.concatenate([wih2_p, whh2_p], axis=0)       # (2Hp, 4Hp)
    b2_p = pad_gates(params["b2"])                          # (1, 4Hp)   f32

    # bf16 MXU operands for the in-kernel recurrent matmuls (f32 accumulation).
    whh1_bf = whh1_p.astype(jnp.bfloat16)
    w2cat_bf = w2cat.astype(jnp.bfloat16)

    # --- hoisted layer-1 input projection (no sequential dependence), f32 ---
    x_tbd = jnp.transpose(x_btd, (1, 0, 2)).astype(jnp.float32)          # (T, B, Din)
    g1_all = jnp.einsum("tbd,dg->tbg", x_tbd, wih1_p, precision=HI) + b1_p  # (T, B, 4Hp)

    flops = T * (2 * B * Hp * 4 * Hp + 2 * B * (2 * Hp) * 4 * Hp)
    transcendentals = T * 10 * B * Hp
    bytes_accessed = (4 * (T * B * 4 * Hp)            # g1_all (f32)
                      + 2 * (Hp * 4 * Hp + 2 * Hp * 4 * Hp)   # bf16 weights
                      + 4 * (4 * Hp + S * B * Hp))    # b2 + output

    kern = functools.partial(
        _lstm_recurrence_kernel,
        hp=Hp, t_total=T, out_start=out_start,
        # Full unroll for short T; unroll=8 otherwise (sweep {4,8,16} at prod T).
        unroll=True if T <= 16 else 8)

    h2_seq = pl.pallas_call(
        kern,
        out_shape=jax.ShapeDtypeStruct((S, B, Hp), jnp.float32),
        in_specs=[pl.BlockSpec(memory_space=pltpu.MemorySpace.VMEM)] * 4,
        out_specs=pl.BlockSpec(memory_space=pltpu.MemorySpace.VMEM),
        compiler_params=pltpu.CompilerParams(
            vmem_limit_bytes=32 * 1024 * 1024),  # explicit; fits all generations
        cost_estimate=pl.CostEstimate(
            flops=int(flops),
            transcendentals=int(transcendentals),
            bytes_accessed=int(bytes_accessed)),
    )(g1_all, whh1_bf, w2cat_bf, b2_p)

    # --- quantile head in XLA on the lane-dense h2 sequence (Q=3 lanes would
    #     otherwise force masked partial stores inside the kernel) ---
    y = jnp.einsum("sbh,hq->sbq", h2_seq[..., :H], params["wout"],
                   precision=HI) + params["bout"]                        # (S, B, Q)

    return {str(q): jnp.transpose(y[:, :, i], (1, 0))
            for i, q in enumerate(quantiles)}


# -----------------------------------------------------------------------------
# Pure-JAX reference (lax.scan) for correctness checking.
# mm_dtype=float32  -> plain f32 reference (module semantics).
# mm_dtype=bfloat16 -> same bf16 MXU-operand cast as the kernel (structural check).
# -----------------------------------------------------------------------------
def quantile_lstm_reference(x_btd, params, quantiles, output_size,
                            mm_dtype=jnp.float32):
    H = params["whh1"].shape[0]
    x_tbd = jnp.transpose(x_btd, (1, 0, 2)).astype(jnp.float32)
    B = x_tbd.shape[1]
    HI = jax.lax.Precision.HIGHEST

    def mm(a, w):
        return jnp.dot(a.astype(mm_dtype), w.astype(mm_dtype),
                       preferred_element_type=jnp.float32, precision=HI)

    def split_gates(gates):
        i = jax.nn.sigmoid(gates[:, 0 * H:1 * H])
        f = jax.nn.sigmoid(gates[:, 1 * H:2 * H])
        g = jnp.tanh(gates[:, 2 * H:3 * H])
        o = jax.nn.sigmoid(gates[:, 3 * H:4 * H])
        return i, f, g, o

    def step(carry, x_t):
        h1, c1, h2, c2 = carry
        # Layer 1: f32 input projection (matches hoisted wrapper einsum) + recurrent mm.
        g1 = (jnp.dot(x_t, params["wih1"], precision=HI) + params["b1"]) \
            + mm(h1, params["whh1"])
        i, f, g, o = split_gates(g1)
        c1 = f * c1 + i * g
        h1 = o * jnp.tanh(c1)
        # Layer 2.
        g2 = mm(h1, params["wih2"]) + mm(h2, params["whh2"]) + params["b2"]
        i, f, g, o = split_gates(g2)
        c2 = f * c2 + i * g
        h2 = o * jnp.tanh(c2)
        y = jnp.dot(h2, params["wout"], precision=HI) + params["bout"]
        return (h1, c1, h2, c2), y

    z = jnp.zeros((B, H), jnp.float32)
    _, ys = jax.lax.scan(step, (z, z, z, z), x_tbd)     # (T, B, Q)
    T = ys.shape[0]
    S = min(T, output_size)
    return {str(q): jnp.transpose(ys[T - S:, :, i], (1, 0))
            for i, q in enumerate(quantiles)}


def make_params(key, input_size, hidden_size, num_quantiles):
    """Deterministic init matching PyTorch shapes (stored pre-transposed for x @ W)."""
    H = hidden_size
    ks = jax.random.split(key, 10)
    u = lambda k, shape, s: jax.random.uniform(k, shape, jnp.float32, -s, s)
    s_lstm = 1.0 / jnp.sqrt(H)
    s_lin = 1.0 / jnp.sqrt(H)
    return {
        # layer 1: PyTorch weight_ih_l0 is (4H, Din); stored transposed (Din, 4H)
        "wih1": u(ks[0], (input_size, 4 * H), s_lstm),
        "whh1": u(ks[1], (H, 4 * H), s_lstm),
        "b1": u(ks[2], (1, 4 * H), s_lstm) + u(ks[3], (1, 4 * H), s_lstm),  # b_ih+b_hh
        # layer 2: weight_ih_l1 is (4H, H); stored transposed (H, 4H)
        "wih2": u(ks[4], (H, 4 * H), s_lstm),
        "whh2": u(ks[5], (H, 4 * H), s_lstm),
        "b2": u(ks[6], (1, 4 * H), s_lstm) + u(ks[7], (1, 4 * H), s_lstm),
        # output Linear: PyTorch (Q, H); stored transposed (H, Q)
        "wout": u(ks[8], (H, num_quantiles), s_lin),
        "bout": u(ks[9], (1, num_quantiles), s_lin),
    }


if __name__ == "__main__":
    import numpy as np

    # Small shapes consistent with the module's forward.
    B, T, Din = 2, 8, 16
    H = 32
    output_size = 8
    quantiles = (0.05, 0.5, 0.95)

    root = jax.random.PRNGKey(0)
    k_params, k_x = jax.random.split(root)
    params = make_params(k_params, Din, H, len(quantiles))
    x = jax.random.normal(k_x, (B, T, Din), jnp.float32)

    fwd = jax.jit(functools.partial(
        quantile_lstm_forward, quantiles=quantiles, output_size=output_size))
    out_dict = fwd(x, params)
    out_dict = jax.tree_util.tree_map(jax.block_until_ready, out_dict)

    # (a) Tight structural check: reference uses the SAME bf16 MXU-operand cast
    #     as the kernel, so any padding / fusion / recurrence bug shows up here.
    ref_bf16 = quantile_lstm_reference(x, params, quantiles, output_size,
                                       mm_dtype=jnp.bfloat16)
    # (b) Semantic check against the pure-f32 reference; tolerance reflects the
    #     bf16 rounding of the MXU operands (single-pass matmuls, f32 accum).
    ref_f32 = quantile_lstm_reference(x, params, quantiles, output_size,
                                      mm_dtype=jnp.float32)
    for q in quantiles:
        got = np.asarray(out_dict[str(q)])
        np.testing.assert_allclose(got, np.asarray(ref_bf16[str(q)]),
                                   rtol=1e-3, atol=1e-5)
        np.testing.assert_allclose(got, np.asarray(ref_f32[str(q)]),
                                   rtol=5e-2, atol=5e-3)
        assert got.shape == (B, min(T, output_size))

    print("KERNEL_OK")
</pallas_src>

<mosaic_0001>
module attributes {stable_mosaic.version = 11 : i64} {
  func.func @_lstm_recurrence_kernel(%arg0: memref<8x2x512xf32, #tpu.memory_space<vmem>>, %arg1: memref<128x512xbf16, #tpu.memory_space<vmem>>, %arg2: memref<256x512xbf16, #tpu.memory_space<vmem>>, %arg3: memref<1x512xf32, #tpu.memory_space<vmem>>, %arg4: memref<8x2x128xf32, #tpu.memory_space<vmem>>) attributes {dimension_semantics = [], scalar_prefetch = 0 : i64, scratch_operands = 0 : i64, tpu.core_type = #tpu.core_type<tc>} {
    %cst = arith.constant 0.000000e+00 : f32
    %0 = vector.broadcast %cst : f32 to vector<2x128xf32>
    %c0 = arith.constant 0 : index
    %c0_0 = arith.constant 0 : index
    %1 = vector.load %arg3[%c0, %c0_0] : memref<1x512xf32, #tpu.memory_space<vmem>>, vector<1x512xf32>
    %2 = vector.shape_cast %1 : vector<1x512xf32> to vector<1x512xf32>
    %3 = vector.broadcast %2 : vector<1x512xf32> to vector<2x512xf32>
    %c0_i32 = arith.constant 0 : i32
    %4 = arith.index_cast %c0_i32 : i32 to index
    %c0_1 = arith.constant 0 : index
    %c0_2 = arith.constant 0 : index
    %5 = vector.load %arg0[%4, %c0_1, %c0_2] : memref<8x2x512xf32, #tpu.memory_space<vmem>>, vector<1x2x512xf32>
    %6 = vector.shape_cast %5 : vector<1x2x512xf32> to vector<2x512xf32>
    %7 = arith.truncf %0 : vector<2x128xf32> to vector<2x128xbf16>
    %c0_3 = arith.constant 0 : index
    %c0_4 = arith.constant 0 : index
    %8 = vector.load %arg1[%c0_3, %c0_4] : memref<128x512xbf16, #tpu.memory_space<vmem>>, vector<128x512xbf16>
    %cst_5 = arith.constant dense<0.000000e+00> : vector<2x512xf32>
    %9 = tpu.matmul %7, %8, %cst_5 {dimension_numbers = #tpu.dot_dimension_numbers<[1], [0], [0], [1], [0, 0, 1, 1], [], []>} : vector<2x128xbf16>, vector<128x512xbf16>, vector<2x512xf32> -> vector<2x512xf32>
    %10 = arith.addf %6, %9 : vector<2x512xf32>
    %11 = vector.extract_strided_slice %10 {offsets = [0, 0], sizes = [2, 128], strides = [1, 1]} : vector<2x512xf32> to vector<2x128xf32>
    %12 = arith.negf %11 : vector<2x128xf32>
    %13 = math.exp %12 : vector<2x128xf32>
    %cst_6 = arith.constant 1.000000e+00 : f32
    %14 = vector.broadcast %cst_6 : f32 to vector<2x128xf32>
    %15 = arith.addf %14, %13 : vector<2x128xf32>
    %16 = arith.divf %14, %15 : vector<2x128xf32>
    %17 = vector.extract_strided_slice %10 {offsets = [0, 128], sizes = [2, 128], strides = [1, 1]} : vector<2x512xf32> to vector<2x128xf32>
    %18 = arith.negf %17 : vector<2x128xf32>
    %19 = math.exp %18 : vector<2x128xf32>
    %cst_7 = arith.constant 1.000000e+00 : f32
    %20 = vector.broadcast %cst_7 : f32 to vector<2x128xf32>
    %21 = arith.addf %20, %19 : vector<2x128xf32>
    %22 = arith.divf %20, %21 : vector<2x128xf32>
    %23 = vector.extract_strided_slice %10 {offsets = [0, 256], sizes = [2, 128], strides = [1, 1]} : vector<2x512xf32> to vector<2x128xf32>
    %24 = math.tanh %23 : vector<2x128xf32>
    %25 = vector.extract_strided_slice %10 {offsets = [0, 384], sizes = [2, 128], strides = [1, 1]} : vector<2x512xf32> to vector<2x128xf32>
    %26 = arith.negf %25 : vector<2x128xf32>
    %27 = math.exp %26 : vector<2x128xf32>
    %cst_8 = arith.constant 1.000000e+00 : f32
    %28 = vector.broadcast %cst_8 : f32 to vector<2x128xf32>
    %29 = arith.addf %28, %27 : vector<2x128xf32>
    %30 = arith.divf %28, %29 : vector<2x128xf32>
    %31 = arith.mulf %22, %0 : vector<2x128xf32>
    %32 = arith.mulf %16, %24 : vector<2x128xf32>
    %33 = arith.addf %31, %32 : vector<2x128xf32>
    %34 = math.tanh %33 : vector<2x128xf32>
    %35 = arith.mulf %30, %34 : vector<2x128xf32>
    %36 = arith.truncf %35 : vector<2x128xf32> to vector<2x128xbf16>
    %37 = arith.truncf %0 : vector<2x128xf32> to vector<2x128xbf16>
    %38 = tpu.concatenate %36, %37 in 1 : vector<2x128xbf16>, vector<2x128xbf16> -> vector<2x256xbf16>
    %c0_9 = arith.constant 0 : index
    %c0_10 = arith.constant 0 : index
    %39 = vector.load %arg2[%c0_9, %c0_10] : memref<256x512xbf16, #tpu.memory_space<vmem>>, vector<256x512xbf16>
    %cst_11 = arith.constant dense<0.000000e+00> : vector<2x512xf32>
    %40 = tpu.matmul %38, %39, %cst_11 {dimension_numbers = #tpu.dot_dimension_numbers<[1], [0], [0], [1], [0, 0, 1, 1], [], []>} : vector<2x256xbf16>, vector<256x512xbf16>, vector<2x512xf32> -> vector<2x512xf32>
    %41 = arith.addf %40, %3 : vector<2x512xf32>
    %42 = vector.extract_strided_slice %41 {offsets = [0, 0], sizes = [2, 128], strides = [1, 1]} : vector<2x512xf32> to vector<2x128xf32>
    %43 = arith.negf %42 : vector<2x128xf32>
    %44 = math.exp %43 : vector<2x128xf32>
    %cst_12 = arith.constant 1.000000e+00 : f32
    %45 = vector.broadcast %cst_12 : f32 to vector<2x128xf32>
    %46 = arith.addf %45, %44 : vector<2x128xf32>
    %47 = arith.divf %45, %46 : vector<2x128xf32>
    %48 = vector.extract_strided_slice %41 {offsets = [0, 128], sizes = [2, 128], strides = [1, 1]} : vector<2x512xf32> to vector<2x128xf32>
    %49 = arith.negf %48 : vector<2x128xf32>
    %50 = math.exp %49 : vector<2x128xf32>
    %cst_13 = arith.constant 1.000000e+00 : f32
    %51 = vector.broadcast %cst_13 : f32 to vector<2x128xf32>
    %52 = arith.addf %51, %50 : vector<2x128xf32>
    %53 = arith.divf %51, %52 : vector<2x128xf32>
    %54 = vector.extract_strided_slice %41 {offsets = [0, 256], sizes = [2, 128], strides = [1, 1]} : vector<2x512xf32> to vector<2x128xf32>
    %55 = math.tanh %54 : vector<2x128xf32>
    %56 = vector.extract_strided_slice %41 {offsets = [0, 384], sizes = [2, 128], strides = [1, 1]} : vector<2x512xf32> to vector<2x128xf32>
    %57 = arith.negf %56 : vector<2x128xf32>
    %58 = math.exp %57 : vector<2x128xf32>
    %cst_14 = arith.constant 1.000000e+00 : f32
    %59 = vector.broadcast %cst_14 : f32 to vector<2x128xf32>
    %60 = arith.addf %59, %58 : vector<2x128xf32>
    %61 = arith.divf %59, %60 : vector<2x128xf32>
    %62 = arith.mulf %53, %0 : vector<2x128xf32>
    %63 = arith.mulf %47, %55 : vector<2x128xf32>
    %64 = arith.addf %62, %63 : vector<2x128xf32>
    %65 = math.tanh %64 : vector<2x128xf32>
    %66 = arith.mulf %61, %65 : vector<2x128xf32>
    %c0_i32_15 = arith.constant 0 : i32
    %67 = arith.subi %c0_i32, %c0_i32_15 : i32
    %68 = arith.index_cast %67 : i32 to index
    %c0_16 = arith.constant 0 : index
    %c0_17 = arith.constant 0 : index
    %69 = vector.load %arg4[%68, %c0_16, %c0_17] : memref<8x2x128xf32, #tpu.memory_space<vmem>>, vector<1x2x128xf32>
    %70 = vector.shape_cast %69 : vector<1x2x128xf32> to vector<2x128xf32>
    %71 = vector.shape_cast %66 : vector<2x128xf32> to vector<1x2x128xf32>
    tpu.vector_store %arg4[%68, %c0_16, %c0_17], %71 {strides = array<i32>} : memref<8x2x128xf32, #tpu.memory_space<vmem>>, vector<1x2x128xf32>,
    %c1_i32 = arith.constant 1 : i32
    %72 = arith.index_cast %c1_i32 : i32 to index
    %c0_18 = arith.constant 0 : index
    %c0_19 = arith.constant 0 : index
    %73 = vector.load %arg0[%72, %c0_18, %c0_19] : memref<8x2x512xf32, #tpu.memory_space<vmem>>, vector<1x2x512xf32>
    %74 = vector.shape_cast %73 : vector<1x2x512xf32> to vector<2x512xf32>
    %75 = arith.truncf %35 : vector<2x128xf32> to vector<2x128xbf16>
    %c0_20 = arith.constant 0 : index
    %c0_21 = arith.constant 0 : index
    %76 = vector.load %arg1[%c0_20, %c0_21] : memref<128x512xbf16, #tpu.memory_space<vmem>>, vector<128x512xbf16>
    %cst_22 = arith.constant dense<0.000000e+00> : vector<2x512xf32>
    %77 = tpu.matmul %75, %76, %cst_22 {dimension_numbers = #tpu.dot_dimension_numbers<[1], [0], [0], [1], [0, 0, 1, 1], [], []>} : vector<2x128xbf16>, vector<128x512xbf16>, vector<2x512xf32> -> vector<2x512xf32>
    %78 = arith.addf %74, %77 : vector<2x512xf32>
    %79 = vector.extract_strided_slice %78 {offsets = [0, 0], sizes = [2, 128], strides = [1, 1]} : vector<2x512xf32> to vector<2x128xf32>
    %80 = arith.negf %79 : vector<2x128xf32>
    %81 = math.exp %80 : vector<2x128xf32>
    %cst_23 = arith.constant 1.000000e+00 : f32
    %82 = vector.broadcast %cst_23 : f32 to vector<2x128xf32>
    %83 = arith.addf %82, %81 : vector<2x128xf32>
    %84 = arith.divf %82, %83 : vector<2x128xf32>
    %85 = vector.extract_strided_slice %78 {offsets = [0, 128], sizes = [2, 128], strides = [1, 1]} : vector<2x512xf32> to vector<2x128xf32>
    %86 = arith.negf %85 : vector<2x128xf32>
    %87 = math.exp %86 : vector<2x128xf32>
    %cst_24 = arith.constant 1.000000e+00 : f32
    %88 = vector.broadcast %cst_24 : f32 to vector<2x128xf32>
    %89 = arith.addf %88, %87 : vector<2x128xf32>
    %90 = arith.divf %88, %89 : vector<2x128xf32>
    %91 = vector.extract_strided_slice %78 {offsets = [0, 256], sizes = [2, 128], strides = [1, 1]} : vector<2x512xf32> to vector<2x128xf32>
    %92 = math.tanh %91 : vector<2x128xf32>
    %93 = vector.extract_strided_slice %78 {offsets = [0, 384], sizes = [2, 128], strides = [1, 1]} : vector<2x512xf32> to vector<2x128xf32>
    %94 = arith.negf %93 : vector<2x128xf32>
    %95 = math.exp %94 : vector<2x128xf32>
    %cst_25 = arith.constant 1.000000e+00 : f32
    %96 = vector.broadcast %cst_25 : f32 to vector<2x128xf32>
    %97 = arith.addf %96, %95 : vector<2x128xf32>
    %98 = arith.divf %96, %97 : vector<2x128xf32>
    %99 = arith.mulf %90, %33 : vector<2x128xf32>
    %100 = arith.mulf %84, %92 : vector<2x128xf32>
    %101 = arith.addf %99, %100 : vector<2x128xf32>
    %102 = math.tanh %101 : vector<2x128xf32>
    %103 = arith.mulf %98, %102 : vector<2x128xf32>
    %104 = arith.truncf %103 : vector<2x128xf32> to vector<2x128xbf16>
    %105 = arith.truncf %66 : vector<2x128xf32> to vector<2x128xbf16>
    %106 = tpu.concatenate %104, %105 in 1 : vector<2x128xbf16>, vector<2x128xbf16> -> vector<2x256xbf16>
    %c0_26 = arith.constant 0 : index
    %c0_27 = arith.constant 0 : index
    %107 = vector.load %arg2[%c0_26, %c0_27] : memref<256x512xbf16, #tpu.memory_space<vmem>>, vector<256x512xbf16>
    %cst_28 = arith.constant dense<0.000000e+00> : vector<2x512xf32>
    %108 = tpu.matmul %106, %107, %cst_28 {dimension_numbers = #tpu.dot_dimension_numbers<[1], [0], [0], [1], [0, 0, 1, 1], [], []>} : vector<2x256xbf16>, vector<256x512xbf16>, vector<2x512xf32> -> vector<2x512xf32>
    %109 = arith.addf %108, %3 : vector<2x512xf32>
    %110 = vector.extract_strided_slice %109 {offsets = [0, 0], sizes = [2, 128], strides = [1, 1]} : vector<2x512xf32> to vector<2x128xf32>
    %111 = arith.negf %110 : vector<2x128xf32>
    %112 = math.exp %111 : vector<2x128xf32>
    %cst_29 = arith.constant 1.000000e+00 : f32
    %113 = vector.broadcast %cst_29 : f32 to vector<2x128xf32>
    %114 = arith.addf %113, %112 : vector<2x128xf32>
    %115 = arith.divf %113, %114 : vector<2x128xf32>
    %116 = vector.extract_strided_slice %109 {offsets = [0, 128], sizes = [2, 128], strides = [1, 1]} : vector<2x512xf32> to vector<2x128xf32>
    %117 = arith.negf %116 : vector<2x128xf32>
    %118 = math.exp %117 : vector<2x128xf32>
    %cst_30 = arith.constant 1.000000e+00 : f32
    %119 = vector.broadcast %cst_30 : f32 to vector<2x128xf32>
    %120 = arith.addf %119, %118 : vector<2x128xf32>
    %121 = arith.divf %119, %120 : vector<2x128xf32>
    %122 = vector.extract_strided_slice %109 {offsets = [0, 256], sizes = [2, 128], strides = [1, 1]} : vector<2x512xf32> to vector<2x128xf32>
    %123 = math.tanh %122 : vector<2x128xf32>
    %124 = vector.extract_strided_slice %109 {offsets = [0, 384], sizes = [2, 128], strides = [1, 1]} : vector<2x512xf32> to vector<2x128xf32>
    %125 = arith.negf %124 : vector<2x128xf32>
    %126 = math.exp %125 : vector<2x128xf32>
    %cst_31 = arith.constant 1.000000e+00 : f32
    %127 = vector.broadcast %cst_31 : f32 to vector<2x128xf32>
    %128 = arith.addf %127, %126 : vector<2x128xf32>
    %129 = arith.divf %127, %128 : vector<2x128xf32>
    %130 = arith.mulf %121, %64 : vector<2x128xf32>
    %131 = arith.mulf %115, %123 : vector<2x128xf32>
    %132 = arith.addf %130, %131 : vector<2x128xf32>
    %133 = math.tanh %132 : vector<2x128xf32>
    %134 = arith.mulf %129, %133 : vector<2x128xf32>
    %c0_i32_32 = arith.constant 0 : i32
    %135 = arith.subi %c1_i32, %c0_i32_32 : i32
    %136 = arith.index_cast %135 : i32 to index
    %c0_33 = arith.constant 0 : index
    %c0_34 = arith.constant 0 : index
    %137 = vector.load %arg4[%136, %c0_33, %c0_34] : memref<8x2x128xf32, #tpu.memory_space<vmem>>, vector<1x2x128xf32>
    %138 = vector.shape_cast %137 : vector<1x2x128xf32> to vector<2x128xf32>
    %139 = vector.shape_cast %134 : vector<2x128xf32> to vector<1x2x128xf32>
    tpu.vector_store %arg4[%136, %c0_33, %c0_34], %139 {strides = array<i32>} : memref<8x2x128xf32, #tpu.memory_space<vmem>>, vector<1x2x128xf32>,
    %c2_i32 = arith.constant 2 : i32
    %140 = arith.index_cast %c2_i32 : i32 to index
    %c0_35 = arith.constant 0 : index
    %c0_36 = arith.constant 0 : index
    %141 = vector.load %arg0[%140, %c0_35, %c0_36] : memref<8x2x512xf32, #tpu.memory_space<vmem>>, vector<1x2x512xf32>
    %142 = vector.shape_cast %141 : vector<1x2x512xf32> to vector<2x512xf32>
    %143 = arith.truncf %103 : vector<2x128xf32> to vector<2x128xbf16>
    %c0_37 = arith.constant 0 : index
    %c0_38 = arith.constant 0 : index
    %144 = vector.load %arg1[%c0_37, %c0_38] : memref<128x512xbf16, #tpu.memory_space<vmem>>, vector<128x512xbf16>
    %cst_39 = arith.constant dense<0.000000e+00> : vector<2x512xf32>
    %145 = tpu.matmul %143, %144, %cst_39 {dimension_numbers = #tpu.dot_dimension_numbers<[1], [0], [0], [1], [0, 0, 1, 1], [], []>} : vector<2x128xbf16>, vector<128x512xbf16>, vector<2x512xf32> -> vector<2x512xf32>
    %146 = arith.addf %142, %145 : vector<2x512xf32>
    %147 = vector.extract_strided_slice %146 {offsets = [0, 0], sizes = [2, 128], strides = [1, 1]} : vector<2x512xf32> to vector<2x128xf32>
    %148 = arith.negf %147 : vector<2x128xf32>
    %149 = math.exp %148 : vector<2x128xf32>
    %cst_40 = arith.constant 1.000000e+00 : f32
    %150 = vector.broadcast %cst_40 : f32 to vector<2x128xf32>
    %151 = arith.addf %150, %149 : vector<2x128xf32>
    %152 = arith.divf %150, %151 : vector<2x128xf32>
    %153 = vector.extract_strided_slice %146 {offsets = [0, 128], sizes = [2, 128], strides = [1, 1]} : vector<2x512xf32> to vector<2x128xf32>
    %154 = arith.negf %153 : vector<2x128xf32>
    %155 = math.exp %154 : vector<2x128xf32>
    %cst_41 = arith.constant 1.000000e+00 : f32
    %156 = vector.broadcast %cst_41 : f32 to vector<2x128xf32>
    %157 = arith.addf %156, %155 : vector<2x128xf32>
    %158 = arith.divf %156, %157 : vector<2x128xf32>
    %159 = vector.extract_strided_slice %146 {offsets = [0, 256], sizes = [2, 128], strides = [1, 1]} : vector<2x512xf32> to vector<2x128xf32>
    %160 = math.tanh %159 : vector<2x128xf32>
    %161 = vector.extract_strided_slice %146 {offsets = [0, 384], sizes = [2, 128], strides = [1, 1]} : vector<2x512xf32> to vector<2x128xf32>
    %162 = arith.negf %161 : vector<2x128xf32>
    %163 = math.exp %162 : vector<2x128xf32>
    %cst_42 = arith.constant 1.000000e+00 : f32
    %164 = vector.broadcast %cst_42 : f32 to vector<2x128xf32>
    %165 = arith.addf %164, %163 : vector<2x128xf32>
    %166 = arith.divf %164, %165 : vector<2x128xf32>
    %167 = arith.mulf %158, %101 : vector<2x128xf32>
    %168 = arith.mulf %152, %160 : vector<2x128xf32>
    %169 = arith.addf %167, %168 : vector<2x128xf32>
    %170 = math.tanh %169 : vector<2x128xf32>
    %171 = arith.mulf %166, %170 : vector<2x128xf32>
    %172 = arith.truncf %171 : vector<2x128xf32> to vector<2x128xbf16>
    %173 = arith.truncf %134 : vector<2x128xf32> to vector<2x128xbf16>
    %174 = tpu.concatenate %172, %173 in 1 : vector<2x128xbf16>, vector<2x128xbf16> -> vector<2x256xbf16>
    %c0_43 = arith.constant 0 : index
    %c0_44 = arith.constant 0 : index
    %175 = vector.load %arg2[%c0_43, %c0_44] : memref<256x512xbf16, #tpu.memory_space<vmem>>, vector<256x512xbf16>
    %cst_45 = arith.constant dense<0.000000e+00> : vector<2x512xf32>
    %176 = tpu.matmul %174, %175, %cst_45 {dimension_numbers = #tpu.dot_dimension_numbers<[1], [0], [0], [1], [0, 0, 1, 1], [], []>} : vector<2x256xbf16>, vector<256x512xbf16>, vector<2x512xf32> -> vector<2x512xf32>
    %177 = arith.addf %176, %3 : vector<2x512xf32>
    %178 = vector.extract_strided_slice %177 {offsets = [0, 0], sizes = [2, 128], strides = [1, 1]} : vector<2x512xf32> to vector<2x128xf32>
    %179 = arith.negf %178 : vector<2x128xf32>
    %180 = math.exp %179 : vector<2x128xf32>
    %cst_46 = arith.constant 1.000000e+00 : f32
    %181 = vector.broadcast %cst_46 : f32 to vector<2x128xf32>
    %182 = arith.addf %181, %180 : vector<2x128xf32>
    %183 = arith.divf %181, %182 : vector<2x128xf32>
    %184 = vector.extract_strided_slice %177 {offsets = [0, 128], sizes = [2, 128], strides = [1, 1]} : vector<2x512xf32> to vector<2x128xf32>
    %185 = arith.negf %184 : vector<2x128xf32>
    %186 = math.exp %185 : vector<2x128xf32>
    %cst_47 = arith.constant 1.000000e+00 : f32
    %187 = vector.broadcast %cst_47 : f32 to vector<2x128xf32>
    %188 = arith.addf %187, %186 : vector<2x128xf32>
    %189 = arith.divf %187, %188 : vector<2x128xf32>
    %190 = vector.extract_strided_slice %177 {offsets = [0, 256], sizes = [2, 128], strides = [1, 1]} : vector<2x512xf32> to vector<2x128xf32>
    %191 = math.tanh %190 : vector<2x128xf32>
    %192 = vector.extract_strided_slice %177 {offsets = [0, 384], sizes = [2, 128], strides = [1, 1]} : vector<2x512xf32> to vector<2x128xf32>
    %193 = arith.negf %192 : vector<2x128xf32>
    %194 = math.exp %193 : vector<2x128xf32>
    %cst_48 = arith.constant 1.000000e+00 : f32
    %195 = vector.broadcast %cst_48 : f32 to vector<2x128xf32>
    %196 = arith.addf %195, %194 : vector<2x128xf32>
    %197 = arith.divf %195, %196 : vector<2x128xf32>
    %198 = arith.mulf %189, %132 : vector<2x128xf32>
    %199 = arith.mulf %183, %191 : vector<2x128xf32>
    %200 = arith.addf %198, %199 : vector<2x128xf32>
    %201 = math.tanh %200 : vector<2x128xf32>
    %202 = arith.mulf %197, %201 : vector<2x128xf32>
    %c0_i32_49 = arith.constant 0 : i32
    %203 = arith.subi %c2_i32, %c0_i32_49 : i32
    %204 = arith.index_cast %203 : i32 to index
    %c0_50 = arith.constant 0 : index
    %c0_51 = arith.constant 0 : index
    %205 = vector.load %arg4[%204, %c0_50, %c0_51] : memref<8x2x128xf32, #tpu.memory_space<vmem>>, vector<1x2x128xf32>
    %206 = vector.shape_cast %205 : vector<1x2x128xf32> to vector<2x128xf32>
    %207 = vector.shape_cast %202 : vector<2x128xf32> to vector<1x2x128xf32>
    tpu.vector_store %arg4[%204, %c0_50, %c0_51], %207 {strides = array<i32>} : memref<8x2x128xf32, #tpu.memory_space<vmem>>, vector<1x2x128xf32>,
    %c3_i32 = arith.constant 3 : i32
    %208 = arith.index_cast %c3_i32 : i32 to index
    %c0_52 = arith.constant 0 : index
    %c0_53 = arith.constant 0 : index
    %209 = vector.load %arg0[%208, %c0_52, %c0_53] : memref<8x2x512xf32, #tpu.memory_space<vmem>>, vector<1x2x512xf32>
    %210 = vector.shape_cast %209 : vector<1x2x512xf32> to vector<2x512xf32>
    %211 = arith.truncf %171 : vector<2x128xf32> to vector<2x128xbf16>
    %c0_54 = arith.constant 0 : index
    %c0_55 = arith.constant 0 : index
    %212 = vector.load %arg1[%c0_54, %c0_55] : memref<128x512xbf16, #tpu.memory_space<vmem>>, vector<128x512xbf16>
    %cst_56 = arith.constant dense<0.000000e+00> : vector<2x512xf32>
    %213 = tpu.matmul %211, %212, %cst_56 {dimension_numbers = #tpu.dot_dimension_numbers<[1], [0], [0], [1], [0, 0, 1, 1], [], []>} : vector<2x128xbf16>, vector<128x512xbf16>, vector<2x512xf32> -> vector<2x512xf32>
    %214 = arith.addf %210, %213 : vector<2x512xf32>
    %215 = vector.extract_strided_slice %214 {offsets = [0, 0], sizes = [2, 128], strides = [1, 1]} : vector<2x512xf32> to vector<2x128xf32>
    %216 = arith.negf %215 : vector<2x128xf32>
    %217 = math.exp %216 : vector<2x128xf32>
    %cst_57 = arith.constant 1.000000e+00 : f32
    %218 = vector.broadcast %cst_57 : f32 to vector<2x128xf32>
    %219 = arith.addf %218, %217 : vector<2x128xf32>
    %220 = arith.divf %218, %219 : vector<2x128xf32>
    %221 = vector.extract_strided_slice %214 {offsets = [0, 128], sizes = [2, 128], strides = [1, 1]} : vector<2x512xf32> to vector<2x128xf32>
    %222 = arith.negf %221 : vector<2x128xf32>
    %223 = math.exp %222 : vector<2x128xf32>
    %cst_58 = arith.constant 1.000000e+00 : f32
    %224 = vector.broadcast %cst_58 : f32 to vector<2x128xf32>
    %225 = arith.addf %224, %223 : vector<2x128xf32>
    %226 = arith.divf %224, %225 : vector<2x128xf32>
    %227 = vector.extract_strided_slice %214 {offsets = [0, 256], sizes = [2, 128], strides = [1, 1]} : vector<2x512xf32> to vector<2x128xf32>
    %228 = math.tanh %227 : vector<2x128xf32>
    %229 = vector.extract_strided_slice %214 {offsets = [0, 384], sizes = [2, 128], strides = [1, 1]} : vector<2x512xf32> to vector<2x128xf32>
    %230 = arith.negf %229 : vector<2x128xf32>
    %231 = math.exp %230 : vector<2x128xf32>
    %cst_59 = arith.constant 1.000000e+00 : f32
    %232 = vector.broadcast %cst_59 : f32 to vector<2x128xf32>
    %233 = arith.addf %232, %231 : vector<2x128xf32>
    %234 = arith.divf %232, %233 : vector<2x128xf32>
    %235 = arith.mulf %226, %169 : vector<2x128xf32>
    %236 = arith.mulf %220, %228 : vector<2x128xf32>
    %237 = arith.addf %235, %236 : vector<2x128xf32>
    %238 = math.tanh %237 : vector<2x128xf32>
    %239 = arith.mulf %234, %238 : vector<2x128xf32>
    %240 = arith.truncf %239 : vector<2x128xf32> to vector<2x128xbf16>
    %241 = arith.truncf %202 : vector<2x128xf32> to vector<2x128xbf16>
    %242 = tpu.concatenate %240, %241 in 1 : vector<2x128xbf16>, vector<2x128xbf16> -> vector<2x256xbf16>
    %c0_60 = arith.constant 0 : index
    %c0_61 = arith.constant 0 : index
    %243 = vector.load %arg2[%c0_60, %c0_61] : memref<256x512xbf16, #tpu.memory_space<vmem>>, vector<256x512xbf16>
    %cst_62 = arith.constant dense<0.000000e+00> : vector<2x512xf32>
    %244 = tpu.matmul %242, %243, %cst_62 {dimension_numbers = #tpu.dot_dimension_numbers<[1], [0], [0], [1], [0, 0, 1, 1], [], []>} : vector<2x256xbf16>, vector<256x512xbf16>, vector<2x512xf32> -> vector<2x512xf32>
    %245 = arith.addf %244, %3 : vector<2x512xf32>
    %246 = vector.extract_strided_slice %245 {offsets = [0, 0], sizes = [2, 128], strides = [1, 1]} : vector<2x512xf32> to vector<2x128xf32>
    %247 = arith.negf %246 : vector<2x128xf32>
    %248 = math.exp %247 : vector<2x128xf32>
    %cst_63 = arith.constant 1.000000e+00 : f32
    %249 = vector.broadcast %cst_63 : f32 to vector<2x128xf32>
    %250 = arith.addf %249, %248 : vector<2x128xf32>
    %251 = arith.divf %249, %250 : vector<2x128xf32>
    %252 = vector.extract_strided_slice %245 {offsets = [0, 128], sizes = [2, 128], strides = [1, 1]} : vector<2x512xf32> to vector<2x128xf32>
    %253 = arith.negf %252 : vector<2x128xf32>
    %254 = math.exp %253 : vector<2x128xf32>
    %cst_64 = arith.constant 1.000000e+00 : f32
    %255 = vector.broadcast %cst_64 : f32 to vector<2x128xf32>
    %256 = arith.addf %255, %254 : vector<2x128xf32>
    %257 = arith.divf %255, %256 : vector<2x128xf32>
    %258 = vector.extract_strided_slice %245 {offsets = [0, 256], sizes = [2, 128], strides = [1, 1]} : vector<2x512xf32> to vector<2x128xf32>
    %259 = math.tanh %258 : vector<2x128xf32>
    %260 = vector.extract_strided_slice %245 {offsets = [0, 384], sizes = [2, 128], strides = [1, 1]} : vector<2x512xf32> to vector<2x128xf32>
    %261 = arith.negf %260 : vector<2x128xf32>
    %262 = math.exp %261 : vector<2x128xf32>
    %cst_65 = arith.constant 1.000000e+00 : f32
    %263 = vector.broadcast %cst_65 : f32 to vector<2x128xf32>
    %264 = arith.addf %263, %262 : vector<2x128xf32>
    %265 = arith.divf %263, %264 : vector<2x128xf32>
    %266 = arith.mulf %257, %200 : vector<2x128xf32>
    %267 = arith.mulf %251, %259 : vector<2x128xf32>
    %268 = arith.addf %266, %267 : vector<2x128xf32>
    %269 = math.tanh %268 : vector<2x128xf32>
    %270 = arith.mulf %265, %269 : vector<2x128xf32>
    %c0_i32_66 = arith.constant 0 : i32
    %271 = arith.subi %c3_i32, %c0_i32_66 : i32
    %272 = arith.index_cast %271 : i32 to index
    %c0_67 = arith.constant 0 : index
    %c0_68 = arith.constant 0 : index
    %273 = vector.load %arg4[%272, %c0_67, %c0_68] : memref<8x2x128xf32, #tpu.memory_space<vmem>>, vector<1x2x128xf32>
    %274 = vector.shape_cast %273 : vector<1x2x128xf32> to vector<2x128xf32>
    %275 = vector.shape_cast %270 : vector<2x128xf32> to vector<1x2x128xf32>
    tpu.vector_store %arg4[%272, %c0_67, %c0_68], %275 {strides = array<i32>} : memref<8x2x128xf32, #tpu.memory_space<vmem>>, vector<1x2x128xf32>,
    %c4_i32 = arith.constant 4 : i32
    %276 = arith.index_cast %c4_i32 : i32 to index
    %c0_69 = arith.constant 0 : index
    %c0_70 = arith.constant 0 : index
    %277 = vector.load %arg0[%276, %c0_69, %c0_70] : memref<8x2x512xf32, #tpu.memory_space<vmem>>, vector<1x2x512xf32>
    %278 = vector.shape_cast %277 : vector<1x2x512xf32> to vector<2x512xf32>
    %279 = arith.truncf %239 : vector<2x128xf32> to vector<2x128xbf16>
    %c0_71 = arith.constant 0 : index
    %c0_72 = arith.constant 0 : index
    %280 = vector.load %arg1[%c0_71, %c0_72] : memref<128x512xbf16, #tpu.memory_space<vmem>>, vector<128x512xbf16>
    %cst_73 = arith.constant dense<0.000000e+00> : vector<2x512xf32>
    %281 = tpu.matmul %279, %280, %cst_73 {dimension_numbers = #tpu.dot_dimension_numbers<[1], [0], [0], [1], [0, 0, 1, 1], [], []>} : vector<2x128xbf16>, vector<128x512xbf16>, vector<2x512xf32> -> vector<2x512xf32>
    %282 = arith.addf %278, %281 : vector<2x512xf32>
    %283 = vector.extract_strided_slice %282 {offsets = [0, 0], sizes = [2, 128], strides = [1, 1]} : vector<2x512xf32> to vector<2x128xf32>
    %284 = arith.negf %283 : vector<2x128xf32>
    %285 = math.exp %284 : vector<2x128xf32>
    %cst_74 = arith.constant 1.000000e+00 : f32
    %286 = vector.broadcast %cst_74 : f32 to vector<2x128xf32>
    %287 = arith.addf %286, %285 : vector<2x128xf32>
    %288 = arith.divf %286, %287 : vector<2x128xf32>
    %289 = vector.extract_strided_slice %282 {offsets = [0, 128], sizes = [2, 128], strides = [1, 1]} : vector<2x512xf32> to vector<2x128xf32>
    %290 = arith.negf %289 : vector<2x128xf32>
    %291 = math.exp %290 : vector<2x128xf32>
    %cst_75 = arith.constant 1.000000e+00 : f32
    %292 = vector.broadcast %cst_75 : f32 to vector<2x128xf32>
    %293 = arith.addf %292, %291 : vector<2x128xf32>
    %294 = arith.divf %292, %293 : vector<2x128xf32>
    %295 = vector.extract_strided_slice %282 {offsets = [0, 256], sizes = [2, 128], strides = [1, 1]} : vector<2x512xf32> to vector<2x128xf32>
    %296 = math.tanh %295 : vector<2x128xf32>
    %297 = vector.extract_strided_slice %282 {offsets = [0, 384], sizes = [2, 128], strides = [1, 1]} : vector<2x512xf32> to vector<2x128xf32>
    %298 = arith.negf %297 : vector<2x128xf32>
    %299 = math.exp %298 : vector<2x128xf32>
    %cst_76 = arith.constant 1.000000e+00 : f32
    %300 = vector.broadcast %cst_76 : f32 to vector<2x128xf32>
    %301 = arith.addf %300, %299 : vector<2x128xf32>
    %302 = arith.divf %300, %301 : vector<2x128xf32>
    %303 = arith.mulf %294, %237 : vector<2x128xf32>
    %304 = arith.mulf %288, %296 : vector<2x128xf32>
    %305 = arith.addf %303, %304 : vector<2x128xf32>
    %306 = math.tanh %305 : vector<2x128xf32>
    %307 = arith.mulf %302, %306 : vector<2x128xf32>
    %308 = arith.truncf %307 : vector<2x128xf32> to vector<2x128xbf16>
    %309 = arith.truncf %270 : vector<2x128xf32> to vector<2x128xbf16>
    %310 = tpu.concatenate %308, %309 in 1 : vector<2x128xbf16>, vector<2x128xbf16> -> vector<2x256xbf16>
    %c0_77 = arith.constant 0 : index
    %c0_78 = arith.constant 0 : index
    %311 = vector.load %arg2[%c0_77, %c0_78] : memref<256x512xbf16, #tpu.memory_space<vmem>>, vector<256x512xbf16>
    %cst_79 = arith.constant dense<0.000000e+00> : vector<2x512xf32>
    %312 = tpu.matmul %310, %311, %cst_79 {dimension_numbers = #tpu.dot_dimension_numbers<[1], [0], [0], [1], [0, 0, 1, 1], [], []>} : vector<2x256xbf16>, vector<256x512xbf16>, vector<2x512xf32> -> vector<2x512xf32>
    %313 = arith.addf %312, %3 : vector<2x512xf32>
    %314 = vector.extract_strided_slice %313 {offsets = [0, 0], sizes = [2, 128], strides = [1, 1]} : vector<2x512xf32> to vector<2x128xf32>
    %315 = arith.negf %314 : vector<2x128xf32>
    %316 = math.exp %315 : vector<2x128xf32>
    %cst_80 = arith.constant 1.000000e+00 : f32
    %317 = vector.broadcast %cst_80 : f32 to vector<2x128xf32>
    %318 = arith.addf %317, %316 : vector<2x128xf32>
    %319 = arith.divf %317, %318 : vector<2x128xf32>
    %320 = vector.extract_strided_slice %313 {offsets = [0, 128], sizes = [2, 128], strides = [1, 1]} : vector<2x512xf32> to vector<2x128xf32>
    %321 = arith.negf %320 : vector<2x128xf32>
    %322 = math.exp %321 : vector<2x128xf32>
    %cst_81 = arith.constant 1.000000e+00 : f32
    %323 = vector.broadcast %cst_81 : f32 to vector<2x128xf32>
    %324 = arith.addf %323, %322 : vector<2x128xf32>
    %325 = arith.divf %323, %324 : vector<2x128xf32>
    %326 = vector.extract_strided_slice %313 {offsets = [0, 256], sizes = [2, 128], strides = [1, 1]} : vector<2x512xf32> to vector<2x128xf32>
    %327 = math.tanh %326 : vector<2x128xf32>
    %328 = vector.extract_strided_slice %313 {offsets = [0, 384], sizes = [2, 128], strides = [1, 1]} : vector<2x512xf32> to vector<2x128xf32>
    %329 = arith.negf %328 : vector<2x128xf32>
    %330 = math.exp %329 : vector<2x128xf32>
    %cst_82 = arith.constant 1.000000e+00 : f32
    %331 = vector.broadcast %cst_82 : f32 to vector<2x128xf32>
    %332 = arith.addf %331, %330 : vector<2x128xf32>
    %333 = arith.divf %331, %332 : vector<2x128xf32>
    %334 = arith.mulf %325, %268 : vector<2x128xf32>
    %335 = arith.mulf %319, %327 : vector<2x128xf32>
    %336 = arith.addf %334, %335 : vector<2x128xf32>
    %337 = math.tanh %336 : vector<2x128xf32>
    %338 = arith.mulf %333, %337 : vector<2x128xf32>
    %c0_i32_83 = arith.constant 0 : i32
    %339 = arith.subi %c4_i32, %c0_i32_83 : i32
    %340 = arith.index_cast %339 : i32 to index
    %c0_84 = arith.constant 0 : index
    %c0_85 = arith.constant 0 : index
    %341 = vector.load %arg4[%340, %c0_84, %c0_85] : memref<8x2x128xf32, #tpu.memory_space<vmem>>, vector<1x2x128xf32>
    %342 = vector.shape_cast %341 : vector<1x2x128xf32> to vector<2x128xf32>
    %343 = vector.shape_cast %338 : vector<2x128xf32> to vector<1x2x128xf32>
    tpu.vector_store %arg4[%340, %c0_84, %c0_85], %343 {strides = array<i32>} : memref<8x2x128xf32, #tpu.memory_space<vmem>>, vector<1x2x128xf32>,
    %c5_i32 = arith.constant 5 : i32
    %344 = arith.index_cast %c5_i32 : i32 to index
    %c0_86 = arith.constant 0 : index
    %c0_87 = arith.constant 0 : index
    %345 = vector.load %arg0[%344, %c0_86, %c0_87] : memref<8x2x512xf32, #tpu.memory_space<vmem>>, vector<1x2x512xf32>
    %346 = vector.shape_cast %345 : vector<1x2x512xf32> to vector<2x512xf32>
    %347 = arith.truncf %307 : vector<2x128xf32> to vector<2x128xbf16>
    %c0_88 = arith.constant 0 : index
    %c0_89 = arith.constant 0 : index
    %348 = vector.load %arg1[%c0_88, %c0_89] : memref<128x512xbf16, #tpu.memory_space<vmem>>, vector<128x512xbf16>
    %cst_90 = arith.constant dense<0.000000e+00> : vector<2x512xf32>
    %349 = tpu.matmul %347, %348, %cst_90 {dimension_numbers = #tpu.dot_dimension_numbers<[1], [0], [0], [1], [0, 0, 1, 1], [], []>} : vector<2x128xbf16>, vector<128x512xbf16>, vector<2x512xf32> -> vector<2x512xf32>
    %350 = arith.addf %346, %349 : vector<2x512xf32>
    %351 = vector.extract_strided_slice %350 {offsets = [0, 0], sizes = [2, 128], strides = [1, 1]} : vector<2x512xf32> to vector<2x128xf32>
    %352 = arith.negf %351 : vector<2x128xf32>
    %353 = math.exp %352 : vector<2x128xf32>
    %cst_91 = arith.constant 1.000000e+00 : f32
    %354 = vector.broadcast %cst_91 : f32 to vector<2x128xf32>
    %355 = arith.addf %354, %353 : vector<2x128xf32>
    %356 = arith.divf %354, %355 : vector<2x128xf32>
    %357 = vector.extract_strided_slice %350 {offsets = [0, 128], sizes = [2, 128], strides = [1, 1]} : vector<2x512xf32> to vector<2x128xf32>
    %358 = arith.negf %357 : vector<2x128xf32>
    %359 = math.exp %358 : vector<2x128xf32>
    %cst_92 = arith.constant 1.000000e+00 : f32
    %360 = vector.broadcast %cst_92 : f32 to vector<2x128xf32>
    %361 = arith.addf %360, %359 : vector<2x128xf32>
    %362 = arith.divf %360, %361 : vector<2x128xf32>
    %363 = vector.extract_strided_slice %350 {offsets = [0, 256], sizes = [2, 128], strides = [1, 1]} : vector<2x512xf32> to vector<2x128xf32>
    %364 = math.tanh %363 : vector<2x128xf32>
    %365 = vector.extract_strided_slice %350 {offsets = [0, 384], sizes = [2, 128], strides = [1, 1]} : vector<2x512xf32> to vector<2x128xf32>
    %366 = arith.negf %365 : vector<2x128xf32>
    %367 = math.exp %366 : vector<2x128xf32>
    %cst_93 = arith.constant 1.000000e+00 : f32
    %368 = vector.broadcast %cst_93 : f32 to vector<2x128xf32>
    %369 = arith.addf %368, %367 : vector<2x128xf32>
    %370 = arith.divf %368, %369 : vector<2x128xf32>
    %371 = arith.mulf %362, %305 : vector<2x128xf32>
    %372 = arith.mulf %356, %364 : vector<2x128xf32>
    %373 = arith.addf %371, %372 : vector<2x128xf32>
    %374 = math.tanh %373 : vector<2x128xf32>
    %375 = arith.mulf %370, %374 : vector<2x128xf32>
    %376 = arith.truncf %375 : vector<2x128xf32> to vector<2x128xbf16>
    %377 = arith.truncf %338 : vector<2x128xf32> to vector<2x128xbf16>
    %378 = tpu.concatenate %376, %377 in 1 : vector<2x128xbf16>, vector<2x128xbf16> -> vector<2x256xbf16>
    %c0_94 = arith.constant 0 : index
    %c0_95 = arith.constant 0 : index
    %379 = vector.load %arg2[%c0_94, %c0_95] : memref<256x512xbf16, #tpu.memory_space<vmem>>, vector<256x512xbf16>
    %cst_96 = arith.constant dense<0.000000e+00> : vector<2x512xf32>
    %380 = tpu.matmul %378, %379, %cst_96 {dimension_numbers = #tpu.dot_dimension_numbers<[1], [0], [0], [1], [0, 0, 1, 1], [], []>} : vector<2x256xbf16>, vector<256x512xbf16>, vector<2x512xf32> -> vector<2x512xf32>
    %381 = arith.addf %380, %3 : vector<2x512xf32>
    %382 = vector.extract_strided_slice %381 {offsets = [0, 0], sizes = [2, 128], strides = [1, 1]} : vector<2x512xf32> to vector<2x128xf32>
    %383 = arith.negf %382 : vector<2x128xf32>
    %384 = math.exp %383 : vector<2x128xf32>
    %cst_97 = arith.constant 1.000000e+00 : f32
    %385 = vector.broadcast %cst_97 : f32 to vector<2x128xf32>
    %386 = arith.addf %385, %384 : vector<2x128xf32>
    %387 = arith.divf %385, %386 : vector<2x128xf32>
    %388 = vector.extract_strided_slice %381 {offsets = [0, 128], sizes = [2, 128], strides = [1, 1]} : vector<2x512xf32> to vector<2x128xf32>
    %389 = arith.negf %388 : vector<2x128xf32>
    %390 = math.exp %389 : vector<2x128xf32>
    %cst_98 = arith.constant 1.000000e+00 : f32
    %391 = vector.broadcast %cst_98 : f32 to vector<2x128xf32>
    %392 = arith.addf %391, %390 : vector<2x128xf32>
    %393 = arith.divf %391, %392 : vector<2x128xf32>
    %394 = vector.extract_strided_slice %381 {offsets = [0, 256], sizes = [2, 128], strides = [1, 1]} : vector<2x512xf32> to vector<2x128xf32>
    %395 = math.tanh %394 : vector<2x128xf32>
    %396 = vector.extract_strided_slice %381 {offsets = [0, 384], sizes = [2, 128], strides = [1, 1]} : vector<2x512xf32> to vector<2x128xf32>
    %397 = arith.negf %396 : vector<2x128xf32>
    %398 = math.exp %397 : vector<2x128xf32>
    %cst_99 = arith.constant 1.000000e+00 : f32
    %399 = vector.broadcast %cst_99 : f32 to vector<2x128xf32>
    %400 = arith.addf %399, %398 : vector<2x128xf32>
    %401 = arith.divf %399, %400 : vector<2x128xf32>
    %402 = arith.mulf %393, %336 : vector<2x128xf32>
    %403 = arith.mulf %387, %395 : vector<2x128xf32>
    %404 = arith.addf %402, %403 : vector<2x128xf32>
    %405 = math.tanh %404 : vector<2x128xf32>
    %406 = arith.mulf %401, %405 : vector<2x128xf32>
    %c0_i32_100 = arith.constant 0 : i32
    %407 = arith.subi %c5_i32, %c0_i32_100 : i32
    %408 = arith.index_cast %407 : i32 to index
    %c0_101 = arith.constant 0 : index
    %c0_102 = arith.constant 0 : index
    %409 = vector.load %arg4[%408, %c0_101, %c0_102] : memref<8x2x128xf32, #tpu.memory_space<vmem>>, vector<1x2x128xf32>
    %410 = vector.shape_cast %409 : vector<1x2x128xf32> to vector<2x128xf32>
    %411 = vector.shape_cast %406 : vector<2x128xf32> to vector<1x2x128xf32>
    tpu.vector_store %arg4[%408, %c0_101, %c0_102], %411 {strides = array<i32>} : memref<8x2x128xf32, #tpu.memory_space<vmem>>, vector<1x2x128xf32>,
    %c6_i32 = arith.constant 6 : i32
    %412 = arith.index_cast %c6_i32 : i32 to index
    %c0_103 = arith.constant 0 : index
    %c0_104 = arith.constant 0 : index
    %413 = vector.load %arg0[%412, %c0_103, %c0_104] : memref<8x2x512xf32, #tpu.memory_space<vmem>>, vector<1x2x512xf32>
    %414 = vector.shape_cast %413 : vector<1x2x512xf32> to vector<2x512xf32>
    %415 = arith.truncf %375 : vector<2x128xf32> to vector<2x128xbf16>
    %c0_105 = arith.constant 0 : index
    %c0_106 = arith.constant 0 : index
    %416 = vector.load %arg1[%c0_105, %c0_106] : memref<128x512xbf16, #tpu.memory_space<vmem>>, vector<128x512xbf16>
    %cst_107 = arith.constant dense<0.000000e+00> : vector<2x512xf32>
    %417 = tpu.matmul %415, %416, %cst_107 {dimension_numbers = #tpu.dot_dimension_numbers<[1], [0], [0], [1], [0, 0, 1, 1], [], []>} : vector<2x128xbf16>, vector<128x512xbf16>, vector<2x512xf32> -> vector<2x512xf32>
    %418 = arith.addf %414, %417 : vector<2x512xf32>
    %419 = vector.extract_strided_slice %418 {offsets = [0, 0], sizes = [2, 128], strides = [1, 1]} : vector<2x512xf32> to vector<2x128xf32>
    %420 = arith.negf %419 : vector<2x128xf32>
    %421 = math.exp %420 : vector<2x128xf32>
    %cst_108 = arith.constant 1.000000e+00 : f32
    %422 = vector.broadcast %cst_108 : f32 to vector<2x128xf32>
    %423 = arith.addf %422, %421 : vector<2x128xf32>
    %424 = arith.divf %422, %423 : vector<2x128xf32>
    %425 = vector.extract_strided_slice %418 {offsets = [0, 128], sizes = [2, 128], strides = [1, 1]} : vector<2x512xf32> to vector<2x128xf32>
    %426 = arith.negf %425 : vector<2x128xf32>
    %427 = math.exp %426 : vector<2x128xf32>
    %cst_109 = arith.constant 1.000000e+00 : f32
    %428 = vector.broadcast %cst_109 : f32 to vector<2x128xf32>
    %429 = arith.addf %428, %427 : vector<2x128xf32>
    %430 = arith.divf %428, %429 : vector<2x128xf32>
    %431 = vector.extract_strided_slice %418 {offsets = [0, 256], sizes = [2, 128], strides = [1, 1]} : vector<2x512xf32> to vector<2x128xf32>
    %432 = math.tanh %431 : vector<2x128xf32>
    %433 = vector.extract_strided_slice %418 {offsets = [0, 384], sizes = [2, 128], strides = [1, 1]} : vector<2x512xf32> to vector<2x128xf32>
    %434 = arith.negf %433 : vector<2x128xf32>
    %435 = math.exp %434 : vector<2x128xf32>
    %cst_110 = arith.constant 1.000000e+00 : f32
    %436 = vector.broadcast %cst_110 : f32 to vector<2x128xf32>
    %437 = arith.addf %436, %435 : vector<2x128xf32>
    %438 = arith.divf %436, %437 : vector<2x128xf32>
    %439 = arith.mulf %430, %373 : vector<2x128xf32>
    %440 = arith.mulf %424, %432 : vector<2x128xf32>
    %441 = arith.addf %439, %440 : vector<2x128xf32>
    %442 = math.tanh %441 : vector<2x128xf32>
    %443 = arith.mulf %438, %442 : vector<2x128xf32>
    %444 = arith.truncf %443 : vector<2x128xf32> to vector<2x128xbf16>
    %445 = arith.truncf %406 : vector<2x128xf32> to vector<2x128xbf16>
    %446 = tpu.concatenate %444, %445 in 1 : vector<2x128xbf16>, vector<2x128xbf16> -> vector<2x256xbf16>
    %c0_111 = arith.constant 0 : index
    %c0_112 = arith.constant 0 : index
    %447 = vector.load %arg2[%c0_111, %c0_112] : memref<256x512xbf16, #tpu.memory_space<vmem>>, vector<256x512xbf16>
    %cst_113 = arith.constant dense<0.000000e+00> : vector<2x512xf32>
    %448 = tpu.matmul %446, %447, %cst_113 {dimension_numbers = #tpu.dot_dimension_numbers<[1], [0], [0], [1], [0, 0, 1, 1], [], []>} : vector<2x256xbf16>, vector<256x512xbf16>, vector<2x512xf32> -> vector<2x512xf32>
    %449 = arith.addf %448, %3 : vector<2x512xf32>
    %450 = vector.extract_strided_slice %449 {offsets = [0, 0], sizes = [2, 128], strides = [1, 1]} : vector<2x512xf32> to vector<2x128xf32>
    %451 = arith.negf %450 : vector<2x128xf32>
    %452 = math.exp %451 : vector<2x128xf32>
    %cst_114 = arith.constant 1.000000e+00 : f32
    %453 = vector.broadcast %cst_114 : f32 to vector<2x128xf32>
    %454 = arith.addf %453, %452 : vector<2x128xf32>
    %455 = arith.divf %453, %454 : vector<2x128xf32>
    %456 = vector.extract_strided_slice %449 {offsets = [0, 128], sizes = [2, 128], strides = [1, 1]} : vector<2x512xf32> to vector<2x128xf32>
    %457 = arith.negf %456 : vector<2x128xf32>
    %458 = math.exp %457 : vector<2x128xf32>
    %cst_115 = arith.constant 1.000000e+00 : f32
    %459 = vector.broadcast %cst_115 : f32 to vector<2x128xf32>
    %460 = arith.addf %459, %458 : vector<2x128xf32>
    %461 = arith.divf %459, %460 : vector<2x128xf32>
    %462 = vector.extract_strided_slice %449 {offsets = [0, 256], sizes = [2, 128], strides = [1, 1]} : vector<2x512xf32> to vector<2x128xf32>
    %463 = math.tanh %462 : vector<2x128xf32>
    %464 = vector.extract_strided_slice %449 {offsets = [0, 384], sizes = [2, 128], strides = [1, 1]} : vector<2x512xf32> to vector<2x128xf32>
    %465 = arith.negf %464 : vector<2x128xf32>
    %466 = math.exp %465 : vector<2x128xf32>
    %cst_116 = arith.constant 1.000000e+00 : f32
    %467 = vector.broadcast %cst_116 : f32 to vector<2x128xf32>
    %468 = arith.addf %467, %466 : vector<2x128xf32>
    %469 = arith.divf %467, %468 : vector<2x128xf32>
    %470 = arith.mulf %461, %404 : vector<2x128xf32>
    %471 = arith.mulf %455, %463 : vector<2x128xf32>
    %472 = arith.addf %470, %471 : vector<2x128xf32>
    %473 = math.tanh %472 : vector<2x128xf32>
    %474 = arith.mulf %469, %473 : vector<2x128xf32>
    %c0_i32_117 = arith.constant 0 : i32
    %475 = arith.subi %c6_i32, %c0_i32_117 : i32
    %476 = arith.index_cast %475 : i32 to index
    %c0_118 = arith.constant 0 : index
    %c0_119 = arith.constant 0 : index
    %477 = vector.load %arg4[%476, %c0_118, %c0_119] : memref<8x2x128xf32, #tpu.memory_space<vmem>>, vector<1x2x128xf32>
    %478 = vector.shape_cast %477 : vector<1x2x128xf32> to vector<2x128xf32>
    %479 = vector.shape_cast %474 : vector<2x128xf32> to vector<1x2x128xf32>
    tpu.vector_store %arg4[%476, %c0_118, %c0_119], %479 {strides = array<i32>} : memref<8x2x128xf32, #tpu.memory_space<vmem>>, vector<1x2x128xf32>,
    %c7_i32 = arith.constant 7 : i32
    %480 = arith.index_cast %c7_i32 : i32 to index
    %c0_120 = arith.constant 0 : index
    %c0_121 = arith.constant 0 : index
    %481 = vector.load %arg0[%480, %c0_120, %c0_121] : memref<8x2x512xf32, #tpu.memory_space<vmem>>, vector<1x2x512xf32>
    %482 = vector.shape_cast %481 : vector<1x2x512xf32> to vector<2x512xf32>
    %483 = arith.truncf %443 : vector<2x128xf32> to vector<2x128xbf16>
    %c0_122 = arith.constant 0 : index
    %c0_123 = arith.constant 0 : index
    %484 = vector.load %arg1[%c0_122, %c0_123] : memref<128x512xbf16, #tpu.memory_space<vmem>>, vector<128x512xbf16>
    %cst_124 = arith.constant dense<0.000000e+00> : vector<2x512xf32>
    %485 = tpu.matmul %483, %484, %cst_124 {dimension_numbers = #tpu.dot_dimension_numbers<[1], [0], [0], [1], [0, 0, 1, 1], [], []>} : vector<2x128xbf16>, vector<128x512xbf16>, vector<2x512xf32> -> vector<2x512xf32>
    %486 = arith.addf %482, %485 : vector<2x512xf32>
    %487 = vector.extract_strided_slice %486 {offsets = [0, 0], sizes = [2, 128], strides = [1, 1]} : vector<2x512xf32> to vector<2x128xf32>
    %488 = arith.negf %487 : vector<2x128xf32>
    %489 = math.exp %488 : vector<2x128xf32>
    %cst_125 = arith.constant 1.000000e+00 : f32
    %490 = vector.broadcast %cst_125 : f32 to vector<2x128xf32>
    %491 = arith.addf %490, %489 : vector<2x128xf32>
    %492 = arith.divf %490, %491 : vector<2x128xf32>
    %493 = vector.extract_strided_slice %486 {offsets = [0, 128], sizes = [2, 128], strides = [1, 1]} : vector<2x512xf32> to vector<2x128xf32>
    %494 = arith.negf %493 : vector<2x128xf32>
    %495 = math.exp %494 : vector<2x128xf32>
    %cst_126 = arith.constant 1.000000e+00 : f32
    %496 = vector.broadcast %cst_126 : f32 to vector<2x128xf32>
    %497 = arith.addf %496, %495 : vector<2x128xf32>
    %498 = arith.divf %496, %497 : vector<2x128xf32>
    %499 = vector.extract_strided_slice %486 {offsets = [0, 256], sizes = [2, 128], strides = [1, 1]} : vector<2x512xf32> to vector<2x128xf32>
    %500 = math.tanh %499 : vector<2x128xf32>
    %501 = vector.extract_strided_slice %486 {offsets = [0, 384], sizes = [2, 128], strides = [1, 1]} : vector<2x512xf32> to vector<2x128xf32>
    %502 = arith.negf %501 : vector<2x128xf32>
    %503 = math.exp %502 : vector<2x128xf32>
    %cst_127 = arith.constant 1.000000e+00 : f32
    %504 = vector.broadcast %cst_127 : f32 to vector<2x128xf32>
    %505 = arith.addf %504, %503 : vector<2x128xf32>
    %506 = arith.divf %504, %505 : vector<2x128xf32>
    %507 = arith.mulf %498, %441 : vector<2x128xf32>
    %508 = arith.mulf %492, %500 : vector<2x128xf32>
    %509 = arith.addf %507, %508 : vector<2x128xf32>
    %510 = math.tanh %509 : vector<2x128xf32>
    %511 = arith.mulf %506, %510 : vector<2x128xf32>
    %512 = arith.truncf %511 : vector<2x128xf32> to vector<2x128xbf16>
    %513 = arith.truncf %474 : vector<2x128xf32> to vector<2x128xbf16>
    %514 = tpu.concatenate %512, %513 in 1 : vector<2x128xbf16>, vector<2x128xbf16> -> vector<2x256xbf16>
    %c0_128 = arith.constant 0 : index
    %c0_129 = arith.constant 0 : index
    %515 = vector.load %arg2[%c0_128, %c0_129] : memref<256x512xbf16, #tpu.memory_space<vmem>>, vector<256x512xbf16>
    %cst_130 = arith.constant dense<0.000000e+00> : vector<2x512xf32>
    %516 = tpu.matmul %514, %515, %cst_130 {dimension_numbers = #tpu.dot_dimension_numbers<[1], [0], [0], [1], [0, 0, 1, 1], [], []>} : vector<2x256xbf16>, vector<256x512xbf16>, vector<2x512xf32> -> vector<2x512xf32>
    %517 = arith.addf %516, %3 : vector<2x512xf32>
    %518 = vector.extract_strided_slice %517 {offsets = [0, 0], sizes = [2, 128], strides = [1, 1]} : vector<2x512xf32> to vector<2x128xf32>
    %519 = arith.negf %518 : vector<2x128xf32>
    %520 = math.exp %519 : vector<2x128xf32>
    %cst_131 = arith.constant 1.000000e+00 : f32
    %521 = vector.broadcast %cst_131 : f32 to vector<2x128xf32>
    %522 = arith.addf %521, %520 : vector<2x128xf32>
    %523 = arith.divf %521, %522 : vector<2x128xf32>
    %524 = vector.extract_strided_slice %517 {offsets = [0, 128], sizes = [2, 128], strides = [1, 1]} : vector<2x512xf32> to vector<2x128xf32>
    %525 = arith.negf %524 : vector<2x128xf32>
    %526 = math.exp %525 : vector<2x128xf32>
    %cst_132 = arith.constant 1.000000e+00 : f32
    %527 = vector.broadcast %cst_132 : f32 to vector<2x128xf32>
    %528 = arith.addf %527, %526 : vector<2x128xf32>
    %529 = arith.divf %527, %528 : vector<2x128xf32>
    %530 = vector.extract_strided_slice %517 {offsets = [0, 256], sizes = [2, 128], strides = [1, 1]} : vector<2x512xf32> to vector<2x128xf32>
    %531 = math.tanh %530 : vector<2x128xf32>
    %532 = vector.extract_strided_slice %517 {offsets = [0, 384], sizes = [2, 128], strides = [1, 1]} : vector<2x512xf32> to vector<2x128xf32>
    %533 = arith.negf %532 : vector<2x128xf32>
    %534 = math.exp %533 : vector<2x128xf32>
    %cst_133 = arith.constant 1.000000e+00 : f32
    %535 = vector.broadcast %cst_133 : f32 to vector<2x128xf32>
    %536 = arith.addf %535, %534 : vector<2x128xf32>
    %537 = arith.divf %535, %536 : vector<2x128xf32>
    %538 = arith.mulf %529, %472 : vector<2x128xf32>
    %539 = arith.mulf %523, %531 : vector<2x128xf32>
    %540 = arith.addf %538, %539 : vector<2x128xf32>
    %541 = math.tanh %540 : vector<2x128xf32>
    %542 = arith.mulf %537, %541 : vector<2x128xf32>
    %c0_i32_134 = arith.constant 0 : i32
    %543 = arith.subi %c7_i32, %c0_i32_134 : i32
    %544 = arith.index_cast %543 : i32 to index
    %c0_135 = arith.constant 0 : index
    %c0_136 = arith.constant 0 : index
    %545 = vector.load %arg4[%544, %c0_135, %c0_136] : memref<8x2x128xf32, #tpu.memory_space<vmem>>, vector<1x2x128xf32>
    %546 = vector.shape_cast %545 : vector<1x2x128xf32> to vector<2x128xf32>
    %547 = vector.shape_cast %542 : vector<2x128xf32> to vector<1x2x128xf32>
    tpu.vector_store %arg4[%544, %c0_135, %c0_136], %547 {strides = array<i32>} : memref<8x2x128xf32, #tpu.memory_space<vmem>>, vector<1x2x128xf32>,
    %c8_i32 = arith.constant 8 : i32
    return
  }
}

</mosaic_0001>

<llo_original>
// kernel: quantile_lstm_forward.1
$region0: #{quantile_lstm_forward.1}
  #allocation0 [shape = 'u32[]', space=smem, size = 0x4, offset = 0x4, fixed_abs, tag = 'smem constant byte address 0x4 - core index']
  #allocation1 [shape = 'u32[144,128]{1,0:T(1,128)}', space=vmem, size = 0x12000, scoped, tag = 'internal scratch']
  %s0 = inlined_call_operand.vmem [shape: f32[8,2,512], index: 0, kind: input, shape index: {}]
  %s1 = inlined_call_operand.vmem [shape: bf16[128,512], index: 1, kind: input, shape index: {}]
  %s2 = inlined_call_operand.vmem [shape: bf16[256,512], index: 2, kind: input, shape index: {}]
  %s3 = inlined_call_operand.vmem [shape: f32[1,512], index: 3, kind: input, shape index: {}]
  %s4 = inlined_call_operand.vmem [shape: f32[8,2,128], index: 4, kind: output, shape index: {}]
  %s5 = sld [smem:[#allocation0]]
  $region26: #{quantile_lstm_forward.1} parent=0
    _
  %s7 = ssub.s32 1, %s5
  %s8 = scalar_select 0, %s7, %s5
  // Predicated region
  $region2: #{quantile_lstm_forward.1} parent=0 // pred_check
    _
  $region3: #{quantile_lstm_forward.1} parent=0 // pred_check_branch
    %10 = sbr.rel (0) target = $region5
  $region4: #{quantile_lstm_forward.1} parent=0 // pred_region
    _
  $region5: #{quantile_lstm_forward.1} parent=0 // pred_fallthru
    _
  // Predicated region
  $region6: #{quantile_lstm_forward.1} parent=0 // pred_check
    _
  $region7: #{quantile_lstm_forward.1} parent=0 // pred_check_branch
    %12 = sbr.rel (0) target = $region9
  $region8: #{quantile_lstm_forward.1} parent=0 // pred_region
    _
  $region9: #{quantile_lstm_forward.1} parent=0 // pred_fallthru
    _
  // Predicated region
  $region10: #{quantile_lstm_forward.1} parent=0 // pred_check
    _
  $region11: #{quantile_lstm_forward.1} parent=0 // pred_check_branch
    %14 = sbr.rel (0) target = $region13
  $region12: #{quantile_lstm_forward.1} parent=0 // pred_region
    _
  $region13: #{quantile_lstm_forward.1} parent=0 // pred_fallthru
    _
  // Predicated region
  $region14: #{quantile_lstm_forward.1} parent=0 // pred_check
    _
  $region15: #{quantile_lstm_forward.1} parent=0 // pred_check_branch
    %16 = sbr.rel (0) target = $region17
  $region16: #{quantile_lstm_forward.1} parent=0 // pred_region
    _
  $region17: #{quantile_lstm_forward.1} parent=0 // pred_fallthru
    _
  %v18 = vld [vmem:[%s3] sm:$0xf]
  %v20 = vlaneseq
  %v21 = vshrl.u32 %v20, 7
  %v22 = vsub.s32 0, %v21
  %v23 = vrot.slane %v18, %v22
  %v24 = vlaneseq
  %v25 = vshrl.u32 %v24, 7
  %v26 = vsub.s32 1, %v25
  %v27 = vrot.slane %v18, %v26
  %v28 = vlaneseq
  %v29 = vshrl.u32 %v28, 7
  %v30 = vsub.s32 2, %v29
  %v31 = vrot.slane %v18, %v30
  %v32 = vlaneseq
  %v33 = vshrl.u32 %v32, 7
  %v34 = vsub.s32 3, %v33
  %v35 = vrot.slane %v18, %v34
  %v40 = vld [vmem:[%s0] sm:$0xff]
  %v41 = vld [vmem:[%s1] sm:$0xff]
  %v42 = vld [vmem:[%s1 + $0x8] sm:$0xff]
  %v43 = vld [vmem:[%s1 + $0x10] sm:$0xff]
  %v44 = vld [vmem:[%s1 + $0x18] sm:$0xff]
  %v45 = vld [vmem:[%s1 + $0x20] sm:$0xff]
  %v46 = vld [vmem:[%s1 + $0x28] sm:$0xff]
  %v47 = vld [vmem:[%s1 + $0x30] sm:$0xff]
  %v48 = vld [vmem:[%s1 + $0x38] sm:$0xff]
  %v49 = vld [vmem:[%s1 + $0x40] sm:$0xff]
  %v50 = vld [vmem:[%s1 + $0x48] sm:$0xff]
  %v51 = vld [vmem:[%s1 + $0x50] sm:$0xff]
  %v52 = vld [vmem:[%s1 + $0x58] sm:$0xff]
  %v53 = vld [vmem:[%s1 + $0x60] sm:$0xff]
  %v54 = vld [vmem:[%s1 + $0x68] sm:$0xff]
  %v55 = vld [vmem:[%s1 + $0x70] sm:$0xff]
  %v56 = vld [vmem:[%s1 + $0x78] sm:$0xff]
  %v57 = vld [vmem:[%s1 + $0x80] sm:$0xff]
  %v58 = vld [vmem:[%s1 + $0x88] sm:$0xff]
  %v59 = vld [vmem:[%s1 + $0x90] sm:$0xff]
  %v60 = vld [vmem:[%s1 + $0x98] sm:$0xff]
  %v61 = vld [vmem:[%s1 + $0xa0] sm:$0xff]
  %v62 = vld [vmem:[%s1 + $0xa8] sm:$0xff]
  %v63 = vld [vmem:[%s1 + $0xb0] sm:$0xff]
  %v64 = vld [vmem:[%s1 + $0xb8] sm:$0xff]
  %v65 = vld [vmem:[%s1 + $0xc0] sm:$0xff]
  %v66 = vld [vmem:[%s1 + $0xc8] sm:$0xff]
  %v67 = vld [vmem:[%s1 + $0xd0] sm:$0xff]
  %v68 = vld [vmem:[%s1 + $0xd8] sm:$0xff]
  %v69 = vld [vmem:[%s1 + $0xe0] sm:$0xff]
  %v70 = vld [vmem:[%s1 + $0xe8] sm:$0xff]
  %v71 = vld [vmem:[%s1 + $0xf0] sm:$0xff]
  %v72 = vld [vmem:[%s1 + $0xf8] sm:$0xff]
  %v105 = vunpack.c.l.b16 %v41
  %v106 = vunpack.c.h.b16 %v41
  %v107 = vunpack.c.l.b16 %v42
  %v108 = vunpack.c.h.b16 %v42
  %v109 = vunpack.c.l.b16 %v43
  %v110 = vunpack.c.h.b16 %v43
  %v111 = vunpack.c.l.b16 %v44
  %v112 = vunpack.c.h.b16 %v44
  %v113 = vunpack.c.l.b16 %v45
  %v114 = vunpack.c.h.b16 %v45
  %v115 = vunpack.c.l.b16 %v46
  %v116 = vunpack.c.h.b16 %v46
  %v117 = vunpack.c.l.b16 %v47
  %v118 = vunpack.c.h.b16 %v47
  %v119 = vunpack.c.l.b16 %v48
  %v120 = vunpack.c.h.b16 %v48
  %v121 = vunpack.c.l.b16 %v49
  %v122 = vunpack.c.h.b16 %v49
  %v123 = vunpack.c.l.b16 %v50
  %v124 = vunpack.c.h.b16 %v50
  %v125 = vunpack.c.l.b16 %v51
  %v126 = vunpack.c.h.b16 %v51
  %v127 = vunpack.c.l.b16 %v52
  %v128 = vunpack.c.h.b16 %v52
  %v129 = vunpack.c.l.b16 %v53
  %v130 = vunpack.c.h.b16 %v53
  %v131 = vunpack.c.l.b16 %v54
  %v132 = vunpack.c.h.b16 %v54
  %v133 = vunpack.c.l.b16 %v55
  %v134 = vunpack.c.h.b16 %v55
  %v135 = vunpack.c.l.b16 %v56
  %v136 = vunpack.c.h.b16 %v56
  %v137 = vunpack.c.l.b16 %v57
  %v138 = vunpack.c.h.b16 %v57
  %v139 = vunpack.c.l.b16 %v58
  %v140 = vunpack.c.h.b16 %v58
  %v141 = vunpack.c.l.b16 %v59
  %v142 = vunpack.c.h.b16 %v59
  %v143 = vunpack.c.l.b16 %v60
  %v144 = vunpack.c.h.b16 %v60
  %v145 = vunpack.c.l.b16 %v61
  %v146 = vunpack.c.h.b16 %v61
  %v147 = vunpack.c.l.b16 %v62
  %v148 = vunpack.c.h.b16 %v62
  %v149 = vunpack.c.l.b16 %v63
  %v150 = vunpack.c.h.b16 %v63
  %v151 = vunpack.c.l.b16 %v64
  %v152 = vunpack.c.h.b16 %v64
  %v153 = vunpack.c.l.b16 %v65
  %v154 = vunpack.c.h.b16 %v65
  %v155 = vunpack.c.l.b16 %v66
  %v156 = vunpack.c.h.b16 %v66
  %v157 = vunpack.c.l.b16 %v67
  %v158 = vunpack.c.h.b16 %v67
  %v159 = vunpack.c.l.b16 %v68
  %v160 = vunpack.c.h.b16 %v68
  %v161 = vunpack.c.l.b16 %v69
  %v162 = vunpack.c.h.b16 %v69
  %v163 = vunpack.c.l.b16 %v70
  %v164 = vunpack.c.h.b16 %v70
  %v165 = vunpack.c.l.b16 %v71
  %v166 = vunpack.c.h.b16 %v71
  %v167 = vunpack.c.l.b16 %v72
  %v168 = vunpack.c.h.b16 %v72
  %v169 = vpack.c.b16 %v109, %v105
  %v170 = vpack.c.b16 %v110, %v106
  %v171 = vpack.c.b16 %v111, %v107
  %v172 = vpack.c.b16 %v112, %v108
  %v173 = vpack.c.b16 %v117, %v113
  %v174 = vpack.c.b16 %v118, %v114
  %v175 = vpack.c.b16 %v119, %v115
  %v176 = vpack.c.b16 %v120, %v116
  %v177 = vpack.c.b16 %v125, %v121
  %v178 = vpack.c.b16 %v126, %v122
  %v179 = vpack.c.b16 %v127, %v123
  %v180 = vpack.c.b16 %v128, %v124
  %v181 = vpack.c.b16 %v133, %v129
  %v182 = vpack.c.b16 %v134, %v130
  %v183 = vpack.c.b16 %v135, %v131
  %v184 = vpack.c.b16 %v136, %v132
  %v185 = vpack.c.b16 %v141, %v137
  %v186 = vpack.c.b16 %v142, %v138
  %v187 = vpack.c.b16 %v143, %v139
  %v188 = vpack.c.b16 %v144, %v140
  %v189 = vpack.c.b16 %v149, %v145
  %v190 = vpack.c.b16 %v150, %v146
  %v191 = vpack.c.b16 %v151, %v147
  %v192 = vpack.c.b16 %v152, %v148
  %v193 = vpack.c.b16 %v157, %v153
  %v194 = vpack.c.b16 %v158, %v154
  %v195 = vpack.c.b16 %v159, %v155
  %v196 = vpack.c.b16 %v160, %v156
  %v197 = vpack.c.b16 %v165, %v161
  %v198 = vpack.c.b16 %v166, %v162
  %v199 = vpack.c.b16 %v167, %v163
  %v200 = vpack.c.b16 %v168, %v164
  %233 = vmatprep.subr.bf16.mxu0 %v198
  %234 = vmatpush1.bf16.msra.mxu0 %v197
  %235 = vmatprep.subr.bf16.mxu0 %v194
  %236 = vmatpush1.bf16.msra.mxu0 %v193
  %237 = vmatprep.subr.bf16.mxu0 %v190
  %238 = vmatpush1.bf16.msra.mxu0 %v189
  %239 = vmatprep.subr.bf16.mxu0 %v186
  %240 = vmatpush1.bf16.msra.mxu0 %v185
  %241 = vmatprep.subr.bf16.mxu0 %v182
  %242 = vmatpush1.bf16.msra.mxu0 %v181
  %243 = vmatprep.subr.bf16.mxu0 %v178
  %244 = vmatpush1.bf16.msra.mxu0 %v177
  %245 = vmatprep.subr.bf16.mxu0 %v174
  %246 = vmatpush1.bf16.msra.mxu0 %v173
  %247 = vmatprep.subr.bf16.mxu0 %v170
  %248 = vmatpush1.bf16.msra.mxu0 %v169
  %249 = vmatprep.subr.bf16.mxu0 0
  %250 = vmatpush2.bf16.msra.mxu0 0
  %251 = vmatprep.subr.bf16.mxu0 0
  %252 = vmatpush2.bf16.msra.mxu0 0
  %253 = vmatprep.subr.bf16.mxu0 0
  %254 = vmatpush2.bf16.msra.mxu0 0
  %255 = vmatprep.subr.bf16.mxu0 0
  %256 = vmatpush2.bf16.msra.mxu0 0
  %257 = vmatprep.subr.bf16.mxu0 0
  %258 = vmatpush2.bf16.msra.mxu0 0
  %259 = vmatprep.subr.bf16.mxu0 0
  %260 = vmatpush2.bf16.msra.mxu0 0
  %261 = vmatprep.subr.bf16.mxu0 0
  %262 = vmatpush2.bf16.msra.mxu0 0
  %263 = vmatprep.subr.bf16.mxu0 0
  %264 = vmatpush2.bf16.msra.mxu0 0
  %265 = vmatprep.mubr.bf16.mxu0 0
  %266 = vmatmul.mubr.bf16.gmra.mxu0 0
  %v267 = vpop.f32.mrf.mxu0
  %v268 = vadd.f32 0.0, %v267
  %v269 = vpop.f32.mrf.mxu0
  %v270 = vadd.f32 0.0, %v269
  %v271 = vpop.f32.mrf.mxu0
  %v272 = vpop.f32.mrf.mxu0
  %273 = vdwg.mxu0
  %274 = vmatprep.subr.bf16.mxu0 %v200
  %275 = vmatpush1.bf16.msra.mxu0 %v199
  %276 = vmatprep.subr.bf16.mxu0 %v196
  %277 = vmatpush1.bf16.msra.mxu0 %v195
  %278 = vmatprep.subr.bf16.mxu0 %v192
  %279 = vmatpush1.bf16.msra.mxu0 %v191
  %280 = vmatprep.subr.bf16.mxu0 %v188
  %281 = vmatpush1.bf16.msra.mxu0 %v187
  %282 = vmatprep.subr.bf16.mxu0 %v184
  %283 = vmatpush1.bf16.msra.mxu0 %v183
  %284 = vmatprep.subr.bf16.mxu0 %v180
  %285 = vmatpush1.bf16.msra.mxu0 %v179
  %286 = vmatprep.subr.bf16.mxu0 %v176
  %287 = vmatpush1.bf16.msra.mxu0 %v175
  %288 = vmatprep.subr.bf16.mxu0 %v172
  %289 = vmatpush1.bf16.msra.mxu0 %v171
  %290 = vmatprep.subr.bf16.mxu0 0
  %291 = vmatpush2.bf16.msra.mxu0 0
  %292 = vmatprep.subr.bf16.mxu0 0
  %293 = vmatpush2.bf16.msra.mxu0 0
  %294 = vmatprep.subr.bf16.mxu0 0
  %295 = vmatpush2.bf16.msra.mxu0 0
  %296 = vmatprep.subr.bf16.mxu0 0
  %297 = vmatpush2.bf16.msra.mxu0 0
  %298 = vmatprep.subr.bf16.mxu0 0
  %299 = vmatpush2.bf16.msra.mxu0 0
  %300 = vmatprep.subr.bf16.mxu0 0
  %301 = vmatpush2.bf16.msra.mxu0 0
  %302 = vmatprep.subr.bf16.mxu0 0
  %303 = vmatpush2.bf16.msra.mxu0 0
  %304 = vmatprep.subr.bf16.mxu0 0
  %305 = vmatpush2.bf16.msra.mxu0 0
  %306 = vmatprep.mubr.bf16.mxu0 0
  %307 = vmatmul.mubr.bf16.gmra.mxu0 0
  %v308 = vpop.f32.mrf.mxu0
  %v309 = vadd.f32 0.0, %v308
  %v310 = vpop.f32.mrf.mxu0
  %v311 = vadd.f32 0.0, %v310
  %v312 = vpop.f32.mrf.mxu0
  %v313 = vpop.f32.mrf.mxu0
  %314 = vdwg.mxu0
  %v319 = vcombine.low %v268, %v270
  %v320 = vcombine.low %v309, %v311
  %v322 = vunpack.c.l.s4 1983009808
  %v323 = vunpack.c.0.s8 %v322
  %v324 = vlaneseq
  %v325 = vshrl.u32 %v324, 7
  %v326 = vsub.s32 %v323, %v325
  %v327 = vrot.slane %v319, %v326
  %v329 = vunpack.c.l.s4 1983009808
  %v330 = vunpack.c.0.s8 %v329
  %v331 = vlaneseq
  %v332 = vshrl.u32 %v331, 7
  %v333 = vsub.s32 %v330, %v332
  %v334 = vrot.slane %v320, %v333
  %v335 = vcombine.low %v327, %v334
  %v337 = vadd.f32 %v40, %v335
  %v338 = vxor.u32 %v337, 2147483648
  %v339 = vmul.f32 %v338, 1.442695
  %v340 = vpow.pop %v339
  %v341 = vadd.f32 %v340, 1.0
  %v342 = vrcp.pop %v341
  %v343 = vmul.f32 1.0, %v342
  %v345 = vrot.slane %v337, 2
  %v347 = vxor.u32 %v345, 2147483648
  %v348 = vmul.f32 %v347, 1.442695
  %v349 = vpow.pop %v348
  %v350 = vadd.f32 %v349, 1.0
  %v351 = vrcp.pop %v350
  %v352 = vmul.f32 1.0, %v351
  %v353 = vrot.slane %v337, 4
  %v355 = vtanh.pop %v353
  %v356 = vrot.slane %v337, 6
  %v358 = vxor.u32 %v356, 2147483648
  %v359 = vmul.f32 %v358, 1.442695
  %v360 = vpow.pop %v359
  %v361 = vadd.f32 %v360, 1.0
  %v362 = vrcp.pop %v361
  %v363 = vmul.f32 1.0, %v362
  %v364 = vmul.f32 %v352, 0.0
  %v365 = vmul.f32 %v343, %v355
  %v366 = vadd.f32 %v364, %v365
  %v367 = vtanh.pop %v366
  %v368 = vmul.f32 %v363, %v367
  %v369 = vpack.c.bf16 %v368, %v368
  %v370 = vld [vmem:[%s2] sm:$0xff]
  %v371 = vld [vmem:[%s2 + $0x8] sm:$0xff]
  %v372 = vld [vmem:[%s2 + $0x10] sm:$0xff]
  %v373 = vld [vmem:[%s2 + $0x18] sm:$0xff]
  %v374 = vld [vmem:[%s2 + $0x20] sm:$0xff]
  %v375 = vld [vmem:[%s2 + $0x28] sm:$0xff]
  %v376 = vld [vmem:[%s2 + $0x30] sm:$0xff]
  %v377 = vld [vmem:[%s2 + $0x38] sm:$0xff]
  %v378 = vld [vmem:[%s2 + $0x40] sm:$0xff]
  %v379 = vld [vmem:[%s2 + $0x48] sm:$0xff]
  %v380 = vld [vmem:[%s2 + $0x50] sm:$0xff]
  %v381 = vld [vmem:[%s2 + $0x58] sm:$0xff]
  %v382 = vld [vmem:[%s2 + $0x60] sm:$0xff]
  %v383 = vld [vmem:[%s2 + $0x68] sm:$0xff]
  %v384 = vld [vmem:[%s2 + $0x70] sm:$0xff]
  %v385 = vld [vmem:[%s2 + $0x78] sm:$0xff]
  %v386 = vld [vmem:[%s2 + $0x80] sm:$0xff]
  %v387 = vld [vmem:[%s2 + $0x88] sm:$0xff]
  %v388 = vld [vmem:[%s2 + $0x90] sm:$0xff]
  %v389 = vld [vmem:[%s2 + $0x98] sm:$0xff]
  %v390 = vld [vmem:[%s2 + $0xa0] sm:$0xff]
  %v391 = vld [vmem:[%s2 + $0xa8] sm:$0xff]
  %v392 = vld [vmem:[%s2 + $0xb0] sm:$0xff]
  %v393 = vld [vmem:[%s2 + $0xb8] sm:$0xff]
  %v394 = vld [vmem:[%s2 + $0xc0] sm:$0xff]
  %v395 = vld [vmem:[%s2 + $0xc8] sm:$0xff]
  %v396 = vld [vmem:[%s2 + $0xd0] sm:$0xff]
  %v397 = vld [vmem:[%s2 + $0xd8] sm:$0xff]
  %v398 = vld [vmem:[%s2 + $0xe0] sm:$0xff]
  %v399 = vld [vmem:[%s2 + $0xe8] sm:$0xff]
  %v400 = vld [vmem:[%s2 + $0xf0] sm:$0xff]
  %v401 = vld [vmem:[%s2 + $0xf8] sm:$0xff]
  %v402 = vld [vmem:[%s2 + $0x100] sm:$0xff]
  %v403 = vld [vmem:[%s2 + $0x108] sm:$0xff]
  %v404 = vld [vmem:[%s2 + $0x110] sm:$0xff]
  %v405 = vld [vmem:[%s2 + $0x118] sm:$0xff]
  %v406 = vld [vmem:[%s2 + $0x120] sm:$0xff]
  %v407 = vld [vmem:[%s2 + $0x128] sm:$0xff]
  %v408 = vld [vmem:[%s2 + $0x130] sm:$0xff]
  %v409 = vld [vmem:[%s2 + $0x138] sm:$0xff]
  %v410 = vld [vmem:[%s2 + $0x140] sm:$0xff]
  %v411 = vld [vmem:[%s2 + $0x148] sm:$0xff]
  %v412 = vld [vmem:[%s2 + $0x150] sm:$0xff]
  %v413 = vld [vmem:[%s2 + $0x158] sm:$0xff]
  %v414 = vld [vmem:[%s2 + $0x160] sm:$0xff]
  %v415 = vld [vmem:[%s2 + $0x168] sm:$0xff]
  %v416 = vld [vmem:[%s2 + $0x170] sm:$0xff]
  %v417 = vld [vmem:[%s2 + $0x178] sm:$0xff]
  %v418 = vld [vmem:[%s2 + $0x180] sm:$0xff]
  %v419 = vld [vmem:[%s2 + $0x188] sm:$0xff]
  %v420 = vld [vmem:[%s2 + $0x190] sm:$0xff]
  %v421 = vld [vmem:[%s2 + $0x198] sm:$0xff]
  %v422 = vld [vmem:[%s2 + $0x1a0] sm:$0xff]
  %v423 = vld [vmem:[%s2 + $0x1a8] sm:$0xff]
  %v424 = vld [vmem:[%s2 + $0x1b0] sm:$0xff]
  %v425 = vld [vmem:[%s2 + $0x1b8] sm:$0xff]
  %v426 = vld [vmem:[%s2 + $0x1c0] sm:$0xff]
  %v427 = vld [vmem:[%s2 + $0x1c8] sm:$0xff]
  %v428 = vld [vmem:[%s2 + $0x1d0] sm:$0xff]
  %v429 = vld [vmem:[%s2 + $0x1d8] sm:$0xff]
  %v430 = vld [vmem:[%s2 + $0x1e0] sm:$0xff]
  %v431 = vld [vmem:[%s2 + $0x1e8] sm:$0xff]
  %v432 = vld [vmem:[%s2 + $0x1f0] sm:$0xff]
  %v433 = vld [vmem:[%s2 + $0x1f8] sm:$0xff]
  %v498 = vunpack.c.l.b16 %v370
  %v499 = vunpack.c.h.b16 %v370
  %v500 = vunpack.c.l.b16 %v371
  %v501 = vunpack.c.h.b16 %v371
  %v502 = vunpack.c.l.b16 %v372
  %v503 = vunpack.c.h.b16 %v372
  %v504 = vunpack.c.l.b16 %v373
  %v505 = vunpack.c.h.b16 %v373
  %v506 = vunpack.c.l.b16 %v374
  %v507 = vunpack.c.h.b16 %v374
  %v508 = vunpack.c.l.b16 %v375
  %v509 = vunpack.c.h.b16 %v375
  %v510 = vunpack.c.l.b16 %v376
  %v511 = vunpack.c.h.b16 %v376
  %v512 = vunpack.c.l.b16 %v377
  %v513 = vunpack.c.h.b16 %v377
  %v514 = vunpack.c.l.b16 %v378
  %v515 = vunpack.c.h.b16 %v378
  %v516 = vunpack.c.l.b16 %v379
  %v517 = vunpack.c.h.b16 %v379
  %v518 = vunpack.c.l.b16 %v380
  %v519 = vunpack.c.h.b16 %v380
  %v520 = vunpack.c.l.b16 %v381
  %v521 = vunpack.c.h.b16 %v381
  %v522 = vunpack.c.l.b16 %v382
  %v523 = vunpack.c.h.b16 %v382
  %v524 = vunpack.c.l.b16 %v383
  %v525 = vunpack.c.h.b16 %v383
  %v526 = vunpack.c.l.b16 %v384
  %v527 = vunpack.c.h.b16 %v384
  %v528 = vunpack.c.l.b16 %v385
  %v529 = vunpack.c.h.b16 %v385
  %v530 = vunpack.c.l.b16 %v386
  %v531 = vunpack.c.h.b16 %v386
  %v532 = vunpack.c.l.b16 %v387
  %v533 = vunpack.c.h.b16 %v387
  %v534 = vunpack.c.l.b16 %v388
  %v535 = vunpack.c.h.b16 %v388
  %v536 = vunpack.c.l.b16 %v389
  %v537 = vunpack.c.h.b16 %v389
  %v538 = vunpack.c.l.b16 %v390
  %v539 = vunpack.c.h.b16 %v390
  %v540 = vunpack.c.l.b16 %v391
  %v541 = vunpack.c.h.b16 %v391
  %v542 = vunpack.c.l.b16 %v392
  %v543 = vunpack.c.h.b16 %v392
  %v544 = vunpack.c.l.b16 %v393
  %v545 = vunpack.c.h.b16 %v393
  %v546 = vunpack.c.l.b16 %v394
  %v547 = vunpack.c.h.b16 %v394
  %v548 = vunpack.c.l.b16 %v395
  %v549 = vunpack.c.h.b16 %v395
  %v550 = vunpack.c.l.b16 %v396
  %v551 = vunpack.c.h.b16 %v396
  %v552 = vunpack.c.l.b16 %v397
  %v553 = vunpack.c.h.b16 %v397
  %v554 = vunpack.c.l.b16 %v398
  %v555 = vunpack.c.h.b16 %v398
  %v556 = vunpack.c.l.b16 %v399
  %v557 = vunpack.c.h.b16 %v399
  %v558 = vunpack.c.l.b16 %v400
  %v559 = vunpack.c.h.b16 %v400
  %v560 = vunpack.c.l.b16 %v401
  %v561 = vunpack.c.h.b16 %v401
  %v562 = vunpack.c.l.b16 %v402
  %v563 = vunpack.c.h.b16 %v402
  %v564 = vunpack.c.l.b16 %v403
  %v565 = vunpack.c.h.b16 %v403
  %v566 = vunpack.c.l.b16 %v404
  %v567 = vunpack.c.h.b16 %v404
  %v568 = vunpack.c.l.b16 %v405
  %v569 = vunpack.c.h.b16 %v405
  %v570 = vunpack.c.l.b16 %v406
  %v571 = vunpack.c.h.b16 %v406
  %v572 = vunpack.c.l.b16 %v407
  %v573 = vunpack.c.h.b16 %v407
  %v574 = vunpack.c.l.b16 %v408
  %v575 = vunpack.c.h.b16 %v408
  %v576 = vunpack.c.l.b16 %v409
  %v577 = vunpack.c.h.b16 %v409
  %v578 = vunpack.c.l.b16 %v410
  %v579 = vunpack.c.h.b16 %v410
  %v580 = vunpack.c.l.b16 %v411
  %v581 = vunpack.c.h.b16 %v411
  %v582 = vunpack.c.l.b16 %v412
  %v583 = vunpack.c.h.b16 %v412
  %v584 = vunpack.c.l.b16 %v413
  %v585 = vunpack.c.h.b16 %v413
  %v586 = vunpack.c.l.b16 %v414
  %v587 = vunpack.c.h.b16 %v414
  %v588 = vunpack.c.l.b16 %v415
  %v589 = vunpack.c.h.b16 %v415
  %v590 = vunpack.c.l.b16 %v416
  %v591 = vunpack.c.h.b16 %v416
  %v592 = vunpack.c.l.b16 %v417
  %v593 = vunpack.c.h.b16 %v417
  %v594 = vunpack.c.l.b16 %v418
  %v595 = vunpack.c.h.b16 %v418
  %v596 = vunpack.c.l.b16 %v419
  %v597 = vunpack.c.h.b16 %v419
  %v598 = vunpack.c.l.b16 %v420
  %v599 = vunpack.c.h.b16 %v420
  %v600 = vunpack.c.l.b16 %v421
  %v601 = vunpack.c.h.b16 %v421
  %v602 = vunpack.c.l.b16 %v422
  %v603 = vunpack.c.h.b16 %v422
  %v604 = vunpack.c.l.b16 %v423
  %v605 = vunpack.c.h.b16 %v423
  %v606 = vunpack.c.l.b16 %v424
  %v607 = vunpack.c.h.b16 %v424
  %v608 = vunpack.c.l.b16 %v425
  %v609 = vunpack.c.h.b16 %v425
  %v610 = vunpack.c.l.b16 %v426
  %v611 = vunpack.c.h.b16 %v426
  %v612 = vunpack.c.l.b16 %v427
  %v613 = vunpack.c.h.b16 %v427
  %v614 = vunpack.c.l.b16 %v428
  %v615 = vunpack.c.h.b16 %v428
  %v616 = vunpack.c.l.b16 %v429
  %v617 = vunpack.c.h.b16 %v429
  %v618 = vunpack.c.l.b16 %v430
  %v619 = vunpack.c.h.b16 %v430
  %v620 = vunpack.c.l.b16 %v431
  %v621 = vunpack.c.h.b16 %v431
  %v622 = vunpack.c.l.b16 %v432
  %v623 = vunpack.c.h.b16 %v432
  %v624 = vunpack.c.l.b16 %v433
  %v625 = vunpack.c.h.b16 %v433
  %v626 = vpack.c.b16 %v502, %v498
  %v627 = vpack.c.b16 %v503, %v499
  %v628 = vpack.c.b16 %v504, %v500
  %v629 = vpack.c.b16 %v505, %v501
  %v630 = vpack.c.b16 %v510, %v506
  %v631 = vpack.c.b16 %v511, %v507
  %v632 = vpack.c.b16 %v512, %v508
  %v633 = vpack.c.b16 %v513, %v509
  %v634 = vpack.c.b16 %v518, %v514
  %v635 = vpack.c.b16 %v519, %v515
  %v636 = vpack.c.b16 %v520, %v516
  %v637 = vpack.c.b16 %v521, %v517
  %v638 = vpack.c.b16 %v526, %v522
  %v639 = vpack.c.b16 %v527, %v523
  %v640 = vpack.c.b16 %v528, %v524
  %v641 = vpack.c.b16 %v529, %v525
  %v642 = vpack.c.b16 %v534, %v530
  %v643 = vpack.c.b16 %v535, %v531
  %v644 = vpack.c.b16 %v536, %v532
  %v645 = vpack.c.b16 %v537, %v533
  %v646 = vpack.c.b16 %v542, %v538
  %v647 = vpack.c.b16 %v543, %v539
  %v648 = vpack.c.b16 %v544, %v540
  %v649 = vpack.c.b16 %v545, %v541
  %v650 = vpack.c.b16 %v550, %v546
  %v651 = vpack.c.b16 %v551, %v547
  %v652 = vpack.c.b16 %v552, %v548
  %v653 = vpack.c.b16 %v553, %v549
  %v654 = vpack.c.b16 %v558, %v554
  %v655 = vpack.c.b16 %v559, %v555
  %v656 = vpack.c.b16 %v560, %v556
  %v657 = vpack.c.b16 %v561, %v557
  %v658 = vpack.c.b16 %v566, %v562
  %v659 = vpack.c.b16 %v567, %v563
  %v660 = vpack.c.b16 %v568, %v564
  %v661 = vpack.c.b16 %v569, %v565
  %v662 = vpack.c.b16 %v574, %v570
  %v663 = vpack.c.b16 %v575, %v571
  %v664 = vpack.c.b16 %v576, %v572
  %v665 = vpack.c.b16 %v577, %v573
  %v666 = vpack.c.b16 %v582, %v578
  %v667 = vpack.c.b16 %v583, %v579
  %v668 = vpack.c.b16 %v584, %v580
  %v669 = vpack.c.b16 %v585, %v581
  %v670 = vpack.c.b16 %v590, %v586
  %v671 = vpack.c.b16 %v591, %v587
  %v672 = vpack.c.b16 %v592, %v588
  %v673 = vpack.c.b16 %v593, %v589
  %v674 = vpack.c.b16 %v598, %v594
  %v675 = vpack.c.b16 %v599, %v595
  %v676 = vpack.c.b16 %v600, %v596
  %v677 = vpack.c.b16 %v601, %v597
  %v678 = vpack.c.b16 %v606, %v602
  %v679 = vpack.c.b16 %v607, %v603
  %v680 = vpack.c.b16 %v608, %v604
  %v681 = vpack.c.b16 %v609, %v605
  %v682 = vpack.c.b16 %v614, %v610
  %v683 = vpack.c.b16 %v615, %v611
  %v684 = vpack.c.b16 %v616, %v612
  %v685 = vpack.c.b16 %v617, %v613
  %v686 = vpack.c.b16 %v622, %v618
  %v687 = vpack.c.b16 %v623, %v619
  %v688 = vpack.c.b16 %v624, %v620
  %v689 = vpack.c.b16 %v625, %v621
  %754 = vmatprep.subr.bf16.mxu0 %v655
  %755 = vmatpush1.bf16.msra.mxu0 %v654
  %756 = vmatprep.subr.bf16.mxu0 %v651
  %757 = vmatpush1.bf16.msra.mxu0 %v650
  %758 = vmatprep.subr.bf16.mxu0 %v647
  %759 = vmatpush1.bf16.msra.mxu0 %v646
  %760 = vmatprep.subr.bf16.mxu0 %v643
  %761 = vmatpush1.bf16.msra.mxu0 %v642
  %762 = vmatprep.subr.bf16.mxu0 %v639
  %763 = vmatpush1.bf16.msra.mxu0 %v638
  %764 = vmatprep.subr.bf16.mxu0 %v635
  %765 = vmatpush1.bf16.msra.mxu0 %v634
  %766 = vmatprep.subr.bf16.mxu0 %v631
  %767 = vmatpush1.bf16.msra.mxu0 %v630
  %768 = vmatprep.subr.bf16.mxu0 %v627
  %769 = vmatpush1.bf16.msra.mxu0 %v626
  %770 = vmatprep.subr.bf16.mxu0 %v687
  %771 = vmatpush2.bf16.msra.mxu0 %v686
  %772 = vmatprep.subr.bf16.mxu0 %v683
  %773 = vmatpush2.bf16.msra.mxu0 %v682
  %774 = vmatprep.subr.bf16.mxu0 %v679
  %775 = vmatpush2.bf16.msra.mxu0 %v678
  %776 = vmatprep.subr.bf16.mxu0 %v675
  %777 = vmatpush2.bf16.msra.mxu0 %v674
  %778 = vmatprep.subr.bf16.mxu0 %v671
  %779 = vmatpush2.bf16.msra.mxu0 %v670
  %780 = vmatprep.subr.bf16.mxu0 %v667
  %781 = vmatpush2.bf16.msra.mxu0 %v666
  %782 = vmatprep.subr.bf16.mxu0 %v663
  %783 = vmatpush2.bf16.msra.mxu0 %v662
  %784 = vmatprep.subr.bf16.mxu0 %v659
  %785 = vmatpush2.bf16.msra.mxu0 %v658
  %786 = vmatprep.mubr.bf16.mxu0 0
  %787 = vmatmul.mubr.bf16.gmra.mxu0 %v369
  %v788 = vpop.f32.mrf.mxu0
  %v789 = vadd.f32 %v23, %v788
  %v790 = vpop.f32.mrf.mxu0
  %v791 = vadd.f32 %v27, %v790
  %v792 = vpop.f32.mrf.mxu0
  %v793 = vpop.f32.mrf.mxu0
  %794 = vdwg.mxu0
  %795 = vmatprep.subr.bf16.mxu0 %v657
  %796 = vmatpush1.bf16.msra.mxu0 %v656
  %797 = vmatprep.subr.bf16.mxu0 %v653
  %798 = vmatpush1.bf16.msra.mxu0 %v652
  %799 = vmatprep.subr.bf16.mxu0 %v649
  %800 = vmatpush1.bf16.msra.mxu0 %v648
  %801 = vmatprep.subr.bf16.mxu0 %v645
  %802 = vmatpush1.bf16.msra.mxu0 %v644
  %803 = vmatprep.subr.bf16.mxu0 %v641
  %804 = vmatpush1.bf16.msra.mxu0 %v640
  %805 = vmatprep.subr.bf16.mxu0 %v637
  %806 = vmatpush1.bf16.msra.mxu0 %v636
  %807 = vmatprep.subr.bf16.mxu0 %v633
  %808 = vmatpush1.bf16.msra.mxu0 %v632
  %809 = vmatprep.subr.bf16.mxu0 %v629
  %810 = vmatpush1.bf16.msra.mxu0 %v628
  %811 = vmatprep.subr.bf16.mxu0 %v689
  %812 = vmatpush2.bf16.msra.mxu0 %v688
  %813 = vmatprep.subr.bf16.mxu0 %v685
  %814 = vmatpush2.bf16.msra.mxu0 %v684
  %815 = vmatprep.subr.bf16.mxu0 %v681
  %816 = vmatpush2.bf16.msra.mxu0 %v680
  %817 = vmatprep.subr.bf16.mxu0 %v677
  %818 = vmatpush2.bf16.msra.mxu0 %v676
  %819 = vmatprep.subr.bf16.mxu0 %v673
  %820 = vmatpush2.bf16.msra.mxu0 %v672
  %821 = vmatprep.subr.bf16.mxu0 %v669
  %822 = vmatpush2.bf16.msra.mxu0 %v668
  %823 = vmatprep.subr.bf16.mxu0 %v665
  %824 = vmatpush2.bf16.msra.mxu0 %v664
  %825 = vmatprep.subr.bf16.mxu0 %v661
  %826 = vmatpush2.bf16.msra.mxu0 %v660
  %827 = vmatprep.mubr.bf16.mxu0 0
  %828 = vmatmul.mubr.bf16.gmra.mxu0 %v369
  %v829 = vpop.f32.mrf.mxu0
  %v830 = vadd.f32 %v31, %v829
  %v831 = vpop.f32.mrf.mxu0
  %v832 = vadd.f32 %v35, %v831
  %v833 = vpop.f32.mrf.mxu0
  %v834 = vpop.f32.mrf.mxu0
  %835 = vdwg.mxu0
  %v836 = vxor.u32 %v789, 2147483648
  %v837 = vmul.f32 %v836, 1.442695
  %v838 = vpow.pop %v837
  %v839 = vadd.f32 %v838, 1.0
  %v840 = vrcp.pop %v839
  %v841 = vmul.f32 1.0, %v840
  %v842 = vxor.u32 %v791, 2147483648
  %v843 = vmul.f32 %v842, 1.442695
  %v844 = vpow.pop %v843
  %v845 = vadd.f32 %v844, 1.0
  %v846 = vrcp.pop %v845
  %v847 = vmul.f32 1.0, %v846
  %v848 = vtanh.pop %v830
  %v849 = vxor.u32 %v832, 2147483648
  %v850 = vmul.f32 %v849, 1.442695
  %v851 = vpow.pop %v850
  %v852 = vadd.f32 %v851, 1.0
  %v853 = vrcp.pop %v852
  %v854 = vmul.f32 1.0, %v853
  %v855 = vmul.f32 %v847, 0.0
  %v856 = vmul.f32 %v841, %v848
  %v857 = vadd.f32 %v855, %v856
  %v858 = vtanh.pop %v857
  %v859 = vmul.f32 %v854, %v858
  %860 = vst [vmem:[%s4] sm:$0x3] %v859
  %s861 = scalar_lea.vmem %s0, 8
  %v862 = vld [vmem:[%s861] sm:$0xff]
  %v863 = vld [vmem:[%s1] sm:$0xff]
  %v864 = vld [vmem:[%s1 + $0x8] sm:$0xff]
  %v865 = vld [vmem:[%s1 + $0x10] sm:$0xff]
  %v866 = vld [vmem:[%s1 + $0x18] sm:$0xff]
  %v867 = vld [vmem:[%s1 + $0x20] sm:$0xff]
  %v868 = vld [vmem:[%s1 + $0x28] sm:$0xff]
  %v869 = vld [vmem:[%s1 + $0x30] sm:$0xff]
  %v870 = vld [vmem:[%s1 + $0x38] sm:$0xff]
  %v871 = vld [vmem:[%s1 + $0x40] sm:$0xff]
  %v872 = vld [vmem:[%s1 + $0x48] sm:$0xff]
  %v873 = vld [vmem:[%s1 + $0x50] sm:$0xff]
  %v874 = vld [vmem:[%s1 + $0x58] sm:$0xff]
  %v875 = vld [vmem:[%s1 + $0x60] sm:$0xff]
  %v876 = vld [vmem:[%s1 + $0x68] sm:$0xff]
  %v877 = vld [vmem:[%s1 + $0x70] sm:$0xff]
  %v878 = vld [vmem:[%s1 + $0x78] sm:$0xff]
  %v879 = vld [vmem:[%s1 + $0x80] sm:$0xff]
  %v880 = vld [vmem:[%s1 + $0x88] sm:$0xff]
  %v881 = vld [vmem:[%s1 + $0x90] sm:$0xff]
  %v882 = vld [vmem:[%s1 + $0x98] sm:$0xff]
  %v883 = vld [vmem:[%s1 + $0xa0] sm:$0xff]
  %v884 = vld [vmem:[%s1 + $0xa8] sm:$0xff]
  %v885 = vld [vmem:[%s1 + $0xb0] sm:$0xff]
  %v886 = vld [vmem:[%s1 + $0xb8] sm:$0xff]
  %v887 = vld [vmem:[%s1 + $0xc0] sm:$0xff]
  %v888 = vld [vmem:[%s1 + $0xc8] sm:$0xff]
  %v889 = vld [vmem:[%s1 + $0xd0] sm:$0xff]
  %v890 = vld [vmem:[%s1 + $0xd8] sm:$0xff]
  %v891 = vld [vmem:[%s1 + $0xe0] sm:$0xff]
  %v892 = vld [vmem:[%s1 + $0xe8] sm:$0xff]
  %v893 = vld [vmem:[%s1 + $0xf0] sm:$0xff]
  %v894 = vld [vmem:[%s1 + $0xf8] sm:$0xff]
  %v927 = vunpack.c.l.b16 %v863
  %v928 = vunpack.c.h.b16 %v863
  %v929 = vunpack.c.l.b16 %v864
  %v930 = vunpack.c.h.b16 %v864
  %v931 = vunpack.c.l.b16 %v865
  %v932 = vunpack.c.h.b16 %v865
  %v933 = vunpack.c.l.b16 %v866
  %v934 = vunpack.c.h.b16 %v866
  %v935 = vunpack.c.l.b16 %v867
  %v936 = vunpack.c.h.b16 %v867
  %v937 = vunpack.c.l.b16 %v868
  %v938 = vunpack.c.h.b16 %v868
  %v939 = vunpack.c.l.b16 %v869
  %v940 = vunpack.c.h.b16 %v869
  %v941 = vunpack.c.l.b16 %v870
  %v942 = vunpack.c.h.b16 %v870
  %v943 = vunpack.c.l.b16 %v871
  %v944 = vunpack.c.h.b16 %v871
  %v945 = vunpack.c.l.b16 %v872
  %v946 = vunpack.c.h.b16 %v872
  %v947 = vunpack.c.l.b16 %v873
  %v948 = vunpack.c.h.b16 %v873
  %v949 = vunpack.c.l.b16 %v874
  %v950 = vunpack.c.h.b16 %v874
  %v951 = vunpack.c.l.b16 %v875
  %v952 = vunpack.c.h.b16 %v875
  %v953 = vunpack.c.l.b16 %v876
  %v954 = vunpack.c.h.b16 %v876
  %v955 = vunpack.c.l.b16 %v877
  %v956 = vunpack.c.h.b16 %v877
  %v957 = vunpack.c.l.b16 %v878
  %v958 = vunpack.c.h.b16 %v878
  %v959 = vunpack.c.l.b16 %v879
  %v960 = vunpack.c.h.b16 %v879
  %v961 = vunpack.c.l.b16 %v880
  %v962 = vunpack.c.h.b16 %v880
  %v963 = vunpack.c.l.b16 %v881
  %v964 = vunpack.c.h.b16 %v881
  %v965 = vunpack.c.l.b16 %v882
  %v966 = vunpack.c.h.b16 %v882
  %v967 = vunpack.c.l.b16 %v883
  %v968 = vunpack.c.h.b16 %v883
  %v969 = vunpack.c.l.b16 %v884
  %v970 = vunpack.c.h.b16 %v884
  %v971 = vunpack.c.l.b16 %v885
  %v972 = vunpack.c.h.b16 %v885
  %v973 = vunpack.c.l.b16 %v886
  %v974 = vunpack.c.h.b16 %v886
  %v975 = vunpack.c.l.b16 %v887
  %v976 = vunpack.c.h.b16 %v887
  %v977 = vunpack.c.l.b16 %v888
  %v978 = vunpack.c.h.b16 %v888
  %v979 = vunpack.c.l.b16 %v889
  %v980 = vunpack.c.h.b16 %v889
  %v981 = vunpack.c.l.b16 %v890
  %v982 = vunpack.c.h.b16 %v890
  %v983 = vunpack.c.l.b16 %v891
  %v984 = vunpack.c.h.b16 %v891
  %v985 = vunpack.c.l.b16 %v892
  %v986 = vunpack.c.h.b16 %v892
  %v987 = vunpack.c.l.b16 %v893
  %v988 = vunpack.c.h.b16 %v893
  %v989 = vunpack.c.l.b16 %v894
  %v990 = vunpack.c.h.b16 %v894
  %v991 = vpack.c.b16 %v931, %v927
  %v992 = vpack.c.b16 %v932, %v928
  %v993 = vpack.c.b16 %v933, %v929
  %v994 = vpack.c.b16 %v934, %v930
  %v995 = vpack.c.b16 %v939, %v935
  %v996 = vpack.c.b16 %v940, %v936
  %v997 = vpack.c.b16 %v941, %v937
  %v998 = vpack.c.b16 %v942, %v938
  %v999 = vpack.c.b16 %v947, %v943
  %v1000 = vpack.c.b16 %v948, %v944
  %v1001 = vpack.c.b16 %v949, %v945
  %v1002 = vpack.c.b16 %v950, %v946
  %v1003 = vpack.c.b16 %v955, %v951
  %v1004 = vpack.c.b16 %v956, %v952
  %v1005 = vpack.c.b16 %v957, %v953
  %v1006 = vpack.c.b16 %v958, %v954
  %v1007 = vpack.c.b16 %v963, %v959
  %v1008 = vpack.c.b16 %v964, %v960
  %v1009 = vpack.c.b16 %v965, %v961
  %v1010 = vpack.c.b16 %v966, %v962
  %v1011 = vpack.c.b16 %v971, %v967
  %v1012 = vpack.c.b16 %v972, %v968
  %v1013 = vpack.c.b16 %v973, %v969
  %v1014 = vpack.c.b16 %v974, %v970
  %v1015 = vpack.c.b16 %v979, %v975
  %v1016 = vpack.c.b16 %v980, %v976
  %v1017 = vpack.c.b16 %v981, %v977
  %v1018 = vpack.c.b16 %v982, %v978
  %v1019 = vpack.c.b16 %v987, %v983
  %v1020 = vpack.c.b16 %v988, %v984
  %v1021 = vpack.c.b16 %v989, %v985
  %v1022 = vpack.c.b16 %v990, %v986
  %1055 = vmatprep.subr.bf16.mxu0 %v1020
  %1056 = vmatpush1.bf16.msra.mxu0 %v1019
  %1057 = vmatprep.subr.bf16.mxu0 %v1016
  %1058 = vmatpush1.bf16.msra.mxu0 %v1015
  %1059 = vmatprep.subr.bf16.mxu0 %v1012
  %1060 = vmatpush1.bf16.msra.mxu0 %v1011
  %1061 = vmatprep.subr.bf16.mxu0 %v1008
  %1062 = vmatpush1.bf16.msra.mxu0 %v1007
  %1063 = vmatprep.subr.bf16.mxu0 %v1004
  %1064 = vmatpush1.bf16.msra.mxu0 %v1003
  %1065 = vmatprep.subr.bf16.mxu0 %v1000
  %1066 = vmatpush1.bf16.msra.mxu0 %v999
  %1067 = vmatprep.subr.bf16.mxu0 %v996
  %1068 = vmatpush1.bf16.msra.mxu0 %v995
  %1069 = vmatprep.subr.bf16.mxu0 %v992
  %1070 = vmatpush1.bf16.msra.mxu0 %v991
  %1071 = vmatprep.subr.bf16.mxu0 0
  %1072 = vmatpush2.bf16.msra.mxu0 0
  %1073 = vmatprep.subr.bf16.mxu0 0
  %1074 = vmatpush2.bf16.msra.mxu0 0
  %1075 = vmatprep.subr.bf16.mxu0 0
  %1076 = vmatpush2.bf16.msra.mxu0 0
  %1077 = vmatprep.subr.bf16.mxu0 0
  %1078 = vmatpush2.bf16.msra.mxu0 0
  %1079 = vmatprep.subr.bf16.mxu0 0
  %1080 = vmatpush2.bf16.msra.mxu0 0
  %1081 = vmatprep.subr.bf16.mxu0 0
  %1082 = vmatpush2.bf16.msra.mxu0 0
  %1083 = vmatprep.subr.bf16.mxu0 0
  %1084 = vmatpush2.bf16.msra.mxu0 0
  %1085 = vmatprep.subr.bf16.mxu0 0
  %1086 = vmatpush2.bf16.msra.mxu0 0
  %1087 = vmatprep.mubr.bf16.mxu0 0
  %1088 = vmatmul.mubr.bf16.gmra.mxu0 %v369
  %v1089 = vpop.f32.mrf.mxu0
  %v1090 = vadd.f32 0.0, %v1089
  %v1091 = vpop.f32.mrf.mxu0
  %v1092 = vadd.f32 0.0, %v1091
  %v1093 = vpop.f32.mrf.mxu0
  %v1094 = vpop.f32.mrf.mxu0
  %1095 = vdwg.mxu0
  %1096 = vmatprep.subr.bf16.mxu0 %v1022
  %1097 = vmatpush1.bf16.msra.mxu0 %v1021
  %1098 = vmatprep.subr.bf16.mxu0 %v1018
  %1099 = vmatpush1.bf16.msra.mxu0 %v1017
  %1100 = vmatprep.subr.bf16.mxu0 %v1014
  %1101 = vmatpush1.bf16.msra.mxu0 %v1013
  %1102 = vmatprep.subr.bf16.mxu0 %v1010
  %1103 = vmatpush1.bf16.msra.mxu0 %v1009
  %1104 = vmatprep.subr.bf16.mxu0 %v1006
  %1105 = vmatpush1.bf16.msra.mxu0 %v1005
  %1106 = vmatprep.subr.bf16.mxu0 %v1002
  %1107 = vmatpush1.bf16.msra.mxu0 %v1001
  %1108 = vmatprep.subr.bf16.mxu0 %v998
  %1109 = vmatpush1.bf16.msra.mxu0 %v997
  %1110 = vmatprep.subr.bf16.mxu0 %v994
  %1111 = vmatpush1.bf16.msra.mxu0 %v993
  %1112 = vmatprep.subr.bf16.mxu0 0
  %1113 = vmatpush2.bf16.msra.mxu0 0
  %1114 = vmatprep.subr.bf16.mxu0 0
  %1115 = vmatpush2.bf16.msra.mxu0 0
  %1116 = vmatprep.subr.bf16.mxu0 0
  %1117 = vmatpush2.bf16.msra.mxu0 0
  %1118 = vmatprep.subr.bf16.mxu0 0
  %1119 = vmatpush2.bf16.msra.mxu0 0
  %1120 = vmatprep.subr.bf16.mxu0 0
  %1121 = vmatpush2.bf16.msra.mxu0 0
  %1122 = vmatprep.subr.bf16.mxu0 0
  %1123 = vmatpush2.bf16.msra.mxu0 0
  %1124 = vmatprep.subr.bf16.mxu0 0
  %1125 = vmatpush2.bf16.msra.mxu0 0
  %1126 = vmatprep.subr.bf16.mxu0 0
  %1127 = vmatpush2.bf16.msra.mxu0 0
  %1128 = vmatprep.mubr.bf16.mxu0 0
  %1129 = vmatmul.mubr.bf16.gmra.mxu0 %v369
  %v1130 = vpop.f32.mrf.mxu0
  %v1131 = vadd.f32 0.0, %v1130
  %v1132 = vpop.f32.mrf.mxu0
  %v1133 = vadd.f32 0.0, %v1132
  %v1134 = vpop.f32.mrf.mxu0
  %v1135 = vpop.f32.mrf.mxu0
  %1136 = vdwg.mxu0
  %v1141 = vcombine.low %v1090, %v1092
  %v1142 = vcombine.low %v1131, %v1133
  %v1144 = vunpack.c.l.s4 1983009808
  %v1145 = vunpack.c.0.s8 %v1144
  %v1146 = vlaneseq
  %v1147 = vshrl.u32 %v1146, 7
  %v1148 = vsub.s32 %v1145, %v1147
  %v1149 = vrot.slane %v1141, %v1148
  %v1151 = vunpack.c.l.s4 1983009808
  %v1152 = vunpack.c.0.s8 %v1151
  %v1153 = vlaneseq
  %v1154 = vshrl.u32 %v1153, 7
  %v1155 = vsub.s32 %v1152, %v1154
  %v1156 = vrot.slane %v1142, %v1155
  %v1157 = vcombine.low %v1149, %v1156
  %v1159 = vadd.f32 %v862, %v1157
  %v1160 = vxor.u32 %v1159, 2147483648
  %v1161 = vmul.f32 %v1160, 1.442695
  %v1162 = vpow.pop %v1161
  %v1163 = vadd.f32 %v1162, 1.0
  %v1164 = vrcp.pop %v1163
  %v1165 = vmul.f32 1.0, %v1164
  %v1167 = vrot.slane %v1159, 2
  %v1169 = vxor.u32 %v1167, 2147483648
  %v1170 = vmul.f32 %v1169, 1.442695
  %v1171 = vpow.pop %v1170
  %v1172 = vadd.f32 %v1171, 1.0
  %v1173 = vrcp.pop %v1172
  %v1174 = vmul.f32 1.0, %v1173
  %v1175 = vrot.slane %v1159, 4
  %v1177 = vtanh.pop %v1175
  %v1178 = vrot.slane %v1159, 6
  %v1180 = vxor.u32 %v1178, 2147483648
  %v1181 = vmul.f32 %v1180, 1.442695
  %v1182 = vpow.pop %v1181
  %v1183 = vadd.f32 %v1182, 1.0
  %v1184 = vrcp.pop %v1183
  %v1185 = vmul.f32 1.0, %v1184
  %v1186 = vmul.f32 %v1174, %v366
  %v1187 = vmul.f32 %v1165, %v1177
  %v1188 = vadd.f32 %v1186, %v1187
  %v1189 = vtanh.pop %v1188
  %v1190 = vmul.f32 %v1185, %v1189
  %v1191 = vpack.c.bf16 %v1190, %v1190
  %v1192 = vpack.c.bf16 %v859, %v859
  %v1193 = vld [vmem:[%s2] sm:$0xff]
  %v1194 = vld [vmem:[%s2 + $0x8] sm:$0xff]
  %v1195 = vld [vmem:[%s2 + $0x10] sm:$0xff]
  %v1196 = vld [vmem:[%s2 + $0x18] sm:$0xff]
  %v1197 = vld [vmem:[%s2 + $0x20] sm:$0xff]
  %v1198 = vld [vmem:[%s2 + $0x28] sm:$0xff]
  %v1199 = vld [vmem:[%s2 + $0x30] sm:$0xff]
  %v1200 = vld [vmem:[%s2 + $0x38] sm:$0xff]
  %v1201 = vld [vmem:[%s2 + $0x40] sm:$0xff]
  %v1202 = vld [vmem:[%s2 + $0x48] sm:$0xff]
  %v1203 = vld [vmem:[%s2 + $0x50] sm:$0xff]
  %v1204 = vld [vmem:[%s2 + $0x58] sm:$0xff]
  %v1205 = vld [vmem:[%s2 + $0x60] sm:$0xff]
  %v1206 = vld [vmem:[%s2 + $0x68] sm:$0xff]
  %v1207 = vld [vmem:[%s2 + $0x70] sm:$0xff]
  %v1208 = vld [vmem:[%s2 + $0x78] sm:$0xff]
  %v1209 = vld [vmem:[%s2 + $0x80] sm:$0xff]
  %v1210 = vld [vmem:[%s2 + $0x88] sm:$0xff]
  %v1211 = vld [vmem:[%s2 + $0x90] sm:$0xff]
  %v1212 = vld [vmem:[%s2 + $0x98] sm:$0xff]
  %v1213 = vld [vmem:[%s2 + $0xa0] sm:$0xff]
  %v1214 = vld [vmem:[%s2 + $0xa8] sm:$0xff]
  %v1215 = vld [vmem:[%s2 + $0xb0] sm:$0xff]
  %v1216 = vld [vmem:[%s2 + $0xb8] sm:$0xff]
  %v1217 = vld [vmem:[%s2 + $0xc0] sm:$0xff]
  %v1218 = vld [vmem:[%s2 + $0xc8] sm:$0xff]
  %v1219 = vld [vmem:[%s2 + $0xd0] sm:$0xff]
  %v1220 = vld [vmem:[%s2 + $0xd8] sm:$0xff]
  %v1221 = vld [vmem:[%s2 + $0xe0] sm:$0xff]
  %v1222 = vld [vmem:[%s2 + $0xe8] sm:$0xff]
  %v1223 = vld [vmem:[%s2 + $0xf0] sm:$0xff]
  %v1224 = vld [vmem:[%s2 + $0xf8] sm:$0xff]
  %v1225 = vld [vmem:[%s2 + $0x100] sm:$0xff]
  %v1226 = vld [vmem:[%s2 + $0x108] sm:$0xff]
  %v1227 = vld [vmem:[%s2 + $0x110] sm:$0xff]
  %v1228 = vld [vmem:[%s2 + $0x118] sm:$0xff]
  %v1229 = vld [vmem:[%s2 + $0x120] sm:$0xff]
  %v1230 = vld [vmem:[%s2 + $0x128] sm:$0xff]
  %v1231 = vld [vmem:[%s2 + $0x130] sm:$0xff]
  %v1232 = vld [vmem:[%s2 + $0x138] sm:$0xff]
  %v1233 = vld [vmem:[%s2 + $0x140] sm:$0xff]
  %v1234 = vld [vmem:[%s2 + $0x148] sm:$0xff]
  %v1235 = vld [vmem:[%s2 + $0x150] sm:$0xff]
  %v1236 = vld [vmem:[%s2 + $0x158] sm:$0xff]
  %v1237 = vld [vmem:[%s2 + $0x160] sm:$0xff]
  %v1238 = vld [vmem:[%s2 + $0x168] sm:$0xff]
  %v1239 = vld [vmem:[%s2 + $0x170] sm:$0xff]
  %v1240 = vld [vmem:[%s2 + $0x178] sm:$0xff]
  %v1241 = vld [vmem:[%s2 + $0x180] sm:$0xff]
  %v1242 = vld [vmem:[%s2 + $0x188] sm:$0xff]
  %v1243 = vld [vmem:[%s2 + $0x190] sm:$0xff]
  %v1244 = vld [vmem:[%s2 + $0x198] sm:$0xff]
  %v1245 = vld [vmem:[%s2 + $0x1a0] sm:$0xff]
  %v1246 = vld [vmem:[%s2 + $0x1a8] sm:$0xff]
  %v1247 = vld [vmem:[%s2 + $0x1b0] sm:$0xff]
  %v1248 = vld [vmem:[%s2 + $0x1b8] sm:$0xff]
  %v1249 = vld [vmem:[%s2 + $0x1c0] sm:$0xff]
  %v1250 = vld [vmem:[%s2 + $0x1c8] sm:$0xff]
  %v1251 = vld [vmem:[%s2 + $0x1d0] sm:$0xff]
  %v1252 = vld [vmem:[%s2 + $0x1d8] sm:$0xff]
  %v1253 = vld [vmem:[%s2 + $0x1e0] sm:$0xff]
  %v1254 = vld [vmem:[%s2 + $0x1e8] sm:$0xff]
  %v1255 = vld [vmem:[%s2 + $0x1f0] sm:$0xff]
  %v1256 = vld [vmem:[%s2 + $0x1f8] sm:$0xff]
  %v1321 = vunpack.c.l.b16 %v1193
  %v1322 = vunpack.c.h.b16 %v1193
  %v1323 = vunpack.c.l.b16 %v1194
  %v1324 = vunpack.c.h.b16 %v1194
  %v1325 = vunpack.c.l.b16 %v1195
  %v1326 = vunpack.c.h.b16 %v1195
  %v1327 = vunpack.c.l.b16 %v1196
  %v1328 = vunpack.c.h.b16 %v1196
  %v1329 = vunpack.c.l.b16 %v1197
  %v1330 = vunpack.c.h.b16 %v1197
  %v1331 = vunpack.c.l.b16 %v1198
  %v1332 = vunpack.c.h.b16 %v1198
  %v1333 = vunpack.c.l.b16 %v1199
  %v1334 = vunpack.c.h.b16 %v1199
  %v1335 = vunpack.c.l.b16 %v1200
  %v1336 = vunpack.c.h.b16 %v1200
  %v1337 = vunpack.c.l.b16 %v1201
  %v1338 = vunpack.c.h.b16 %v1201
  %v1339 = vunpack.c.l.b16 %v1202
  %v1340 = vunpack.c.h.b16 %v1202
  %v1341 = vunpack.c.l.b16 %v1203
  %v1342 = vunpack.c.h.b16 %v1203
  %v1343 = vunpack.c.l.b16 %v1204
  %v1344 = vunpack.c.h.b16 %v1204
  %v1345 = vunpack.c.l.b16 %v1205
  %v1346 = vunpack.c.h.b16 %v1205
  %v1347 = vunpack.c.l.b16 %v1206
  %v1348 = vunpack.c.h.b16 %v1206
  %v1349 = vunpack.c.l.b16 %v1207
  %v1350 = vunpack.c.h.b16 %v1207
  %v1351 = vunpack.c.l.b16 %v1208
  %v1352 = vunpack.c.h.b16 %v1208
  %v1353 = vunpack.c.l.b16 %v1209
  %v1354 = vunpack.c.h.b16 %v1209
  %v1355 = vunpack.c.l.b16 %v1210
  %v1356 = vunpack.c.h.b16 %v1210
  %v1357 = vunpack.c.l.b16 %v1211
  %v1358 = vunpack.c.h.b16 %v1211
  %v1359 = vunpack.c.l.b16 %v1212
  %v1360 = vunpack.c.h.b16 %v1212
  %v1361 = vunpack.c.l.b16 %v1213
  %v1362 = vunpack.c.h.b16 %v1213
  %v1363 = vunpack.c.l.b16 %v1214
  %v1364 = vunpack.c.h.b16 %v1214
  %v1365 = vunpack.c.l.b16 %v1215
  %v1366 = vunpack.c.h.b16 %v1215
  %v1367 = vunpack.c.l.b16 %v1216
  %v1368 = vunpack.c.h.b16 %v1216
  %v1369 = vunpack.c.l.b16 %v1217
  %v1370 = vunpack.c.h.b16 %v1217
  %v1371 = vunpack.c.l.b16 %v1218
  %v1372 = vunpack.c.h.b16 %v1218
  %v1373 = vunpack.c.l.b16 %v1219
  %v1374 = vunpack.c.h.b16 %v1219
  %v1375 = vunpack.c.l.b16 %v1220
  %v1376 = vunpack.c.h.b16 %v1220
  %v1377 = vunpack.c.l.b16 %v1221
  %v1378 = vunpack.c.h.b16 %v1221
  %v1379 = vunpack.c.l.b16 %v1222
  %v1380 = vunpack.c.h.b16 %v1222
  %v1381 = vunpack.c.l.b16 %v1223
  %v1382 = vunpack.c.h.b16 %v1223
  %v1383 = vunpack.c.l.b16 %v1224
  %v1384 = vunpack.c.h.b16 %v1224
  %v1385 = vunpack.c.l.b16 %v1225
  %v1386 = vunpack.c.h.b16 %v1225
  %v1387 = vunpack.c.l.b16 %v1226
  %v1388 = vunpack.c.h.b16 %v1226
  %v1389 = vunpack.c.l.b16 %v1227
  %v1390 = vunpack.c.h.b16 %v1227
  %v1391 = vunpack.c.l.b16 %v1228
  %v1392 = vunpack.c.h.b16 %v1228
  %v1393 = vunpack.c.l.b16 %v1229
  %v1394 = vunpack.c.h.b16 %v1229
  %v1395 = vunpack.c.l.b16 %v1230
  %v1396 = vunpack.c.h.b16 %v1230
  %v1397 = vunpack.c.l.b16 %v1231
  %v1398 = vunpack.c.h.b16 %v1231
  %v1399 = vunpack.c.l.b16 %v1232
  %v1400 = vunpack.c.h.b16 %v1232
  %v1401 = vunpack.c.l.b16 %v1233
  %v1402 = vunpack.c.h.b16 %v1233
  %v1403 = vunpack.c.l.b16 %v1234
  %v1404 = vunpack.c.h.b16 %v1234
  %v1405 = vunpack.c.l.b16 %v1235
  %v1406 = vunpack.c.h.b16 %v1235
  %v1407 = vunpack.c.l.b16 %v1236
  %v1408 = vunpack.c.h.b16 %v1236
  %v1409 = vunpack.c.l.b16 %v1237
  %v1410 = vunpack.c.h.b16 %v1237
  %v1411 = vunpack.c.l.b16 %v1238
  %v1412 = vunpack.c.h.b16 %v1238
  %v1413 = vunpack.c.l.b16 %v1239
  %v1414 = vunpack.c.h.b16 %v1239
  %v1415 = vunpack.c.l.b16 %v1240
  %v1416 = vunpack.c.h.b16 %v1240
  %v1417 = vunpack.c.l.b16 %v1241
  %v1418 = vunpack.c.h.b16 %v1241
  %v1419 = vunpack.c.l.b16 %v1242
  %v1420 = vunpack.c.h.b16 %v1242
  %v1421 = vunpack.c.l.b16 %v1243
  %v1422 = vunpack.c.h.b16 %v1243
  %v1423 = vunpack.c.l.b16 %v1244
  %v1424 = vunpack.c.h.b16 %v1244
  %v1425 = vunpack.c.l.b16 %v1245
  %v1426 = vunpack.c.h.b16 %v1245
  %v1427 = vunpack.c.l.b16 %v1246
  %v1428 = vunpack.c.h.b16 %v1246
  %v1429 = vunpack.c.l.b16 %v1247
  %v1430 = vunpack.c.h.b16 %v1247
  %v1431 = vunpack.c.l.b16 %v1248
  %v1432 = vunpack.c.h.b16 %v1248
  %v1433 = vunpack.c.l.b16 %v1249
  %v1434 = vunpack.c.h.b16 %v1249
  %v1435 = vunpack.c.l.b16 %v1250
  %v1436 = vunpack.c.h.b16 %v1250
  %v1437 = vunpack.c.l.b16 %v1251
  %v1438 = vunpack.c.h.b16 %v1251
  %v1439 = vunpack.c.l.b16 %v1252
  %v1440 = vunpack.c.h.b16 %v1252
  %v1441 = vunpack.c.l.b16 %v1253
  %v1442 = vunpack.c.h.b16 %v1253
  %v1443 = vunpack.c.l.b16 %v1254
  %v1444 = vunpack.c.h.b16 %v1254
  %v1445 = vunpack.c.l.b16 %v1255
  %v1446 = vunpack.c.h.b16 %v1255
  %v1447 = vunpack.c.l.b16 %v1256
  %v1448 = vunpack.c.h.b16 %v1256
  %v1449 = vpack.c.b16 %v1325, %v1321
  %v1450 = vpack.c.b16 %v1326, %v1322
  %v1451 = vpack.c.b16 %v1327, %v1323
  %v1452 = vpack.c.b16 %v1328, %v1324
  %v1453 = vpack.c.b16 %v1333, %v1329
  %v1454 = vpack.c.b16 %v1334, %v1330
  %v1455 = vpack.c.b16 %v1335, %v1331
  %v1456 = vpack.c.b16 %v1336, %v1332
  %v1457 = vpack.c.b16 %v1341, %v1337
  %v1458 = vpack.c.b16 %v1342, %v1338
  %v1459 = vpack.c.b16 %v1343, %v1339
  %v1460 = vpack.c.b16 %v1344, %v1340
  %v1461 = vpack.c.b16 %v1349, %v1345
  %v1462 = vpack.c.b16 %v1350, %v1346
  %v1463 = vpack.c.b16 %v1351, %v1347
  %v1464 = vpack.c.b16 %v1352, %v1348
  %v1465 = vpack.c.b16 %v1357, %v1353
  %v1466 = vpack.c.b16 %v1358, %v1354
  %v1467 = vpack.c.b16 %v1359, %v1355
  %v1468 = vpack.c.b16 %v1360, %v1356
  %v1469 = vpack.c.b16 %v1365, %v1361
  %v1470 = vpack.c.b16 %v1366, %v1362
  %v1471 = vpack.c.b16 %v1367, %v1363
  %v1472 = vpack.c.b16 %v1368, %v1364
  %v1473 = vpack.c.b16 %v1373, %v1369
  %v1474 = vpack.c.b16 %v1374, %v1370
  %v1475 = vpack.c.b16 %v1375, %v1371
  %v1476 = vpack.c.b16 %v1376, %v1372
  %v1477 = vpack.c.b16 %v1381, %v1377
  %v1478 = vpack.c.b16 %v1382, %v1378
  %v1479 = vpack.c.b16 %v1383, %v1379
  %v1480 = vpack.c.b16 %v1384, %v1380
  %v1481 = vpack.c.b16 %v1389, %v1385
  %v1482 = vpack.c.b16 %v1390, %v1386
  %v1483 = vpack.c.b16 %v1391, %v1387
  %v1484 = vpack.c.b16 %v1392, %v1388
  %v1485 = vpack.c.b16 %v1397, %v1393
  %v1486 = vpack.c.b16 %v1398, %v1394
  %v1487 = vpack.c.b16 %v1399, %v1395
  %v1488 = vpack.c.b16 %v1400, %v1396
  %v1489 = vpack.c.b16 %v1405, %v1401
  %v1490 = vpack.c.b16 %v1406, %v1402
  %v1491 = vpack.c.b16 %v1407, %v1403
  %v1492 = vpack.c.b16 %v1408, %v1404
  %v1493 = vpack.c.b16 %v1413, %v1409
  %v1494 = vpack.c.b16 %v1414, %v1410
  %v1495 = vpack.c.b16 %v1415, %v1411
  %v1496 = vpack.c.b16 %v1416, %v1412
  %v1497 = vpack.c.b16 %v1421, %v1417
  %v1498 = vpack.c.b16 %v1422, %v1418
  %v1499 = vpack.c.b16 %v1423, %v1419
  %v1500 = vpack.c.b16 %v1424, %v1420
  %v1501 = vpack.c.b16 %v1429, %v1425
  %v1502 = vpack.c.b16 %v1430, %v1426
  %v1503 = vpack.c.b16 %v1431, %v1427
  %v1504 = vpack.c.b16 %v1432, %v1428
  %v1505 = vpack.c.b16 %v1437, %v1433
  %v1506 = vpack.c.b16 %v1438, %v1434
  %v1507 = vpack.c.b16 %v1439, %v1435
  %v1508 = vpack.c.b16 %v1440, %v1436
  %v1509 = vpack.c.b16 %v1445, %v1441
  %v1510 = vpack.c.b16 %v1446, %v1442
  %v1511 = vpack.c.b16 %v1447, %v1443
  %v1512 = vpack.c.b16 %v1448, %v1444
  %1577 = vmatprep.subr.bf16.mxu0 %v1478
  %1578 = vmatpush1.bf16.msra.mxu0 %v1477
  %1579 = vmatprep.subr.bf16.mxu0 %v1474
  %1580 = vmatpush1.bf16.msra.mxu0 %v1473
  %1581 = vmatprep.subr.bf16.mxu0 %v1470
  %1582 = vmatpush1.bf16.msra.mxu0 %v1469
  %1583 = vmatprep.subr.bf16.mxu0 %v1466
  %1584 = vmatpush1.bf16.msra.mxu0 %v1465
  %1585 = vmatprep.subr.bf16.mxu0 %v1462
  %1586 = vmatpush1.bf16.msra.mxu0 %v1461
  %1587 = vmatprep.subr.bf16.mxu0 %v1458
  %1588 = vmatpush1.bf16.msra.mxu0 %v1457
  %1589 = vmatprep.subr.bf16.mxu0 %v1454
  %1590 = vmatpush1.bf16.msra.mxu0 %v1453
  %1591 = vmatprep.subr.bf16.mxu0 %v1450
  %1592 = vmatpush1.bf16.msra.mxu0 %v1449
  %1593 = vmatprep.subr.bf16.mxu0 %v1510
  %1594 = vmatpush2.bf16.msra.mxu0 %v1509
  %1595 = vmatprep.subr.bf16.mxu0 %v1506
  %1596 = vmatpush2.bf16.msra.mxu0 %v1505
  %1597 = vmatprep.subr.bf16.mxu0 %v1502
  %1598 = vmatpush2.bf16.msra.mxu0 %v1501
  %1599 = vmatprep.subr.bf16.mxu0 %v1498
  %1600 = vmatpush2.bf16.msra.mxu0 %v1497
  %1601 = vmatprep.subr.bf16.mxu0 %v1494
  %1602 = vmatpush2.bf16.msra.mxu0 %v1493
  %1603 = vmatprep.subr.bf16.mxu0 %v1490
  %1604 = vmatpush2.bf16.msra.mxu0 %v1489
  %1605 = vmatprep.subr.bf16.mxu0 %v1486
  %1606 = vmatpush2.bf16.msra.mxu0 %v1485
  %1607 = vmatprep.subr.bf16.mxu0 %v1482
  %1608 = vmatpush2.bf16.msra.mxu0 %v1481
  %1609 = vmatprep.mubr.bf16.mxu0 %v1192
  %1610 = vmatmul.mubr.bf16.gmra.mxu0 %v1191
  %v1611 = vpop.f32.mrf.mxu0
  %v1612 = vadd.f32 %v23, %v1611
  %v1613 = vpop.f32.mrf.mxu0
  %v1614 = vadd.f32 %v27, %v1613
  %v1615 = vpop.f32.mrf.mxu0
  %v1616 = vpop.f32.mrf.mxu0
  %1617 = vdwg.mxu0
  %1618 = vmatprep.subr.bf16.mxu0 %v1480
  %1619 = vmatpush1.bf16.msra.mxu0 %v1479
  %1620 = vmatprep.subr.bf16.mxu0 %v1476
  %1621 = vmatpush1.bf16.msra.mxu0 %v1475
  %1622 = vmatprep.subr.bf16.mxu0 %v1472
  %1623 = vmatpush1.bf16.msra.mxu0 %v1471
  %1624 = vmatprep.subr.bf16.mxu0 %v1468
  %1625 = vmatpush1.bf16.msra.mxu0 %v1467
  %1626 = vmatprep.subr.bf16.mxu0 %v1464
  %1627 = vmatpush1.bf16.msra.mxu0 %v1463
  %1628 = vmatprep.subr.bf16.mxu0 %v1460
  %1629 = vmatpush1.bf16.msra.mxu0 %v1459
  %1630 = vmatprep.subr.bf16.mxu0 %v1456
  %1631 = vmatpush1.bf16.msra.mxu0 %v1455
  %1632 = vmatprep.subr.bf16.mxu0 %v1452
  %1633 = vmatpush1.bf16.msra.mxu0 %v1451
  %1634 = vmatprep.subr.bf16.mxu0 %v1512
  %1635 = vmatpush2.bf16.msra.mxu0 %v1511
  %1636 = vmatprep.subr.bf16.mxu0 %v1508
  %1637 = vmatpush2.bf16.msra.mxu0 %v1507
  %1638 = vmatprep.subr.bf16.mxu0 %v1504
  %1639 = vmatpush2.bf16.msra.mxu0 %v1503
  %1640 = vmatprep.subr.bf16.mxu0 %v1500
  %1641 = vmatpush2.bf16.msra.mxu0 %v1499
  %1642 = vmatprep.subr.bf16.mxu0 %v1496
  %1643 = vmatpush2.bf16.msra.mxu0 %v1495
  %1644 = vmatprep.subr.bf16.mxu0 %v1492
  %1645 = vmatpush2.bf16.msra.mxu0 %v1491
  %1646 = vmatprep.subr.bf16.mxu0 %v1488
  %1647 = vmatpush2.bf16.msra.mxu0 %v1487
  %1648 = vmatprep.subr.bf16.mxu0 %v1484
  %1649 = vmatpush2.bf16.msra.mxu0 %v1483
  %1650 = vmatprep.mubr.bf16.mxu0 %v1192
  %1651 = vmatmul.mubr.bf16.gmra.mxu0 %v1191
  %v1652 = vpop.f32.mrf.mxu0
  %v1653 = vadd.f32 %v31, %v1652
  %v1654 = vpop.f32.mrf.mxu0
  %v1655 = vadd.f32 %v35, %v1654
  %v1656 = vpop.f32.mrf.mxu0
  %v1657 = vpop.f32.mrf.mxu0
  %1658 = vdwg.mxu0
  %v1659 = vxor.u32 %v1612, 2147483648
  %v1660 = vmul.f32 %v1659, 1.442695
  %v1661 = vpow.pop %v1660
  %v1662 = vadd.f32 %v1661, 1.0
  %v1663 = vrcp.pop %v1662
  %v1664 = vmul.f32 1.0, %v1663
  %v1665 = vxor.u32 %v1614, 2147483648
  %v1666 = vmul.f32 %v1665, 1.442695
  %v1667 = vpow.pop %v1666
  %v1668 = vadd.f32 %v1667, 1.0
  %v1669 = vrcp.pop %v1668
  %v1670 = vmul.f32 1.0, %v1669
  %v1671 = vtanh.pop %v1653
  %v1672 = vxor.u32 %v1655, 2147483648
  %v1673 = vmul.f32 %v1672, 1.442695
  %v1674 = vpow.pop %v1673
  %v1675 = vadd.f32 %v1674, 1.0
  %v1676 = vrcp.pop %v1675
  %v1677 = vmul.f32 1.0, %v1676
  %v1678 = vmul.f32 %v1670, %v857
  %v1679 = vmul.f32 %v1664, %v1671
  %v1680 = vadd.f32 %v1678, %v1679
  %v1681 = vtanh.pop %v1680
  %v1682 = vmul.f32 %v1677, %v1681
  %s1683 = scalar_lea.vmem %s4, 2
  %1684 = vst [vmem:[%s1683] sm:$0x3] %v1682
  %s1685 = scalar_lea.vmem %s0, 16
  %v1686 = vld [vmem:[%s1685] sm:$0xff]
  %v1687 = vld [vmem:[%s1] sm:$0xff]
  %v1688 = vld [vmem:[%s1 + $0x8] sm:$0xff]
  %v1689 = vld [vmem:[%s1 + $0x10] sm:$0xff]
  %v1690 = vld [vmem:[%s1 + $0x18] sm:$0xff]
  %v1691 = vld [vmem:[%s1 + $0x20] sm:$0xff]
  %v1692 = vld [vmem:[%s1 + $0x28] sm:$0xff]
  %v1693 = vld [vmem:[%s1 + $0x30] sm:$0xff]
  %v1694 = vld [vmem:[%s1 + $0x38] sm:$0xff]
  %v1695 = vld [vmem:[%s1 + $0x40] sm:$0xff]
  %v1696 = vld [vmem:[%s1 + $0x48] sm:$0xff]
  %v1697 = vld [vmem:[%s1 + $0x50] sm:$0xff]
  %v1698 = vld [vmem:[%s1 + $0x58] sm:$0xff]
  %v1699 = vld [vmem:[%s1 + $0x60] sm:$0xff]
  %v1700 = vld [vmem:[%s1 + $0x68] sm:$0xff]
  %v1701 = vld [vmem:[%s1 + $0x70] sm:$0xff]
  %v1702 = vld [vmem:[%s1 + $0x78] sm:$0xff]
  %v1703 = vld [vmem:[%s1 + $0x80] sm:$0xff]
  %v1704 = vld [vmem:[%s1 + $0x88] sm:$0xff]
  %v1705 = vld [vmem:[%s1 + $0x90] sm:$0xff]
  %v1706 = vld [vmem:[%s1 + $0x98] sm:$0xff]
  %v1707 = vld [vmem:[%s1 + $0xa0] sm:$0xff]
  %v1708 = vld [vmem:[%s1 + $0xa8] sm:$0xff]
  %v1709 = vld [vmem:[%s1 + $0xb0] sm:$0xff]
  %v1710 = vld [vmem:[%s1 + $0xb8] sm:$0xff]
  %v1711 = vld [vmem:[%s1 + $0xc0] sm:$0xff]
  %v1712 = vld [vmem:[%s1 + $0xc8] sm:$0xff]
  %v1713 = vld [vmem:[%s1 + $0xd0] sm:$0xff]
  %v1714 = vld [vmem:[%s1 + $0xd8] sm:$0xff]
  %v1715 = vld [vmem:[%s1 + $0xe0] sm:$0xff]
  %v1716 = vld [vmem:[%s1 + $0xe8] sm:$0xff]
  %v1717 = vld [vmem:[%s1 + $0xf0] sm:$0xff]
  %v1718 = vld [vmem:[%s1 + $0xf8] sm:$0xff]
  %v1751 = vunpack.c.l.b16 %v1687
  %v1752 = vunpack.c.h.b16 %v1687
  %v1753 = vunpack.c.l.b16 %v1688
  %v1754 = vunpack.c.h.b16 %v1688
  %v1755 = vunpack.c.l.b16 %v1689
  %v1756 = vunpack.c.h.b16 %v1689
  %v1757 = vunpack.c.l.b16 %v1690
  %v1758 = vunpack.c.h.b16 %v1690
  %v1759 = vunpack.c.l.b16 %v1691
  %v1760 = vunpack.c.h.b16 %v1691
  %v1761 = vunpack.c.l.b16 %v1692
  %v1762 = vunpack.c.h.b16 %v1692
  %v1763 = vunpack.c.l.b16 %v1693
  %v1764 = vunpack.c.h.b16 %v1693
  %v1765 = vunpack.c.l.b16 %v1694
  %v1766 = vunpack.c.h.b16 %v1694
  %v1767 = vunpack.c.l.b16 %v1695
  %v1768 = vunpack.c.h.b16 %v1695
  %v1769 = vunpack.c.l.b16 %v1696
  %v1770 = vunpack.c.h.b16 %v1696
  %v1771 = vunpack.c.l.b16 %v1697
  %v1772 = vunpack.c.h.b16 %v1697
  %v1773 = vunpack.c.l.b16 %v1698
  %v1774 = vunpack.c.h.b16 %v1698
  %v1775 = vunpack.c.l.b16 %v1699
  %v1776 = vunpack.c.h.b16 %v1699
  %v1777 = vunpack.c.l.b16 %v1700
  %v1778 = vunpack.c.h.b16 %v1700
  %v1779 = vunpack.c.l.b16 %v1701
  %v1780 = vunpack.c.h.b16 %v1701
  %v1781 = vunpack.c.l.b16 %v1702
  %v1782 = vunpack.c.h.b16 %v1702
  %v1783 = vunpack.c.l.b16 %v1703
  %v1784 = vunpack.c.h.b16 %v1703
  %v1785 = vunpack.c.l.b16 %v1704
  %v1786 = vunpack.c.h.b16 %v1704
  %v1787 = vunpack.c.l.b16 %v1705
  %v1788 = vunpack.c.h.b16 %v1705
  %v1789 = vunpack.c.l.b16 %v1706
  %v1790 = vunpack.c.h.b16 %v1706
  %v1791 = vunpack.c.l.b16 %v1707
  %v1792 = vunpack.c.h.b16 %v1707
  %v1793 = vunpack.c.l.b16 %v1708
  %v1794 = vunpack.c.h.b16 %v1708
  %v1795 = vunpack.c.l.b16 %v1709
  %v1796 = vunpack.c.h.b16 %v1709
  %v1797 = vunpack.c.l.b16 %v1710
  %v1798 = vunpack.c.h.b16 %v1710
  %v1799 = vunpack.c.l.b16 %v1711
  %v1800 = vunpack.c.h.b16 %v1711
  %v1801 = vunpack.c.l.b16 %v1712
  %v1802 = vunpack.c.h.b16 %v1712
  %v1803 = vunpack.c.l.b16 %v1713
  %v1804 = vunpack.c.h.b16 %v1713
  %v1805 = vunpack.c.l.b16 %v1714
  %v1806 = vunpack.c.h.b16 %v1714
  %v1807 = vunpack.c.l.b16 %v1715
  %v1808 = vunpack.c.h.b16 %v1715
  %v1809 = vunpack.c.l.b16 %v1716
  %v1810 = vunpack.c.h.b16 %v1716
  %v1811 = vunpack.c.l.b16 %v1717
  %v1812 = vunpack.c.h.b16 %v1717
  %v1813 = vunpack.c.l.b16 %v1718
  %v1814 = vunpack.c.h.b16 %v1718
  %v1815 = vpack.c.b16 %v1755, %v1751
  %v1816 = vpack.c.b16 %v1756, %v1752
  %v1817 = vpack.c.b16 %v1757, %v1753
  %v1818 = vpack.c.b16 %v1758, %v1754
  %v1819 = vpack.c.b16 %v1763, %v1759
  %v1820 = vpack.c.b16 %v1764, %v1760
  %v1821 = vpack.c.b16 %v1765, %v1761
  %v1822 = vpack.c.b16 %v1766, %v1762
  %v1823 = vpack.c.b16 %v1771, %v1767
  %v1824 = vpack.c.b16 %v1772, %v1768
  %v1825 = vpack.c.b16 %v1773, %v1769
  %v1826 = vpack.c.b16 %v1774, %v1770
  %v1827 = vpack.c.b16 %v1779, %v1775
  %v1828 = vpack.c.b16 %v1780, %v1776
  %v1829 = vpack.c.b16 %v1781, %v1777
  %v1830 = vpack.c.b16 %v1782, %v1778
  %v1831 = vpack.c.b16 %v1787, %v1783
  %v1832 = vpack.c.b16 %v1788, %v1784
  %v1833 = vpack.c.b16 %v1789, %v1785
  %v1834 = vpack.c.b16 %v1790, %v1786
  %v1835 = vpack.c.b16 %v1795, %v1791
  %v1836 = vpack.c.b16 %v1796, %v1792
  %v1837 = vpack.c.b16 %v1797, %v1793
  %v1838 = vpack.c.b16 %v1798, %v1794
  %v1839 = vpack.c.b16 %v1803, %v1799
  %v1840 = vpack.c.b16 %v1804, %v1800
  %v1841 = vpack.c.b16 %v1805, %v1801
  %v1842 = vpack.c.b16 %v1806, %v1802
  %v1843 = vpack.c.b16 %v1811, %v1807
  %v1844 = vpack.c.b16 %v1812, %v1808
  %v1845 = vpack.c.b16 %v1813, %v1809
  %v1846 = vpack.c.b16 %v1814, %v1810
  %1879 = vmatprep.subr.bf16.mxu0 %v1844
  %1880 = vmatpush1.bf16.msra.mxu0 %v1843
  %1881 = vmatprep.subr.bf16.mxu0 %v1840
  %1882 = vmatpush1.bf16.msra.mxu0 %v1839
  %1883 = vmatprep.subr.bf16.mxu0 %v1836
  %1884 = vmatpush1.bf16.msra.mxu0 %v1835
  %1885 = vmatprep.subr.bf16.mxu0 %v1832
  %1886 = vmatpush1.bf16.msra.mxu0 %v1831
  %1887 = vmatprep.subr.bf16.mxu0 %v1828
  %1888 = vmatpush1.bf16.msra.mxu0 %v1827
  %1889 = vmatprep.subr.bf16.mxu0 %v1824
  %1890 = vmatpush1.bf16.msra.mxu0 %v1823
  %1891 = vmatprep.subr.bf16.mxu0 %v1820
  %1892 = vmatpush1.bf16.msra.mxu0 %v1819
  %1893 = vmatprep.subr.bf16.mxu0 %v1816
  %1894 = vmatpush1.bf16.msra.mxu0 %v1815
  %1895 = vmatprep.subr.bf16.mxu0 0
  %1896 = vmatpush2.bf16.msra.mxu0 0
  %1897 = vmatprep.subr.bf16.mxu0 0
  %1898 = vmatpush2.bf16.msra.mxu0 0
  %1899 = vmatprep.subr.bf16.mxu0 0
  %1900 = vmatpush2.bf16.msra.mxu0 0
  %1901 = vmatprep.subr.bf16.mxu0 0
  %1902 = vmatpush2.bf16.msra.mxu0 0
  %1903 = vmatprep.subr.bf16.mxu0 0
  %1904 = vmatpush2.bf16.msra.mxu0 0
  %1905 = vmatprep.subr.bf16.mxu0 0
  %1906 = vmatpush2.bf16.msra.mxu0 0
  %1907 = vmatprep.subr.bf16.mxu0 0
  %1908 = vmatpush2.bf16.msra.mxu0 0
  %1909 = vmatprep.subr.bf16.mxu0 0
  %1910 = vmatpush2.bf16.msra.mxu0 0
  %1911 = vmatprep.mubr.bf16.mxu0 0
  %1912 = vmatmul.mubr.bf16.gmra.mxu0 %v1191
  %v1913 = vpop.f32.mrf.mxu0
  %v1914 = vadd.f32 0.0, %v1913
  %v1915 = vpop.f32.mrf.mxu0
  %v1916 = vadd.f32 0.0, %v1915
  %v1917 = vpop.f32.mrf.mxu0
  %v1918 = vpop.f32.mrf.mxu0
  %1919 = vdwg.mxu0
  %1920 = vmatprep.subr.bf16.mxu0 %v1846
  %1921 = vmatpush1.bf16.msra.mxu0 %v1845
  %1922 = vmatprep.subr.bf16.mxu0 %v1842
  %1923 = vmatpush1.bf16.msra.mxu0 %v1841
  %1924 = vmatprep.subr.bf16.mxu0 %v1838
  %1925 = vmatpush1.bf16.msra.mxu0 %v1837
  %1926 = vmatprep.subr.bf16.mxu0 %v1834
  %1927 = vmatpush1.bf16.msra.mxu0 %v1833
  %1928 = vmatprep.subr.bf16.mxu0 %v1830
  %1929 = vmatpush1.bf16.msra.mxu0 %v1829
  %1930 = vmatprep.subr.bf16.mxu0 %v1826
  %1931 = vmatpush1.bf16.msra.mxu0 %v1825
  %1932 = vmatprep.subr.bf16.mxu0 %v1822
  %1933 = vmatpush1.bf16.msra.mxu0 %v1821
  %1934 = vmatprep.subr.bf16.mxu0 %v1818
  %1935 = vmatpush1.bf16.msra.mxu0 %v1817
  %1936 = vmatprep.subr.bf16.mxu0 0
  %1937 = vmatpush2.bf16.msra.mxu0 0
  %1938 = vmatprep.subr.bf16.mxu0 0
  %1939 = vmatpush2.bf16.msra.mxu0 0
  %1940 = vmatprep.subr.bf16.mxu0 0
  %1941 = vmatpush2.bf16.msra.mxu0 0
  %1942 = vmatprep.subr.bf16.mxu0 0
  %1943 = vmatpush2.bf16.msra.mxu0 0
  %1944 = vmatprep.subr.bf16.mxu0 0
  %1945 = vmatpush2.bf16.msra.mxu0 0
  %1946 = vmatprep.subr.bf16.mxu0 0
  %1947 = vmatpush2.bf16.msra.mxu0 0
  %1948 = vmatprep.subr.bf16.mxu0 0
  %1949 = vmatpush2.bf16.msra.mxu0 0
  %1950 = vmatprep.subr.bf16.mxu0 0
  %1951 = vmatpush2.bf16.msra.mxu0 0
  %1952 = vmatprep.mubr.bf16.mxu0 0
  %1953 = vmatmul.mubr.bf16.gmra.mxu0 %v1191
  %v1954 = vpop.f32.mrf.mxu0
  %v1955 = vadd.f32 0.0, %v1954
  %v1956 = vpop.f32.mrf.mxu0
  %v1957 = vadd.f32 0.0, %v1956
  %v1958 = vpop.f32.mrf.mxu0
  %v1959 = vpop.f32.mrf.mxu0
  %1960 = vdwg.mxu0
  %v1965 = vcombine.low %v1914, %v1916
  %v1966 = vcombine.low %v1955, %v1957
  %v1968 = vunpack.c.l.s4 1983009808
  %v1969 = vunpack.c.0.s8 %v1968
  %v1970 = vlaneseq
  %v1971 = vshrl.u32 %v1970, 7
  %v1972 = vsub.s32 %v1969, %v1971
  %v1973 = vrot.slane %v1965, %v1972
  %v1975 = vunpack.c.l.s4 1983009808
  %v1976 = vunpack.c.0.s8 %v1975
  %v1977 = vlaneseq
  %v1978 = vshrl.u32 %v1977, 7
  %v1979 = vsub.s32 %v1976, %v1978
  %v1980 = vrot.slane %v1966, %v1979
  %v1981 = vcombine.low %v1973, %v1980
  %v1983 = vadd.f32 %v1686, %v1981
  %v1984 = vxor.u32 %v1983, 2147483648
  %v1985 = vmul.f32 %v1984, 1.442695
  %v1986 = vpow.pop %v1985
  %v1987 = vadd.f32 %v1986, 1.0
  %v1988 = vrcp.pop %v1987
  %v1989 = vmul.f32 1.0, %v1988
  %v1991 = vrot.slane %v1983, 2
  %v1993 = vxor.u32 %v1991, 2147483648
  %v1994 = vmul.f32 %v1993, 1.442695
  %v1995 = vpow.pop %v1994
  %v1996 = vadd.f32 %v1995, 1.0
  %v1997 = vrcp.pop %v1996
  %v1998 = vmul.f32 1.0, %v1997
  %v1999 = vrot.slane %v1983, 4
  %v2001 = vtanh.pop %v1999
  %v2002 = vrot.slane %v1983, 6
  %v2004 = vxor.u32 %v2002, 2147483648
  %v2005 = vmul.f32 %v2004, 1.442695
  %v2006 = vpow.pop %v2005
  %v2007 = vadd.f32 %v2006, 1.0
  %v2008 = vrcp.pop %v2007
  %v2009 = vmul.f32 1.0, %v2008
  %v2010 = vmul.f32 %v1998, %v1188
  %v2011 = vmul.f32 %v1989, %v2001
  %v2012 = vadd.f32 %v2010, %v2011
  %v2013 = vtanh.pop %v2012
  %v2014 = vmul.f32 %v2009, %v2013
  %v2015 = vpack.c.bf16 %v2014, %v2014
  %v2016 = vpack.c.bf16 %v1682, %v1682
  %v2017 = vld [vmem:[%s2] sm:$0xff]
  %v2018 = vld [vmem:[%s2 + $0x8] sm:$0xff]
  %v2019 = vld [vmem:[%s2 + $0x10] sm:$0xff]
  %v2020 = vld [vmem:[%s2 + $0x18] sm:$0xff]
  %v2021 = vld [vmem:[%s2 + $0x20] sm:$0xff]
  %v2022 = vld [vmem:[%s2 + $0x28] sm:$0xff]
  %v2023 = vld [vmem:[%s2 + $0x30] sm:$0xff]
  %v2024 = vld [vmem:[%s2 + $0x38] sm:$0xff]
  %v2025 = vld [vmem:[%s2 + $0x40] sm:$0xff]
  %v2026 = vld [vmem:[%s2 + $0x48] sm:$0xff]
  %v2027 = vld [vmem:[%s2 + $0x50] sm:$0xff]
  %v2028 = vld [vmem:[%s2 + $0x58] sm:$0xff]
  %v2029 = vld [vmem:[%s2 + $0x60] sm:$0xff]
  %v2030 = vld [vmem:[%s2 + $0x68] sm:$0xff]
  %v2031 = vld [vmem:[%s2 + $0x70] sm:$0xff]
  %v2032 = vld [vmem:[%s2 + $0x78] sm:$0xff]
  %v2033 = vld [vmem:[%s2 + $0x80] sm:$0xff]
  %v2034 = vld [vmem:[%s2 + $0x88] sm:$0xff]
  %v2035 = vld [vmem:[%s2 + $0x90] sm:$0xff]
  %v2036 = vld [vmem:[%s2 + $0x98] sm:$0xff]
  %v2037 = vld [vmem:[%s2 + $0xa0] sm:$0xff]
  %v2038 = vld [vmem:[%s2 + $0xa8] sm:$0xff]
  %v2039 = vld [vmem:[%s2 + $0xb0] sm:$0xff]
  %v2040 = vld [vmem:[%s2 + $0xb8] sm:$0xff]
  %v2041 = vld [vmem:[%s2 + $0xc0] sm:$0xff]
  %v2042 = vld [vmem:[%s2 + $0xc8] sm:$0xff]
  %v2043 = vld [vmem:[%s2 + $0xd0] sm:$0xff]
  %v2044 = vld [vmem:[%s2 + $0xd8] sm:$0xff]
  %v2045 = vld [vmem:[%s2 + $0xe0] sm:$0xff]
  %v2046 = vld [vmem:[%s2 + $0xe8] sm:$0xff]
  %v2047 = vld [vmem:[%s2 + $0xf0] sm:$0xff]
  %v2048 = vld [vmem:[%s2 + $0xf8] sm:$0xff]
  %v2049 = vld [vmem:[%s2 + $0x100] sm:$0xff]
  %v2050 = vld [vmem:[%s2 + $0x108] sm:$0xff]
  %v2051 = vld [vmem:[%s2 + $0x110] sm:$0xff]
  %v2052 = vld [vmem:[%s2 + $0x118] sm:$0xff]
  %v2053 = vld [vmem:[%s2 + $0x120] sm:$0xff]
  %v2054 = vld [vmem:[%s2 + $0x128] sm:$0xff]
  %v2055 = vld [vmem:[%s2 + $0x130] sm:$0xff]
  %v2056 = vld [vmem:[%s2 + $0x138] sm:$0xff]
  %v2057 = vld [vmem:[%s2 + $0x140] sm:$0xff]
  %v2058 = vld [vmem:[%s2 + $0x148] sm:$0xff]
  %v2059 = vld [vmem:[%s2 + $0x150] sm:$0xff]
  %v2060 = vld [vmem:[%s2 + $0x158] sm:$0xff]
  %v2061 = vld [vmem:[%s2 + $0x160] sm:$0xff]
  %v2062 = vld [vmem:[%s2 + $0x168] sm:$0xff]
  %v2063 = vld [vmem:[%s2 + $0x170] sm:$0xff]
  %v2064 = vld [vmem:[%s2 + $0x178] sm:$0xff]
  %v2065 = vld [vmem:[%s2 + $0x180] sm:$0xff]
  %v2066 = vld [vmem:[%s2 + $0x188] sm:$0xff]
  %v2067 = vld [vmem:[%s2 + $0x190] sm:$0xff]
  %v2068 = vld [vmem:[%s2 + $0x198] sm:$0xff]
  %v2069 = vld [vmem:[%s2 + $0x1a0] sm:$0xff]
  %v2070 = vld [vmem:[%s2 + $0x1a8] sm:$0xff]
  %v2071 = vld [vmem:[%s2 + $0x1b0] sm:$0xff]
  %v2072 = vld [vmem:[%s2 + $0x1b8] sm:$0xff]
  %v2073 = vld [vmem:[%s2 + $0x1c0] sm:$0xff]
  %v2074 = vld [vmem:[%s2 + $0x1c8] sm:$0xff]
  %v2075 = vld [vmem:[%s2 + $0x1d0] sm:$0xff]
  %v2076 = vld [vmem:[%s2 + $0x1d8] sm:$0xff]
  %v2077 = vld [vmem:[%s2 + $0x1e0] sm:$0xff]
  %v2078 = vld [vmem:[%s2 + $0x1e8] sm:$0xff]
  %v2079 = vld [vmem:[%s2 + $0x1f0] sm:$0xff]
  %v2080 = vld [vmem:[%s2 + $0x1f8] sm:$0xff]
  %v2145 = vunpack.c.l.b16 %v2017
  %v2146 = vunpack.c.h.b16 %v2017
  %v2147 = vunpack.c.l.b16 %v2018
  %v2148 = vunpack.c.h.b16 %v2018
  %v2149 = vunpack.c.l.b16 %v2019
  %v2150 = vunpack.c.h.b16 %v2019
  %v2151 = vunpack.c.l.b16 %v2020
  %v2152 = vunpack.c.h.b16 %v2020
  %v2153 = vunpack.c.l.b16 %v2021
  %v2154 = vunpack.c.h.b16 %v2021
  %v2155 = vunpack.c.l.b16 %v2022
  %v2156 = vunpack.c.h.b16 %v2022
  %v2157 = vunpack.c.l.b16 %v2023
  %v2158 = vunpack.c.h.b16 %v2023
  %v2159 = vunpack.c.l.b16 %v2024
  %v2160 = vunpack.c.h.b16 %v2024
  %v2161 = vunpack.c.l.b16 %v2025
  %v2162 = vunpack.c.h.b16 %v2025
  %v2163 = vunpack.c.l.b16 %v2026
  %v2164 = vunpack.c.h.b16 %v2026
  %v2165 = vunpack.c.l.b16 %v2027
  %v2166 = vunpack.c.h.b16 %v2027
  %v2167 = vunpack.c.l.b16 %v2028
  %v2168 = vunpack.c.h.b16 %v2028
  %v2169 = vunpack.c.l.b16 %v2029
  %v2170 = vunpack.c.h.b16 %v2029
  %v2171 = vunpack.c.l.b16 %v2030
  %v2172 = vunpack.c.h.b16 %v2030
  %v2173 = vunpack.c.l.b16 %v2031
  %v2174 = vunpack.c.h.b16 %v2031
  %v2175 = vunpack.c.l.b16 %v2032
  %v2176 = vunpack.c.h.b16 %v2032
  %v2177 = vunpack.c.l.b16 %v2033
  %v2178 = vunpack.c.h.b16 %v2033
  %v2179 = vunpack.c.l.b16 %v2034
  %v2180 = vunpack.c.h.b16 %v2034
  %v2181 = vunpack.c.l.b16 %v2035
  %v2182 = vunpack.c.h.b16 %v2035
  %v2183 = vunpack.c.l.b16 %v2036
  %v2184 = vunpack.c.h.b16 %v2036
  %v2185 = vunpack.c.l.b16 %v2037
  %v2186 = vunpack.c.h.b16 %v2037
  %v2187 = vunpack.c.l.b16 %v2038
  %v2188 = vunpack.c.h.b16 %v2038
  %v2189 = vunpack.c.l.b16 %v2039
  %v2190 = vunpack.c.h.b16 %v2039
  %v2191 = vunpack.c.l.b16 %v2040
  %v2192 = vunpack.c.h.b16 %v2040
  %v2193 = vunpack.c.l.b16 %v2041
  %v2194 = vunpack.c.h.b16 %v2041
  %v2195 = vunpack.c.l.b16 %v2042
  %v2196 = vunpack.c.h.b16 %v2042
  %v2197 = vunpack.c.l.b16 %v2043
  %v2198 = vunpack.c.h.b16 %v2043
  %v2199 = vunpack.c.l.b16 %v2044
  %v2200 = vunpack.c.h.b16 %v2044
  %v2201 = vunpack.c.l.b16 %v2045
  %v2202 = vunpack.c.h.b16 %v2045
  %v2203 = vunpack.c.l.b16 %v2046
  %v2204 = vunpack.c.h.b16 %v2046
  %v2205 = vunpack.c.l.b16 %v2047
  %v2206 = vunpack.c.h.b16 %v2047
  %v2207 = vunpack.c.l.b16 %v2048
  %v2208 = vunpack.c.h.b16 %v2048
  %v2209 = vunpack.c.l.b16 %v2049
  %v2210 = vunpack.c.h.b16 %v2049
  %v2211 = vunpack.c.l.b16 %v2050
  %v2212 = vunpack.c.h.b16 %v2050
  %v2213 = vunpack.c.l.b16 %v2051
  %v2214 = vunpack.c.h.b16 %v2051
  %v2215 = vunpack.c.l.b16 %v2052
  %v2216 = vunpack.c.h.b16 %v2052
  %v2217 = vunpack.c.l.b16 %v2053
  %v2218 = vunpack.c.h.b16 %v2053
  %v2219 = vunpack.c.l.b16 %v2054
  %v2220 = vunpack.c.h.b16 %v2054
  %v2221 = vunpack.c.l.b16 %v2055
  %v2222 = vunpack.c.h.b16 %v2055
  %v2223 = vunpack.c.l.b16 %v2056
  %v2224 = vunpack.c.h.b16 %v2056
  %v2225 = vunpack.c.l.b16 %v2057
  %v2226 = vunpack.c.h.b16 %v2057
  %v2227 = vunpack.c.l.b16 %v2058
  %v2228 = vunpack.c.h.b16 %v2058
  %v2229 = vunpack.c.l.b16 %v2059
  %v2230 = vunpack.c.h.b16 %v2059
  %v2231 = vunpack.c.l.b16 %v2060
  %v2232 = vunpack.c.h.b16 %v2060
  %v2233 = vunpack.c.l.b16 %v2061
  %v2234 = vunpack.c.h.b16 %v2061
  %v2235 = vunpack.c.l.b16 %v2062
  %v2236 = vunpack.c.h.b16 %v2062
  %v2237 = vunpack.c.l.b16 %v2063
  %v2238 = vunpack.c.h.b16 %v2063
  %v2239 = vunpack.c.l.b16 %v2064
  %v2240 = vunpack.c.h.b16 %v2064
  %v2241 = vunpack.c.l.b16 %v2065
  %v2242 = vunpack.c.h.b16 %v2065
  %v2243 = vunpack.c.l.b16 %v2066
  %v2244 = vunpack.c.h.b16 %v2066
  %v2245 = vunpack.c.l.b16 %v2067
  %v2246 = vunpack.c.h.b16 %v2067
  %v2247 = vunpack.c.l.b16 %v2068
  %v2248 = vunpack.c.h.b16 %v2068
  %v2249 = vunpack.c.l.b16 %v2069
  %v2250 = vunpack.c.h.b16 %v2069
  %v2251 = vunpack.c.l.b16 %v2070
  %v2252 = vunpack.c.h.b16 %v2070
  %v2253 = vunpack.c.l.b16 %v2071
  %v2254 = vunpack.c.h.b16 %v2071
  %v2255 = vunpack.c.l.b16 %v2072
  %v2256 = vunpack.c.h.b16 %v2072
  %v2257 = vunpack.c.l.b16 %v2073
  %v2258 = vunpack.c.h.b16 %v2073
  %v2259 = vunpack.c.l.b16 %v2074
  %v2260 = vunpack.c.h.b16 %v2074
  %v2261 = vunpack.c.l.b16 %v2075
  %v2262 = vunpack.c.h.b16 %v2075
  %v2263 = vunpack.c.l.b16 %v2076
  %v2264 = vunpack.c.h.b16 %v2076
  %v2265 = vunpack.c.l.b16 %v2077
  %v2266 = vunpack.c.h.b16 %v2077
  %v2267 = vunpack.c.l.b16 %v2078
  %v2268 = vunpack.c.h.b16 %v2078
  %v2269 = vunpack.c.l.b16 %v2079
  %v2270 = vunpack.c.h.b16 %v2079
  %v2271 = vunpack.c.l.b16 %v2080
  %v2272 = vunpack.c.h.b16 %v2080
  %v2273 = vpack.c.b16 %v2149, %v2145
  %v2274 = vpack.c.b16 %v2150, %v2146
  %v2275 = vpack.c.b16 %v2151, %v2147
  %v2276 = vpack.c.b16 %v2152, %v2148
  %v2277 = vpack.c.b16 %v2157, %v2153
  %v2278 = vpack.c.b16 %v2158, %v2154
  %v2279 = vpack.c.b16 %v2159, %v2155
  %v2280 = vpack.c.b16 %v2160, %v2156
  %v2281 = vpack.c.b16 %v2165, %v2161
  %v2282 = vpack.c.b16 %v2166, %v2162
  %v2283 = vpack.c.b16 %v2167, %v2163
  %v2284 = vpack.c.b16 %v2168, %v2164
  %v2285 = vpack.c.b16 %v2173, %v2169
  %v2286 = vpack.c.b16 %v2174, %v2170
  %v2287 = vpack.c.b16 %v2175, %v2171
  %v2288 = vpack.c.b16 %v2176, %v2172
  %v2289 = vpack.c.b16 %v2181, %v2177
  %v2290 = vpack.c.b16 %v2182, %v2178
  %v2291 = vpack.c.b16 %v2183, %v2179
  %v2292 = vpack.c.b16 %v2184, %v2180
  %v2293 = vpack.c.b16 %v2189, %v2185
  %v2294 = vpack.c.b16 %v2190, %v2186
  %v2295 = vpack.c.b16 %v2191, %v2187
  %v2296 = vpack.c.b16 %v2192, %v2188
  %v2297 = vpack.c.b16 %v2197, %v2193
  %v2298 = vpack.c.b16 %v2198, %v2194
  %v2299 = vpack.c.b16 %v2199, %v2195
  %v2300 = vpack.c.b16 %v2200, %v2196
  %v2301 = vpack.c.b16 %v2205, %v2201
  %v2302 = vpack.c.b16 %v2206, %v2202
  %v2303 = vpack.c.b16 %v2207, %v2203
  %v2304 = vpack.c.b16 %v2208, %v2204
  %v2305 = vpack.c.b16 %v2213, %v2209
  %v2306 = vpack.c.b16 %v2214, %v2210
  %v2307 = vpack.c.b16 %v2215, %v2211
  %v2308 = vpack.c.b16 %v2216, %v2212
  %v2309 = vpack.c.b16 %v2221, %v2217
  %v2310 = vpack.c.b16 %v2222, %v2218
  %v2311 = vpack.c.b16 %v2223, %v2219
  %v2312 = vpack.c.b16 %v2224, %v2220
  %v2313 = vpack.c.b16 %v2229, %v2225
  %v2314 = vpack.c.b16 %v2230, %v2226
  %v2315 = vpack.c.b16 %v2231, %v2227
  %v2316 = vpack.c.b16 %v2232, %v2228
  %v2317 = vpack.c.b16 %v2237, %v2233
  %v2318 = vpack.c.b16 %v2238, %v2234
  %v2319 = vpack.c.b16 %v2239, %v2235
  %v2320 = vpack.c.b16 %v2240, %v2236
  %v2321 = vpack.c.b16 %v2245, %v2241
  %v2322 = vpack.c.b16 %v2246, %v2242
  %v2323 = vpack.c.b16 %v2247, %v2243
  %v2324 = vpack.c.b16 %v2248, %v2244
  %v2325 = vpack.c.b16 %v2253, %v2249
  %v2326 = vpack.c.b16 %v2254, %v2250
  %v2327 = vpack.c.b16 %v2255, %v2251
  %v2328 = vpack.c.b16 %v2256, %v2252
  %v2329 = vpack.c.b16 %v2261, %v2257
  %v2330 = vpack.c.b16 %v2262, %v2258
  %v2331 = vpack.c.b16 %v2263, %v2259
  %v2332 = vpack.c.b16 %v2264, %v2260
  %v2333 = vpack.c.b16 %v2269, %v2265
  %v2334 = vpack.c.b16 %v2270, %v2266
  %v2335 = vpack.c.b16 %v2271, %v2267
  %v2336 = vpack.c.b16 %v2272, %v2268
  %2401 = vmatprep.subr.bf16.mxu0 %v2302
  %2402 = vmatpush1.bf16.msra.mxu0 %v2301
  %2403 = vmatprep.subr.bf16.mxu0 %v2298
  %2404 = vmatpush1.bf16.msra.mxu0 %v2297
  %2405 = vmatprep.subr.bf16.mxu0 %v2294
  %2406 = vmatpush1.bf16.msra.mxu0 %v2293
  %2407 = vmatprep.subr.bf16.mxu0 %v2290
  %2408 = vmatpush1.bf16.msra.mxu0 %v2289
  %2409 = vmatprep.subr.bf16.mxu0 %v2286
  %2410 = vmatpush1.bf16.msra.mxu0 %v2285
  %2411 = vmatprep.subr.bf16.mxu0 %v2282
  %2412 = vmatpush1.bf16.msra.mxu0 %v2281
  %2413 = vmatprep.subr.bf16.mxu0 %v2278
  %2414 = vmatpush1.bf16.msra.mxu0 %v2277
  %2415 = vmatprep.subr.bf16.mxu0 %v2274
  %2416 = vmatpush1.bf16.msra.mxu0 %v2273
  %2417 = vmatprep.subr.bf16.mxu0 %v2334
  %2418 = vmatpush2.bf16.msra.mxu0 %v2333
  %2419 = vmatprep.subr.bf16.mxu0 %v2330
  %2420 = vmatpush2.bf16.msra.mxu0 %v2329
  %2421 = vmatprep.subr.bf16.mxu0 %v2326
  %2422 = vmatpush2.bf16.msra.mxu0 %v2325
  %2423 = vmatprep.subr.bf16.mxu0 %v2322
  %2424 = vmatpush2.bf16.msra.mxu0 %v2321
  %2425 = vmatprep.subr.bf16.mxu0 %v2318
  %2426 = vmatpush2.bf16.msra.mxu0 %v2317
  %2427 = vmatprep.subr.bf16.mxu0 %v2314
  %2428 = vmatpush2.bf16.msra.mxu0 %v2313
  %2429 = vmatprep.subr.bf16.mxu0 %v2310
  %2430 = vmatpush2.bf16.msra.mxu0 %v2309
  %2431 = vmatprep.subr.bf16.mxu0 %v2306
  %2432 = vmatpush2.bf16.msra.mxu0 %v2305
  %2433 = vmatprep.mubr.bf16.mxu0 %v2016
  %2434 = vmatmul.mubr.bf16.gmra.mxu0 %v2015
  %v2435 = vpop.f32.mrf.mxu0
  %v2436 = vadd.f32 %v23, %v2435
  %v2437 = vpop.f32.mrf.mxu0
  %v2438 = vadd.f32 %v27, %v2437
  %v2439 = vpop.f32.mrf.mxu0
  %v2440 = vpop.f32.mrf.mxu0
  %2441 = vdwg.mxu0
  %2442 = vmatprep.subr.bf16.mxu0 %v2304
  %2443 = vmatpush1.bf16.msra.mxu0 %v2303
  %2444 = vmatprep.subr.bf16.mxu0 %v2300
  %2445 = vmatpush1.bf16.msra.mxu0 %v2299
  %2446 = vmatprep.subr.bf16.mxu0 %v2296
  %2447 = vmatpush1.bf16.msra.mxu0 %v2295
  %2448 = vmatprep.subr.bf16.mxu0 %v2292
  %2449 = vmatpush1.bf16.msra.mxu0 %v2291
  %2450 = vmatprep.subr.bf16.mxu0 %v2288
  %2451 = vmatpush1.bf16.msra.mxu0 %v2287
  %2452 = vmatprep.subr.bf16.mxu0 %v2284
  %2453 = vmatpush1.bf16.msra.mxu0 %v2283
  %2454 = vmatprep.subr.bf16.mxu0 %v2280
  %2455 = vmatpush1.bf16.msra.mxu0 %v2279
  %2456 = vmatprep.subr.bf16.mxu0 %v2276
  %2457 = vmatpush1.bf16.msra.mxu0 %v2275
  %2458 = vmatprep.subr.bf16.mxu0 %v2336
  %2459 = vmatpush2.bf16.msra.mxu0 %v2335
  %2460 = vmatprep.subr.bf16.mxu0 %v2332
  %2461 = vmatpush2.bf16.msra.mxu0 %v2331
  %2462 = vmatprep.subr.bf16.mxu0 %v2328
  %2463 = vmatpush2.bf16.msra.mxu0 %v2327
  %2464 = vmatprep.subr.bf16.mxu0 %v2324
  %2465 = vmatpush2.bf16.msra.mxu0 %v2323
  %2466 = vmatprep.subr.bf16.mxu0 %v2320
  %2467 = vmatpush2.bf16.msra.mxu0 %v2319
  %2468 = vmatprep.subr.bf16.mxu0 %v2316
  %2469 = vmatpush2.bf16.msra.mxu0 %v2315
  %2470 = vmatprep.subr.bf16.mxu0 %v2312
  %2471 = vmatpush2.bf16.msra.mxu0 %v2311
  %2472 = vmatprep.subr.bf16.mxu0 %v2308
  %2473 = vmatpush2.bf16.msra.mxu0 %v2307
  %2474 = vmatprep.mubr.bf16.mxu0 %v2016
  %2475 = vmatmul.mubr.bf16.gmra.mxu0 %v2015
  %v2476 = vpop.f32.mrf.mxu0
  %v2477 = vadd.f32 %v31, %v2476
  %v2478 = vpop.f32.mrf.mxu0
  %v2479 = vadd.f32 %v35, %v2478
  %v2480 = vpop.f32.mrf.mxu0
  %v2481 = vpop.f32.mrf.mxu0
  %2482 = vdwg.mxu0
  %v2483 = vxor.u32 %v2436, 2147483648
  %v2484 = vmul.f32 %v2483, 1.442695
  %v2485 = vpow.pop %v2484
  %v2486 = vadd.f32 %v2485, 1.0
  %v2487 = vrcp.pop %v2486
  %v2488 = vmul.f32 1.0, %v2487
  %v2489 = vxor.u32 %v2438, 2147483648
  %v2490 = vmul.f32 %v2489, 1.442695
  %v2491 = vpow.pop %v2490
  %v2492 = vadd.f32 %v2491, 1.0
  %v2493 = vrcp.pop %v2492
  %v2494 = vmul.f32 1.0, %v2493
  %v2495 = vtanh.pop %v2477
  %v2496 = vxor.u32 %v2479, 2147483648
  %v2497 = vmul.f32 %v2496, 1.442695
  %v2498 = vpow.pop %v2497
  %v2499 = vadd.f32 %v2498, 1.0
  %v2500 = vrcp.pop %v2499
  %v2501 = vmul.f32 1.0, %v2500
  %v2502 = vmul.f32 %v2494, %v1680
  %v2503 = vmul.f32 %v2488, %v2495
  %v2504 = vadd.f32 %v2502, %v2503
  %v2505 = vtanh.pop %v2504
  %v2506 = vmul.f32 %v2501, %v2505
  %s2507 = scalar_lea.vmem %s4, 4
  %2508 = vst [vmem:[%s2507] sm:$0x3] %v2506
  %s2509 = scalar_lea.vmem %s0, 24
  %v2510 = vld [vmem:[%s2509] sm:$0xff]
  %v2511 = vld [vmem:[%s1] sm:$0xff]
  %v2512 = vld [vmem:[%s1 + $0x8] sm:$0xff]
  %v2513 = vld [vmem:[%s1 + $0x10] sm:$0xff]
  %v2514 = vld [vmem:[%s1 + $0x18] sm:$0xff]
  %v2515 = vld [vmem:[%s1 + $0x20] sm:$0xff]
  %v2516 = vld [vmem:[%s1 + $0x28] sm:$0xff]
  %v2517 = vld [vmem:[%s1 + $0x30] sm:$0xff]
  %v2518 = vld [vmem:[%s1 + $0x38] sm:$0xff]
  %v2519 = vld [vmem:[%s1 + $0x40] sm:$0xff]
  %v2520 = vld [vmem:[%s1 + $0x48] sm:$0xff]
  %v2521 = vld [vmem:[%s1 + $0x50] sm:$0xff]
  %v2522 = vld [vmem:[%s1 + $0x58] sm:$0xff]
  %v2523 = vld [vmem:[%s1 + $0x60] sm:$0xff]
  %v2524 = vld [vmem:[%s1 + $0x68] sm:$0xff]
  %v2525 = vld [vmem:[%s1 + $0x70] sm:$0xff]
  %v2526 = vld [vmem:[%s1 + $0x78] sm:$0xff]
  %v2527 = vld [vmem:[%s1 + $0x80] sm:$0xff]
  %v2528 = vld [vmem:[%s1 + $0x88] sm:$0xff]
  %v2529 = vld [vmem:[%s1 + $0x90] sm:$0xff]
  %v2530 = vld [vmem:[%s1 + $0x98] sm:$0xff]
  %v2531 = vld [vmem:[%s1 + $0xa0] sm:$0xff]
  %v2532 = vld [vmem:[%s1 + $0xa8] sm:$0xff]
  %v2533 = vld [vmem:[%s1 + $0xb0] sm:$0xff]
  %v2534 = vld [vmem:[%s1 + $0xb8] sm:$0xff]
  %v2535 = vld [vmem:[%s1 + $0xc0] sm:$0xff]
  %v2536 = vld [vmem:[%s1 + $0xc8] sm:$0xff]
  %v2537 = vld [vmem:[%s1 + $0xd0] sm:$0xff]
  %v2538 = vld [vmem:[%s1 + $0xd8] sm:$0xff]
  %v2539 = vld [vmem:[%s1 + $0xe0] sm:$0xff]
  %v2540 = vld [vmem:[%s1 + $0xe8] sm:$0xff]
  %v2541 = vld [vmem:[%s1 + $0xf0] sm:$0xff]
  %v2542 = vld [vmem:[%s1 + $0xf8] sm:$0xff]
  %v2575 = vunpack.c.l.b16 %v2511
  %v2576 = vunpack.c.h.b16 %v2511
  %v2577 = vunpack.c.l.b16 %v2512
  %v2578 = vunpack.c.h.b16 %v2512
  %v2579 = vunpack.c.l.b16 %v2513
  %v2580 = vunpack.c.h.b16 %v2513
  %v2581 = vunpack.c.l.b16 %v2514
  %v2582 = vunpack.c.h.b16 %v2514
  %v2583 = vunpack.c.l.b16 %v2515
  %v2584 = vunpack.c.h.b16 %v2515
  %v2585 = vunpack.c.l.b16 %v2516
  %v2586 = vunpack.c.h.b16 %v2516
  %v2587 = vunpack.c.l.b16 %v2517
  %v2588 = vunpack.c.h.b16 %v2517
  %v2589 = vunpack.c.l.b16 %v2518
  %v2590 = vunpack.c.h.b16 %v2518
  %v2591 = vunpack.c.l.b16 %v2519
  %v2592 = vunpack.c.h.b16 %v2519
  %v2593 = vunpack.c.l.b16 %v2520
  %v2594 = vunpack.c.h.b16 %v2520
  %v2595 = vunpack.c.l.b16 %v2521
  %v2596 = vunpack.c.h.b16 %v2521
  %v2597 = vunpack.c.l.b16 %v2522
  %v2598 = vunpack.c.h.b16 %v2522
  %v2599 = vunpack.c.l.b16 %v2523
  %v2600 = vunpack.c.h.b16 %v2523
  %v2601 = vunpack.c.l.b16 %v2524
  %v2602 = vunpack.c.h.b16 %v2524
  %v2603 = vunpack.c.l.b16 %v2525
  %v2604 = vunpack.c.h.b16 %v2525
  %v2605 = vunpack.c.l.b16 %v2526
  %v2606 = vunpack.c.h.b16 %v2526
  %v2607 = vunpack.c.l.b16 %v2527
  %v2608 = vunpack.c.h.b16 %v2527
  %v2609 = vunpack.c.l.b16 %v2528
  %v2610 = vunpack.c.h.b16 %v2528
  %v2611 = vunpack.c.l.b16 %v2529
  %v2612 = vunpack.c.h.b16 %v2529
  %v2613 = vunpack.c.l.b16 %v2530
  %v2614 = vunpack.c.h.b16 %v2530
  %v2615 = vunpack.c.l.b16 %v2531
  %v2616 = vunpack.c.h.b16 %v2531
  %v2617 = vunpack.c.l.b16 %v2532
  %v2618 = vunpack.c.h.b16 %v2532
  %v2619 = vunpack.c.l.b16 %v2533
  %v2620 = vunpack.c.h.b16 %v2533
  %v2621 = vunpack.c.l.b16 %v2534
  %v2622 = vunpack.c.h.b16 %v2534
  %v2623 = vunpack.c.l.b16 %v2535
  %v2624 = vunpack.c.h.b16 %v2535
  %v2625 = vunpack.c.l.b16 %v2536
  %v2626 = vunpack.c.h.b16 %v2536
  %v2627 = vunpack.c.l.b16 %v2537
  %v2628 = vunpack.c.h.b16 %v2537
  %v2629 = vunpack.c.l.b16 %v2538
  %v2630 = vunpack.c.h.b16 %v2538
  %v2631 = vunpack.c.l.b16 %v2539
  %v2632 = vunpack.c.h.b16 %v2539
  %v2633 = vunpack.c.l.b16 %v2540
  %v2634 = vunpack.c.h.b16 %v2540
  %v2635 = vunpack.c.l.b16 %v2541
  %v2636 = vunpack.c.h.b16 %v2541
  %v2637 = vunpack.c.l.b16 %v2542
  %v2638 = vunpack.c.h.b16 %v2542
  %v2639 = vpack.c.b16 %v2579, %v2575
  %v2640 = vpack.c.b16 %v2580, %v2576
  %v2641 = vpack.c.b16 %v2581, %v2577
  %v2642 = vpack.c.b16 %v2582, %v2578
  %v2643 = vpack.c.b16 %v2587, %v2583
  %v2644 = vpack.c.b16 %v2588, %v2584
  %v2645 = vpack.c.b16 %v2589, %v2585
  %v2646 = vpack.c.b16 %v2590, %v2586
  %v2647 = vpack.c.b16 %v2595, %v2591
  %v2648 = vpack.c.b16 %v2596, %v2592
  %v2649 = vpack.c.b16 %v2597, %v2593
  %v2650 = vpack.c.b16 %v2598, %v2594
  %v2651 = vpack.c.b16 %v2603, %v2599
  %v2652 = vpack.c.b16 %v2604, %v2600
  %v2653 = vpack.c.b16 %v2605, %v2601
  %v2654 = vpack.c.b16 %v2606, %v2602
  %v2655 = vpack.c.b16 %v2611, %v2607
  %v2656 = vpack.c.b16 %v2612, %v2608
  %v2657 = vpack.c.b16 %v2613, %v2609
  %v2658 = vpack.c.b16 %v2614, %v2610
  %v2659 = vpack.c.b16 %v2619, %v2615
  %v2660 = vpack.c.b16 %v2620, %v2616
  %v2661 = vpack.c.b16 %v2621, %v2617
  %v2662 = vpack.c.b16 %v2622, %v2618
  %v2663 = vpack.c.b16 %v2627, %v2623
  %v2664 = vpack.c.b16 %v2628, %v2624
  %v2665 = vpack.c.b16 %v2629, %v2625
  %v2666 = vpack.c.b16 %v2630, %v2626
  %v2667 = vpack.c.b16 %v2635, %v2631
  %v2668 = vpack.c.b16 %v2636, %v2632
  %v2669 = vpack.c.b16 %v2637, %v2633
  %v2670 = vpack.c.b16 %v2638, %v2634
  %2703 = vmatprep.subr.bf16.mxu0 %v2668
  %2704 = vmatpush1.bf16.msra.mxu0 %v2667
  %2705 = vmatprep.subr.bf16.mxu0 %v2664
  %2706 = vmatpush1.bf16.msra.mxu0 %v2663
  %2707 = vmatprep.subr.bf16.mxu0 %v2660
  %2708 = vmatpush1.bf16.msra.mxu0 %v2659
  %2709 = vmatprep.subr.bf16.mxu0 %v2656
  %2710 = vmatpush1.bf16.msra.mxu0 %v2655
  %2711 = vmatprep.subr.bf16.mxu0 %v2652
  %2712 = vmatpush1.bf16.msra.mxu0 %v2651
  %2713 = vmatprep.subr.bf16.mxu0 %v2648
  %2714 = vmatpush1.bf16.msra.mxu0 %v2647
  %2715 = vmatprep.subr.bf16.mxu0 %v2644
  %2716 = vmatpush1.bf16.msra.mxu0 %v2643
  %2717 = vmatprep.subr.bf16.mxu0 %v2640
  %2718 = vmatpush1.bf16.msra.mxu0 %v2639
  %2719 = vmatprep.subr.bf16.mxu0 0
  %2720 = vmatpush2.bf16.msra.mxu0 0
  %2721 = vmatprep.subr.bf16.mxu0 0
  %2722 = vmatpush2.bf16.msra.mxu0 0
  %2723 = vmatprep.subr.bf16.mxu0 0
  %2724 = vmatpush2.bf16.msra.mxu0 0
  %2725 = vmatprep.subr.bf16.mxu0 0
  %2726 = vmatpush2.bf16.msra.mxu0 0
  %2727 = vmatprep.subr.bf16.mxu0 0
  %2728 = vmatpush2.bf16.msra.mxu0 0
  %2729 = vmatprep.subr.bf16.mxu0 0
  %2730 = vmatpush2.bf16.msra.mxu0 0
  %2731 = vmatprep.subr.bf16.mxu0 0
  %2732 = vmatpush2.bf16.msra.mxu0 0
  %2733 = vmatprep.subr.bf16.mxu0 0
  %2734 = vmatpush2.bf16.msra.mxu0 0
  %2735 = vmatprep.mubr.bf16.mxu0 0
  %2736 = vmatmul.mubr.bf16.gmra.mxu0 %v2015
  %v2737 = vpop.f32.mrf.mxu0
  %v2738 = vadd.f32 0.0, %v2737
  %v2739 = vpop.f32.mrf.mxu0
  %v2740 = vadd.f32 0.0, %v2739
  %v2741 = vpop.f32.mrf.mxu0
  %v2742 = vpop.f32.mrf.mxu0
  %2743 = vdwg.mxu0
  %2744 = vmatprep.subr.bf16.mxu0 %v2670
  %2745 = vmatpush1.bf16.msra.mxu0 %v2669
  %2746 = vmatprep.subr.bf16.mxu0 %v2666
  %2747 = vmatpush1.bf16.msra.mxu0 %v2665
  %2748 = vmatprep.subr.bf16.mxu0 %v2662
  %2749 = vmatpush1.bf16.msra.mxu0 %v2661
  %2750 = vmatprep.subr.bf16.mxu0 %v2658
  %2751 = vmatpush1.bf16.msra.mxu0 %v2657
  %2752 = vmatprep.subr.bf16.mxu0 %v2654
  %2753 = vmatpush1.bf16.msra.mxu0 %v2653
  %2754 = vmatprep.subr.bf16.mxu0 %v2650
  %2755 = vmatpush1.bf16.msra.mxu0 %v2649
  %2756 = vmatprep.subr.bf16.mxu0 %v2646
  %2757 = vmatpush1.bf16.msra.mxu0 %v2645
  %2758 = vmatprep.subr.bf16.mxu0 %v2642
  %2759 = vmatpush1.bf16.msra.mxu0 %v2641
  %2760 = vmatprep.subr.bf16.mxu0 0
  %2761 = vmatpush2.bf16.msra.mxu0 0
  %2762 = vmatprep.subr.bf16.mxu0 0
  %2763 = vmatpush2.bf16.msra.mxu0 0
  %2764 = vmatprep.subr.bf16.mxu0 0
  %2765 = vmatpush2.bf16.msra.mxu0 0
  %2766 = vmatprep.subr.bf16.mxu0 0
  %2767 = vmatpush2.bf16.msra.mxu0 0
  %2768 = vmatprep.subr.bf16.mxu0 0
  %2769 = vmatpush2.bf16.msra.mxu0 0
  %2770 = vmatprep.subr.bf16.mxu0 0
  %2771 = vmatpush2.bf16.msra.mxu0 0
  %2772 = vmatprep.subr.bf16.mxu0 0
  %2773 = vmatpush2.bf16.msra.mxu0 0
  %2774 = vmatprep.subr.bf16.mxu0 0
  %2775 = vmatpush2.bf16.msra.mxu0 0
  %2776 = vmatprep.mubr.bf16.mxu0 0
  %2777 = vmatmul.mubr.bf16.gmra.mxu0 %v2015
  %v2778 = vpop.f32.mrf.mxu0
  %v2779 = vadd.f32 0.0, %v2778
  %v2780 = vpop.f32.mrf.mxu0
  %v2781 = vadd.f32 0.0, %v2780
  %v2782 = vpop.f32.mrf.mxu0
  %v2783 = vpop.f32.mrf.mxu0
  %2784 = vdwg.mxu0
  %v2789 = vcombine.low %v2738, %v2740
  %v2790 = vcombine.low %v2779, %v2781
  %v2792 = vunpack.c.l.s4 1983009808
  %v2793 = vunpack.c.0.s8 %v2792
  %v2794 = vlaneseq
  %v2795 = vshrl.u32 %v2794, 7
  %v2796 = vsub.s32 %v2793, %v2795
  %v2797 = vrot.slane %v2789, %v2796
  %v2799 = vunpack.c.l.s4 1983009808
  %v2800 = vunpack.c.0.s8 %v2799
  %v2801 = vlaneseq
  %v2802 = vshrl.u32 %v2801, 7
  %v2803 = vsub.s32 %v2800, %v2802
  %v2804 = vrot.slane %v2790, %v2803
  %v2805 = vcombine.low %v2797, %v2804
  %v2807 = vadd.f32 %v2510, %v2805
  %v2808 = vxor.u32 %v2807, 2147483648
  %v2809 = vmul.f32 %v2808, 1.442695
  %v2810 = vpow.pop %v2809
  %v2811 = vadd.f32 %v2810, 1.0
  %v2812 = vrcp.pop %v2811
  %v2813 = vmul.f32 1.0, %v2812
  %v2815 = vrot.slane %v2807, 2
  %v2817 = vxor.u32 %v2815, 2147483648
  %v2818 = vmul.f32 %v2817, 1.442695
  %v2819 = vpow.pop %v2818
  %v2820 = vadd.f32 %v2819, 1.0
  %v2821 = vrcp.pop %v2820
  %v2822 = vmul.f32 1.0, %v2821
  %v2823 = vrot.slane %v2807, 4
  %v2825 = vtanh.pop %v2823
  %v2826 = vrot.slane %v2807, 6
  %v2828 = vxor.u32 %v2826, 2147483648
  %v2829 = vmul.f32 %v2828, 1.442695
  %v2830 = vpow.pop %v2829
  %v2831 = vadd.f32 %v2830, 1.0
  %v2832 = vrcp.pop %v2831
  %v2833 = vmul.f32 1.0, %v2832
  %v2834 = vmul.f32 %v2822, %v2012
  %v2835 = vmul.f32 %v2813, %v2825
  %v2836 = vadd.f32 %v2834, %v2835
  %v2837 = vtanh.pop %v2836
  %v2838 = vmul.f32 %v2833, %v2837
  %v2839 = vpack.c.bf16 %v2838, %v2838
  %v2840 = vpack.c.bf16 %v2506, %v2506
  %v2841 = vld [vmem:[%s2] sm:$0xff]
  %v2842 = vld [vmem:[%s2 + $0x8] sm:$0xff]
  %v2843 = vld [vmem:[%s2 + $0x10] sm:$0xff]
  %v2844 = vld [vmem:[%s2 + $0x18] sm:$0xff]
  %v2845 = vld [vmem:[%s2 + $0x20] sm:$0xff]
  %v2846 = vld [vmem:[%s2 + $0x28] sm:$0xff]
  %v2847 = vld [vmem:[%s2 + $0x30] sm:$0xff]
  %v2848 = vld [vmem:[%s2 + $0x38] sm:$0xff]
  %v2849 = vld [vmem:[%s2 + $0x40] sm:$0xff]
  %v2850 = vld [vmem:[%s2 + $0x48] sm:$0xff]
  %v2851 = vld [vmem:[%s2 + $0x50] sm:$0xff]
  %v2852 = vld [vmem:[%s2 + $0x58] sm:$0xff]
  %v2853 = vld [vmem:[%s2 + $0x60] sm:$0xff]
  %v2854 = vld [vmem:[%s2 + $0x68] sm:$0xff]
  %v2855 = vld [vmem:[%s2 + $0x70] sm:$0xff]
  %v2856 = vld [vmem:[%s2 + $0x78] sm:$0xff]
  %v2857 = vld [vmem:[%s2 + $0x80] sm:$0xff]
  %v2858 = vld [vmem:[%s2 + $0x88] sm:$0xff]
  %v2859 = vld [vmem:[%s2 + $0x90] sm:$0xff]
  %v2860 = vld [vmem:[%s2 + $0x98] sm:$0xff]
  %v2861 = vld [vmem:[%s2 + $0xa0] sm:$0xff]
  %v2862 = vld [vmem:[%s2 + $0xa8] sm:$0xff]
  %v2863 = vld [vmem:[%s2 + $0xb0] sm:$0xff]
  %v2864 = vld [vmem:[%s2 + $0xb8] sm:$0xff]
  %v2865 = vld [vmem:[%s2 + $0xc0] sm:$0xff]
  %v2866 = vld [vmem:[%s2 + $0xc8] sm:$0xff]
  %v2867 = vld [vmem:[%s2 + $0xd0] sm:$0xff]
  %v2868 = vld [vmem:[%s2 + $0xd8] sm:$0xff]
  %v2869 = vld [vmem:[%s2 + $0xe0] sm:$0xff]
  %v2870 = vld [vmem:[%s2 + $0xe8] sm:$0xff]
  %v2871 = vld [vmem:[%s2 + $0xf0] sm:$0xff]
  %v2872 = vld [vmem:[%s2 + $0xf8] sm:$0xff]
  %v2873 = vld [vmem:[%s2 + $0x100] sm:$0xff]
  %v2874 = vld [vmem:[%s2 + $0x108] sm:$0xff]
  %v2875 = vld [vmem:[%s2 + $0x110] sm:$0xff]
  %v2876 = vld [vmem:[%s2 + $0x118] sm:$0xff]
  %v2877 = vld [vmem:[%s2 + $0x120] sm:$0xff]
  %v2878 = vld [vmem:[%s2 + $0x128] sm:$0xff]
  %v2879 = vld [vmem:[%s2 + $0x130] sm:$0xff]
  %v2880 = vld [vmem:[%s2 + $0x138] sm:$0xff]
  %v2881 = vld [vmem:[%s2 + $0x140] sm:$0xff]
  %v2882 = vld [vmem:[%s2 + $0x148] sm:$0xff]
  %v2883 = vld [vmem:[%s2 + $0x150] sm:$0xff]
  %v2884 = vld [vmem:[%s2 + $0x158] sm:$0xff]
  %v2885 = vld [vmem:[%s2 + $0x160] sm:$0xff]
  %v2886 = vld [vmem:[%s2 + $0x168] sm:$0xff]
  %v2887 = vld [vmem:[%s2 + $0x170] sm:$0xff]
  %v2888 = vld [vmem:[%s2 + $0x178] sm:$0xff]
  %v2889 = vld [vmem:[%s2 + $0x180] sm:$0xff]
  %v2890 = vld [vmem:[%s2 + $0x188] sm:$0xff]
  %v2891 = vld [vmem:[%s2 + $0x190] sm:$0xff]
  %v2892 = vld [vmem:[%s2 + $0x198] sm:$0xff]
  %v2893 = vld [vmem:[%s2 + $0x1a0] sm:$0xff]
  %v2894 = vld [vmem:[%s2 + $0x1a8] sm:$0xff]
  %v2895 = vld [vmem:[%s2 + $0x1b0] sm:$0xff]
  %v2896 = vld [vmem:[%s2 + $0x1b8] sm:$0xff]
  %v2897 = vld [vmem:[%s2 + $0x1c0] sm:$0xff]
  %v2898 = vld [vmem:[%s2 + $0x1c8] sm:$0xff]
  %v2899 = vld [vmem:[%s2 + $0x1d0] sm:$0xff]
  %v2900 = vld [vmem:[%s2 + $0x1d8] sm:$0xff]
  %v2901 = vld [vmem:[%s2 + $0x1e0] sm:$0xff]
  %v2902 = vld [vmem:[%s2 + $0x1e8] sm:$0xff]
  %v2903 = vld [vmem:[%s2 + $0x1f0] sm:$0xff]
  %v2904 = vld [vmem:[%s2 + $0x1f8] sm:$0xff]
  %v2969 = vunpack.c.l.b16 %v2841
  %v2970 = vunpack.c.h.b16 %v2841
  %v2971 = vunpack.c.l.b16 %v2842
  %v2972 = vunpack.c.h.b16 %v2842
  %v2973 = vunpack.c.l.b16 %v2843
  %v2974 = vunpack.c.h.b16 %v2843
  %v2975 = vunpack.c.l.b16 %v2844
  %v2976 = vunpack.c.h.b16 %v2844
  %v2977 = vunpack.c.l.b16 %v2845
  %v2978 = vunpack.c.h.b16 %v2845
  %v2979 = vunpack.c.l.b16 %v2846
  %v2980 = vunpack.c.h.b16 %v2846
  %v2981 = vunpack.c.l.b16 %v2847
  %v2982 = vunpack.c.h.b16 %v2847
  %v2983 = vunpack.c.l.b16 %v2848
  %v2984 = vunpack.c.h.b16 %v2848
  %v2985 = vunpack.c.l.b16 %v2849
  %v2986 = vunpack.c.h.b16 %v2849
  %v2987 = vunpack.c.l.b16 %v2850
  %v2988 = vunpack.c.h.b16 %v2850
  %v2989 = vunpack.c.l.b16 %v2851
  %v2990 = vunpack.c.h.b16 %v2851
  %v2991 = vunpack.c.l.b16 %v2852
  %v2992 = vunpack.c.h.b16 %v2852
  %v2993 = vunpack.c.l.b16 %v2853
  %v2994 = vunpack.c.h.b16 %v2853
  %v2995 = vunpack.c.l.b16 %v2854
  %v2996 = vunpack.c.h.b16 %v2854
  %v2997 = vunpack.c.l.b16 %v2855
  %v2998 = vunpack.c.h.b16 %v2855
  %v2999 = vunpack.c.l.b16 %v2856
  %v3000 = vunpack.c.h.b16 %v2856
  %v3001 = vunpack.c.l.b16 %v2857
  %v3002 = vunpack.c.h.b16 %v2857
  %v3003 = vunpack.c.l.b16 %v2858
  %v3004 = vunpack.c.h.b16 %v2858
  %v3005 = vunpack.c.l.b16 %v2859
  %v3006 = vunpack.c.h.b16 %v2859
  %v3007 = vunpack.c.l.b16 %v2860
  %v3008 = vunpack.c.h.b16 %v2860
  %v3009 = vunpack.c.l.b16 %v2861
  %v3010 = vunpack.c.h.b16 %v2861
  %v3011 = vunpack.c.l.b16 %v2862
  %v3012 = vunpack.c.h.b16 %v2862
  %v3013 = vunpack.c.l.b16 %v2863
  %v3014 = vunpack.c.h.b16 %v2863
  %v3015 = vunpack.c.l.b16 %v2864
  %v3016 = vunpack.c.h.b16 %v2864
  %v3017 = vunpack.c.l.b16 %v2865
  %v3018 = vunpack.c.h.b16 %v2865
  %v3019 = vunpack.c.l.b16 %v2866
  %v3020 = vunpack.c.h.b16 %v2866
  %v3021 = vunpack.c.l.b16 %v2867
  %v3022 = vunpack.c.h.b16 %v2867
  %v3023 = vunpack.c.l.b16 %v2868
  %v3024 = vunpack.c.h.b16 %v2868
  %v3025 = vunpack.c.l.b16 %v2869
  %v3026 = vunpack.c.h.b16 %v2869
  %v3027 = vunpack.c.l.b16 %v2870
  %v3028 = vunpack.c.h.b16 %v2870
  %v3029 = vunpack.c.l.b16 %v2871
  %v3030 = vunpack.c.h.b16 %v2871
  %v3031 = vunpack.c.l.b16 %v2872
  %v3032 = vunpack.c.h.b16 %v2872
  %v3033 = vunpack.c.l.b16 %v2873
  %v3034 = vunpack.c.h.b16 %v2873
  %v3035 = vunpack.c.l.b16 %v2874
  %v3036 = vunpack.c.h.b16 %v2874
  %v3037 = vunpack.c.l.b16 %v2875
  %v3038 = vunpack.c.h.b16 %v2875
  %v3039 = vunpack.c.l.b16 %v2876
  %v3040 = vunpack.c.h.b16 %v2876
  %v3041 = vunpack.c.l.b16 %v2877
  %v3042 = vunpack.c.h.b16 %v2877
  %v3043 = vunpack.c.l.b16 %v2878
  %v3044 = vunpack.c.h.b16 %v2878
  %v3045 = vunpack.c.l.b16 %v2879
  %v3046 = vunpack.c.h.b16 %v2879
  %v3047 = vunpack.c.l.b16 %v2880
  %v3048 = vunpack.c.h.b16 %v2880
  %v3049 = vunpack.c.l.b16 %v2881
  %v3050 = vunpack.c.h.b16 %v2881
  %v3051 = vunpack.c.l.b16 %v2882
  %v3052 = vunpack.c.h.b16 %v2882
  %v3053 = vunpack.c.l.b16 %v2883
  %v3054 = vunpack.c.h.b16 %v2883
  %v3055 = vunpack.c.l.b16 %v2884
  %v3056 = vunpack.c.h.b16 %v2884
  %v3057 = vunpack.c.l.b16 %v2885
  %v3058 = vunpack.c.h.b16 %v2885
  %v3059 = vunpack.c.l.b16 %v2886
  %v3060 = vunpack.c.h.b16 %v2886
  %v3061 = vunpack.c.l.b16 %v2887
  %v3062 = vunpack.c.h.b16 %v2887
  %v3063 = vunpack.c.l.b16 %v2888
  %v3064 = vunpack.c.h.b16 %v2888
  %v3065 = vunpack.c.l.b16 %v2889
  %v3066 = vunpack.c.h.b16 %v2889
  %v3067 = vunpack.c.l.b16 %v2890
  %v3068 = vunpack.c.h.b16 %v2890
  %v3069 = vunpack.c.l.b16 %v2891
  %v3070 = vunpack.c.h.b16 %v2891
  %v3071 = vunpack.c.l.b16 %v2892
  %v3072 = vunpack.c.h.b16 %v2892
  %v3073 = vunpack.c.l.b16 %v2893
  %v3074 = vunpack.c.h.b16 %v2893
  %v3075 = vunpack.c.l.b16 %v2894
  %v3076 = vunpack.c.h.b16 %v2894
  %v3077 = vunpack.c.l.b16 %v2895
  %v3078 = vunpack.c.h.b16 %v2895
  %v3079 = vunpack.c.l.b16 %v2896
  %v3080 = vunpack.c.h.b16 %v2896
  %v3081 = vunpack.c.l.b16 %v2897
  %v3082 = vunpack.c.h.b16 %v2897
  %v3083 = vunpack.c.l.b16 %v2898
  %v3084 = vunpack.c.h.b16 %v2898
  %v3085 = vunpack.c.l.b16 %v2899
  %v3086 = vunpack.c.h.b16 %v2899
  %v3087 = vunpack.c.l.b16 %v2900
  %v3088 = vunpack.c.h.b16 %v2900
  %v3089 = vunpack.c.l.b16 %v2901
  %v3090 = vunpack.c.h.b16 %v2901
  %v3091 = vunpack.c.l.b16 %v2902
  %v3092 = vunpack.c.h.b16 %v2902
  %v3093 = vunpack.c.l.b16 %v2903
  %v3094 = vunpack.c.h.b16 %v2903
  %v3095 = vunpack.c.l.b16 %v2904
  %v3096 = vunpack.c.h.b16 %v2904
  %v3097 = vpack.c.b16 %v2973, %v2969
  %v3098 = vpack.c.b16 %v2974, %v2970
  %v3099 = vpack.c.b16 %v2975, %v2971
  %v3100 = vpack.c.b16 %v2976, %v2972
  %v3101 = vpack.c.b16 %v2981, %v2977
  %v3102 = vpack.c.b16 %v2982, %v2978
  %v3103 = vpack.c.b16 %v2983, %v2979
  %v3104 = vpack.c.b16 %v2984, %v2980
  %v3105 = vpack.c.b16 %v2989, %v2985
  %v3106 = vpack.c.b16 %v2990, %v2986
  %v3107 = vpack.c.b16 %v2991, %v2987
  %v3108 = vpack.c.b16 %v2992, %v2988
  %v3109 = vpack.c.b16 %v2997, %v2993
  %v3110 = vpack.c.b16 %v2998, %v2994
  %v3111 = vpack.c.b16 %v2999, %v2995
  %v3112 = vpack.c.b16 %v3000, %v2996
  %v3113 = vpack.c.b16 %v3005, %v3001
  %v3114 = vpack.c.b16 %v3006, %v3002
  %v3115 = vpack.c.b16 %v3007, %v3003
  %v3116 = vpack.c.b16 %v3008, %v3004
  %v3117 = vpack.c.b16 %v3013, %v3009
  %v3118 = vpack.c.b16 %v3014, %v3010
  %v3119 = vpack.c.b16 %v3015, %v3011
  %v3120 = vpack.c.b16 %v3016, %v3012
  %v3121 = vpack.c.b16 %v3021, %v3017
  %v3122 = vpack.c.b16 %v3022, %v3018
  %v3123 = vpack.c.b16 %v3023, %v3019
  %v3124 = vpack.c.b16 %v3024, %v3020
  %v3125 = vpack.c.b16 %v3029, %v3025
  %v3126 = vpack.c.b16 %v3030, %v3026
  %v3127 = vpack.c.b16 %v3031, %v3027
  %v3128 = vpack.c.b16 %v3032, %v3028
  %v3129 = vpack.c.b16 %v3037, %v3033
  %v3130 = vpack.c.b16 %v3038, %v3034
  %v3131 = vpack.c.b16 %v3039, %v3035
  %v3132 = vpack.c.b16 %v3040, %v3036
  %v3133 = vpack.c.b16 %v3045, %v3041
  %v3134 = vpack.c.b16 %v3046, %v3042
  %v3135 = vpack.c.b16 %v3047, %v3043
  %v3136 = vpack.c.b16 %v3048, %v3044
  %v3137 = vpack.c.b16 %v3053, %v3049
  %v3138 = vpack.c.b16 %v3054, %v3050
  %v3139 = vpack.c.b16 %v3055, %v3051
  %v3140 = vpack.c.b16 %v3056, %v3052
  %v3141 = vpack.c.b16 %v3061, %v3057
  %v3142 = vpack.c.b16 %v3062, %v3058
  %v3143 = vpack.c.b16 %v3063, %v3059
  %v3144 = vpack.c.b16 %v3064, %v3060
  %v3145 = vpack.c.b16 %v3069, %v3065
  %v3146 = vpack.c.b16 %v3070, %v3066
  %v3147 = vpack.c.b16 %v3071, %v3067
  %v3148 = vpack.c.b16 %v3072, %v3068
  %v3149 = vpack.c.b16 %v3077, %v3073
  %v3150 = vpack.c.b16 %v3078, %v3074
  %v3151 = vpack.c.b16 %v3079, %v3075
  %v3152 = vpack.c.b16 %v3080, %v3076
  %v3153 = vpack.c.b16 %v3085, %v3081
  %v3154 = vpack.c.b16 %v3086, %v3082
  %v3155 = vpack.c.b16 %v3087, %v3083
  %v3156 = vpack.c.b16 %v3088, %v3084
  %v3157 = vpack.c.b16 %v3093, %v3089
  %v3158 = vpack.c.b16 %v3094, %v3090
  %v3159 = vpack.c.b16 %v3095, %v3091
  %v3160 = vpack.c.b16 %v3096, %v3092
  %3225 = vmatprep.subr.bf16.mxu0 %v3126
  %3226 = vmatpush1.bf16.msra.mxu0 %v3125
  %3227 = vmatprep.subr.bf16.mxu0 %v3122
  %3228 = vmatpush1.bf16.msra.mxu0 %v3121
  %3229 = vmatprep.subr.bf16.mxu0 %v3118
  %3230 = vmatpush1.bf16.msra.mxu0 %v3117
  %3231 = vmatprep.subr.bf16.mxu0 %v3114
  %3232 = vmatpush1.bf16.msra.mxu0 %v3113
  %3233 = vmatprep.subr.bf16.mxu0 %v3110
  %3234 = vmatpush1.bf16.msra.mxu0 %v3109
  %3235 = vmatprep.subr.bf16.mxu0 %v3106
  %3236 = vmatpush1.bf16.msra.mxu0 %v3105
  %3237 = vmatprep.subr.bf16.mxu0 %v3102
  %3238 = vmatpush1.bf16.msra.mxu0 %v3101
  %3239 = vmatprep.subr.bf16.mxu0 %v3098
  %3240 = vmatpush1.bf16.msra.mxu0 %v3097
  %3241 = vmatprep.subr.bf16.mxu0 %v3158
  %3242 = vmatpush2.bf16.msra.mxu0 %v3157
  %3243 = vmatprep.subr.bf16.mxu0 %v3154
  %3244 = vmatpush2.bf16.msra.mxu0 %v3153
  %3245 = vmatprep.subr.bf16.mxu0 %v3150
  %3246 = vmatpush2.bf16.msra.mxu0 %v3149
  %3247 = vmatprep.subr.bf16.mxu0 %v3146
  %3248 = vmatpush2.bf16.msra.mxu0 %v3145
  %3249 = vmatprep.subr.bf16.mxu0 %v3142
  %3250 = vmatpush2.bf16.msra.mxu0 %v3141
  %3251 = vmatprep.subr.bf16.mxu0 %v3138
  %3252 = vmatpush2.bf16.msra.mxu0 %v3137
  %3253 = vmatprep.subr.bf16.mxu0 %v3134
  %3254 = vmatpush2.bf16.msra.mxu0 %v3133
  %3255 = vmatprep.subr.bf16.mxu0 %v3130
  %3256 = vmatpush2.bf16.msra.mxu0 %v3129
  %3257 = vmatprep.mubr.bf16.mxu0 %v2840
  %3258 = vmatmul.mubr.bf16.gmra.mxu0 %v2839
  %v3259 = vpop.f32.mrf.mxu0
  %v3260 = vadd.f32 %v23, %v3259
  %v3261 = vpop.f32.mrf.mxu0
  %v3262 = vadd.f32 %v27, %v3261
  %v3263 = vpop.f32.mrf.mxu0
  %v3264 = vpop.f32.mrf.mxu0
  %3265 = vdwg.mxu0
  %3266 = vmatprep.subr.bf16.mxu0 %v3128
  %3267 = vmatpush1.bf16.msra.mxu0 %v3127
  %3268 = vmatprep.subr.bf16.mxu0 %v3124
  %3269 = vmatpush1.bf16.msra.mxu0 %v3123
  %3270 = vmatprep.subr.bf16.mxu0 %v3120
  %3271 = vmatpush1.bf16.msra.mxu0 %v3119
  %3272 = vmatprep.subr.bf16.mxu0 %v3116
  %3273 = vmatpush1.bf16.msra.mxu0 %v3115
  %3274 = vmatprep.subr.bf16.mxu0 %v3112
  %3275 = vmatpush1.bf16.msra.mxu0 %v3111
  %3276 = vmatprep.subr.bf16.mxu0 %v3108
  %3277 = vmatpush1.bf16.msra.mxu0 %v3107
  %3278 = vmatprep.subr.bf16.mxu0 %v3104
  %3279 = vmatpush1.bf16.msra.mxu0 %v3103
  %3280 = vmatprep.subr.bf16.mxu0 %v3100
  %3281 = vmatpush1.bf16.msra.mxu0 %v3099
  %3282 = vmatprep.subr.bf16.mxu0 %v3160
  %3283 = vmatpush2.bf16.msra.mxu0 %v3159
  %3284 = vmatprep.subr.bf16.mxu0 %v3156
  %3285 = vmatpush2.bf16.msra.mxu0 %v3155
  %3286 = vmatprep.subr.bf16.mxu0 %v3152
  %3287 = vmatpush2.bf16.msra.mxu0 %v3151
  %3288 = vmatprep.subr.bf16.mxu0 %v3148
  %3289 = vmatpush2.bf16.msra.mxu0 %v3147
  %3290 = vmatprep.subr.bf16.mxu0 %v3144
  %3291 = vmatpush2.bf16.msra.mxu0 %v3143
  %3292 = vmatprep.subr.bf16.mxu0 %v3140
  %3293 = vmatpush2.bf16.msra.mxu0 %v3139
  %3294 = vmatprep.subr.bf16.mxu0 %v3136
  %3295 = vmatpush2.bf16.msra.mxu0 %v3135
  %3296 = vmatprep.subr.bf16.mxu0 %v3132
  %3297 = vmatpush2.bf16.msra.mxu0 %v3131
  %3298 = vmatprep.mubr.bf16.mxu0 %v2840
  %3299 = vmatmul.mubr.bf16.gmra.mxu0 %v2839
  %v3300 = vpop.f32.mrf.mxu0
  %v3301 = vadd.f32 %v31, %v3300
  %v3302 = vpop.f32.mrf.mxu0
  %v3303 = vadd.f32 %v35, %v3302
  %v3304 = vpop.f32.mrf.mxu0
  %v3305 = vpop.f32.mrf.mxu0
  %3306 = vdwg.mxu0
  %v3307 = vxor.u32 %v3260, 2147483648
  %v3308 = vmul.f32 %v3307, 1.442695
  %v3309 = vpow.pop %v3308
  %v3310 = vadd.f32 %v3309, 1.0
  %v3311 = vrcp.pop %v3310
  %v3312 = vmul.f32 1.0, %v3311
  %v3313 = vxor.u32 %v3262, 2147483648
  %v3314 = vmul.f32 %v3313, 1.442695
  %v3315 = vpow.pop %v3314
  %v3316 = vadd.f32 %v3315, 1.0
  %v3317 = vrcp.pop %v3316
  %v3318 = vmul.f32 1.0, %v3317
  %v3319 = vtanh.pop %v3301
  %v3320 = vxor.u32 %v3303, 2147483648
  %v3321 = vmul.f32 %v3320, 1.442695
  %v3322 = vpow.pop %v3321
  %v3323 = vadd.f32 %v3322, 1.0
  %v3324 = vrcp.pop %v3323
  %v3325 = vmul.f32 1.0, %v3324
  %v3326 = vmul.f32 %v3318, %v2504
  %v3327 = vmul.f32 %v3312, %v3319
  %v3328 = vadd.f32 %v3326, %v3327
  %v3329 = vtanh.pop %v3328
  %v3330 = vmul.f32 %v3325, %v3329
  %s3331 = scalar_lea.vmem %s4, 6
  %3332 = vst [vmem:[%s3331] sm:$0x3] %v3330
  %s3333 = scalar_lea.vmem %s0, 32
  %v3334 = vld [vmem:[%s3333] sm:$0xff]
  %v3335 = vld [vmem:[%s1] sm:$0xff]
  %v3336 = vld [vmem:[%s1 + $0x8] sm:$0xff]
  %v3337 = vld [vmem:[%s1 + $0x10] sm:$0xff]
  %v3338 = vld [vmem:[%s1 + $0x18] sm:$0xff]
  %v3339 = vld [vmem:[%s1 + $0x20] sm:$0xff]
  %v3340 = vld [vmem:[%s1 + $0x28] sm:$0xff]
  %v3341 = vld [vmem:[%s1 + $0x30] sm:$0xff]
  %v3342 = vld [vmem:[%s1 + $0x38] sm:$0xff]
  %v3343 = vld [vmem:[%s1 + $0x40] sm:$0xff]
  %v3344 = vld [vmem:[%s1 + $0x48] sm:$0xff]
  %v3345 = vld [vmem:[%s1 + $0x50] sm:$0xff]
  %v3346 = vld [vmem:[%s1 + $0x58] sm:$0xff]
  %v3347 = vld [vmem:[%s1 + $0x60] sm:$0xff]
  %v3348 = vld [vmem:[%s1 + $0x68] sm:$0xff]
  %v3349 = vld [vmem:[%s1 + $0x70] sm:$0xff]
  %v3350 = vld [vmem:[%s1 + $0x78] sm:$0xff]
  %v3351 = vld [vmem:[%s1 + $0x80] sm:$0xff]
  %v3352 = vld [vmem:[%s1 + $0x88] sm:$0xff]
  %v3353 = vld [vmem:[%s1 + $0x90] sm:$0xff]
  %v3354 = vld [vmem:[%s1 + $0x98] sm:$0xff]
  %v3355 = vld [vmem:[%s1 + $0xa0] sm:$0xff]
  %v3356 = vld [vmem:[%s1 + $0xa8] sm:$0xff]
  %v3357 = vld [vmem:[%s1 + $0xb0] sm:$0xff]
  %v3358 = vld [vmem:[%s1 + $0xb8] sm:$0xff]
  %v3359 = vld [vmem:[%s1 + $0xc0] sm:$0xff]
  %v3360 = vld [vmem:[%s1 + $0xc8] sm:$0xff]
  %v3361 = vld [vmem:[%s1 + $0xd0] sm:$0xff]
  %v3362 = vld [vmem:[%s1 + $0xd8] sm:$0xff]
  %v3363 = vld [vmem:[%s1 + $0xe0] sm:$0xff]
  %v3364 = vld [vmem:[%s1 + $0xe8] sm:$0xff]
  %v3365 = vld [vmem:[%s1 + $0xf0] sm:$0xff]
  %v3366 = vld [vmem:[%s1 + $0xf8] sm:$0xff]
  %v3399 = vunpack.c.l.b16 %v3335
  %v3400 = vunpack.c.h.b16 %v3335
  %v3401 = vunpack.c.l.b16 %v3336
  %v3402 = vunpack.c.h.b16 %v3336
  %v3403 = vunpack.c.l.b16 %v3337
  %v3404 = vunpack.c.h.b16 %v3337
  %v3405 = vunpack.c.l.b16 %v3338
  %v3406 = vunpack.c.h.b16 %v3338
  %v3407 = vunpack.c.l.b16 %v3339
  %v3408 = vunpack.c.h.b16 %v3339
  %v3409 = vunpack.c.l.b16 %v3340
  %v3410 = vunpack.c.h.b16 %v3340
  %v3411 = vunpack.c.l.b16 %v3341
  %v3412 = vunpack.c.h.b16 %v3341
  %v3413 = vunpack.c.l.b16 %v3342
  %v3414 = vunpack.c.h.b16 %v3342
  %v3415 = vunpack.c.l.b16 %v3343
  %v3416 = vunpack.c.h.b16 %v3343
  %v3417 = vunpack.c.l.b16 %v3344
  %v3418 = vunpack.c.h.b16 %v3344
  %v3419 = vunpack.c.l.b16 %v3345
  %v3420 = vunpack.c.h.b16 %v3345
  %v3421 = vunpack.c.l.b16 %v3346
  %v3422 = vunpack.c.h.b16 %v3346
  %v3423 = vunpack.c.l.b16 %v3347
  %v3424 = vunpack.c.h.b16 %v3347
  %v3425 = vunpack.c.l.b16 %v3348
  %v3426 = vunpack.c.h.b16 %v3348
  %v3427 = vunpack.c.l.b16 %v3349
  %v3428 = vunpack.c.h.b16 %v3349
  %v3429 = vunpack.c.l.b16 %v3350
  %v3430 = vunpack.c.h.b16 %v3350
  %v3431 = vunpack.c.l.b16 %v3351
  %v3432 = vunpack.c.h.b16 %v3351
  %v3433 = vunpack.c.l.b16 %v3352
  %v3434 = vunpack.c.h.b16 %v3352
  %v3435 = vunpack.c.l.b16 %v3353
  %v3436 = vunpack.c.h.b16 %v3353
  %v3437 = vunpack.c.l.b16 %v3354
  %v3438 = vunpack.c.h.b16 %v3354
  %v3439 = vunpack.c.l.b16 %v3355
  %v3440 = vunpack.c.h.b16 %v3355
  %v3441 = vunpack.c.l.b16 %v3356
  %v3442 = vunpack.c.h.b16 %v3356
  %v3443 = vunpack.c.l.b16 %v3357
  %v3444 = vunpack.c.h.b16 %v3357
  %v3445 = vunpack.c.l.b16 %v3358
  %v3446 = vunpack.c.h.b16 %v3358
  %v3447 = vunpack.c.l.b16 %v3359
  %v3448 = vunpack.c.h.b16 %v3359
  %v3449 = vunpack.c.l.b16 %v3360
  %v3450 = vunpack.c.h.b16 %v3360
  %v3451 = vunpack.c.l.b16 %v3361
  %v3452 = vunpack.c.h.b16 %v3361
  %v3453 = vunpack.c.l.b16 %v3362
  %v3454 = vunpack.c.h.b16 %v3362
  %v3455 = vunpack.c.l.b16 %v3363
  %v3456 = vunpack.c.h.b16 %v3363
  %v3457 = vunpack.c.l.b16 %v3364
  %v3458 = vunpack.c.h.b16 %v3364
  %v3459 = vunpack.c.l.b16 %v3365
  %v3460 = vunpack.c.h.b16 %v3365
  %v3461 = vunpack.c.l.b16 %v3366
  %v3462 = vunpack.c.h.b16 %v3366
  %v3463 = vpack.c.b16 %v3403, %v3399
  %v3464 = vpack.c.b16 %v3404, %v3400
  %v3465 = vpack.c.b16 %v3405, %v3401
  %v3466 = vpack.c.b16 %v3406, %v3402
  %v3467 = vpack.c.b16 %v3411, %v3407
  %v3468 = vpack.c.b16 %v3412, %v3408
  %v3469 = vpack.c.b16 %v3413, %v3409
  %v3470 = vpack.c.b16 %v3414, %v3410
  %v3471 = vpack.c.b16 %v3419, %v3415
  %v3472 = vpack.c.b16 %v3420, %v3416
  %v3473 = vpack.c.b16 %v3421, %v3417
  %v3474 = vpack.c.b16 %v3422, %v3418
  %v3475 = vpack.c.b16 %v3427, %v3423
  %v3476 = vpack.c.b16 %v3428, %v3424
  %v3477 = vpack.c.b16 %v3429, %v3425
  %v3478 = vpack.c.b16 %v3430, %v3426
  %v3479 = vpack.c.b16 %v3435, %v3431
  %v3480 = vpack.c.b16 %v3436, %v3432
  %v3481 = vpack.c.b16 %v3437, %v3433
  %v3482 = vpack.c.b16 %v3438, %v3434
  %v3483 = vpack.c.b16 %v3443, %v3439
  %v3484 = vpack.c.b16 %v3444, %v3440
  %v3485 = vpack.c.b16 %v3445, %v3441
  %v3486 = vpack.c.b16 %v3446, %v3442
  %v3487 = vpack.c.b16 %v3451, %v3447
  %v3488 = vpack.c.b16 %v3452, %v3448
  %v3489 = vpack.c.b16 %v3453, %v3449
  %v3490 = vpack.c.b16 %v3454, %v3450
  %v3491 = vpack.c.b16 %v3459, %v3455
  %v3492 = vpack.c.b16 %v3460, %v3456
  %v3493 = vpack.c.b16 %v3461, %v3457
  %v3494 = vpack.c.b16 %v3462, %v3458
  %3527 = vmatprep.subr.bf16.mxu0 %v3492
  %3528 = vmatpush1.bf16.msra.mxu0 %v3491
  %3529 = vmatprep.subr.bf16.mxu0 %v3488
  %3530 = vmatpush1.bf16.msra.mxu0 %v3487
  %3531 = vmatprep.subr.bf16.mxu0 %v3484
  %3532 = vmatpush1.bf16.msra.mxu0 %v3483
  %3533 = vmatprep.subr.bf16.mxu0 %v3480
  %3534 = vmatpush1.bf16.msra.mxu0 %v3479
  %3535 = vmatprep.subr.bf16.mxu0 %v3476
  %3536 = vmatpush1.bf16.msra.mxu0 %v3475
  %3537 = vmatprep.subr.bf16.mxu0 %v3472
  %3538 = vmatpush1.bf16.msra.mxu0 %v3471
  %3539 = vmatprep.subr.bf16.mxu0 %v3468
  %3540 = vmatpush1.bf16.msra.mxu0 %v3467
  %3541 = vmatprep.subr.bf16.mxu0 %v3464
  %3542 = vmatpush1.bf16.msra.mxu0 %v3463
  %3543 = vmatprep.subr.bf16.mxu0 0
  %3544 = vmatpush2.bf16.msra.mxu0 0
  %3545 = vmatprep.subr.bf16.mxu0 0
  %3546 = vmatpush2.bf16.msra.mxu0 0
  %3547 = vmatprep.subr.bf16.mxu0 0
  %3548 = vmatpush2.bf16.msra.mxu0 0
  %3549 = vmatprep.subr.bf16.mxu0 0
  %3550 = vmatpush2.bf16.msra.mxu0 0
  %3551 = vmatprep.subr.bf16.mxu0 0
  %3552 = vmatpush2.bf16.msra.mxu0 0
  %3553 = vmatprep.subr.bf16.mxu0 0
  %3554 = vmatpush2.bf16.msra.mxu0 0
  %3555 = vmatprep.subr.bf16.mxu0 0
  %3556 = vmatpush2.bf16.msra.mxu0 0
  %3557 = vmatprep.subr.bf16.mxu0 0
  %3558 = vmatpush2.bf16.msra.mxu0 0
  %3559 = vmatprep.mubr.bf16.mxu0 0
  %3560 = vmatmul.mubr.bf16.gmra.mxu0 %v2839
  %v3561 = vpop.f32.mrf.mxu0
  %v3562 = vadd.f32 0.0, %v3561
  %v3563 = vpop.f32.mrf.mxu0
  %v3564 = vadd.f32 0.0, %v3563
  %v3565 = vpop.f32.mrf.mxu0
  %v3566 = vpop.f32.mrf.mxu0
  %3567 = vdwg.mxu0
  %3568 = vmatprep.subr.bf16.mxu0 %v3494
  %3569 = vmatpush1.bf16.msra.mxu0 %v3493
  %3570 = vmatprep.subr.bf16.mxu0 %v3490
  %3571 = vmatpush1.bf16.msra.mxu0 %v3489
  %3572 = vmatprep.subr.bf16.mxu0 %v3486
  %3573 = vmatpush1.bf16.msra.mxu0 %v3485
  %3574 = vmatprep.subr.bf16.mxu0 %v3482
  %3575 = vmatpush1.bf16.msra.mxu0 %v3481
  %3576 = vmatprep.subr.bf16.mxu0 %v3478
  %3577 = vmatpush1.bf16.msra.mxu0 %v3477
  %3578 = vmatprep.subr.bf16.mxu0 %v3474
  %3579 = vmatpush1.bf16.msra.mxu0 %v3473
  %3580 = vmatprep.subr.bf16.mxu0 %v3470
  %3581 = vmatpush1.bf16.msra.mxu0 %v3469
  %3582 = vmatprep.subr.bf16.mxu0 %v3466
  %3583 = vmatpush1.bf16.msra.mxu0 %v3465
  %3584 = vmatprep.subr.bf16.mxu0 0
  %3585 = vmatpush2.bf16.msra.mxu0 0
  %3586 = vmatprep.subr.bf16.mxu0 0
  %3587 = vmatpush2.bf16.msra.mxu0 0
  %3588 = vmatprep.subr.bf16.mxu0 0
  %3589 = vmatpush2.bf16.msra.mxu0 0
  %3590 = vmatprep.subr.bf16.mxu0 0
  %3591 = vmatpush2.bf16.msra.mxu0 0
  %3592 = vmatprep.subr.bf16.mxu0 0
  %3593 = vmatpush2.bf16.msra.mxu0 0
  %3594 = vmatprep.subr.bf16.mxu0 0
  %3595 = vmatpush2.bf16.msra.mxu0 0
  %3596 = vmatprep.subr.bf16.mxu0 0
  %3597 = vmatpush2.bf16.msra.mxu0 0
  %3598 = vmatprep.subr.bf16.mxu0 0
  %3599 = vmatpush2.bf16.msra.mxu0 0
  %3600 = vmatprep.mubr.bf16.mxu0 0
  %3601 = vmatmul.mubr.bf16.gmra.mxu0 %v2839
  %v3602 = vpop.f32.mrf.mxu0
  %v3603 = vadd.f32 0.0, %v3602
  %v3604 = vpop.f32.mrf.mxu0
  %v3605 = vadd.f32 0.0, %v3604
  %v3606 = vpop.f32.mrf.mxu0
  %v3607 = vpop.f32.mrf.mxu0
  %3608 = vdwg.mxu0
  %v3613 = vcombine.low %v3562, %v3564
  %v3614 = vcombine.low %v3603, %v3605
  %v3616 = vunpack.c.l.s4 1983009808
  %v3617 = vunpack.c.0.s8 %v3616
  %v3618 = vlaneseq
  %v3619 = vshrl.u32 %v3618, 7
  %v3620 = vsub.s32 %v3617, %v3619
  %v3621 = vrot.slane %v3613, %v3620
  %v3623 = vunpack.c.l.s4 1983009808
  %v3624 = vunpack.c.0.s8 %v3623
  %v3625 = vlaneseq
  %v3626 = vshrl.u32 %v3625, 7
  %v3627 = vsub.s32 %v3624, %v3626
  %v3628 = vrot.slane %v3614, %v3627
  %v3629 = vcombine.low %v3621, %v3628
  %v3631 = vadd.f32 %v3334, %v3629
  %v3632 = vxor.u32 %v3631, 2147483648
  %v3633 = vmul.f32 %v3632, 1.442695
  %v3634 = vpow.pop %v3633
  %v3635 = vadd.f32 %v3634, 1.0
  %v3636 = vrcp.pop %v3635
  %v3637 = vmul.f32 1.0, %v3636
  %v3639 = vrot.slane %v3631, 2
  %v3641 = vxor.u32 %v3639, 2147483648
  %v3642 = vmul.f32 %v3641, 1.442695
  %v3643 = vpow.pop %v3642
  %v3644 = vadd.f32 %v3643, 1.0
  %v3645 = vrcp.pop %v3644
  %v3646 = vmul.f32 1.0, %v3645
  %v3647 = vrot.slane %v3631, 4
  %v3649 = vtanh.pop %v3647
  %v3650 = vrot.slane %v3631, 6
  %v3652 = vxor.u32 %v3650, 2147483648
  %v3653 = vmul.f32 %v3652, 1.442695
  %v3654 = vpow.pop %v3653
  %v3655 = vadd.f32 %v3654, 1.0
  %v3656 = vrcp.pop %v3655
  %v3657 = vmul.f32 1.0, %v3656
  %v3658 = vmul.f32 %v3646, %v2836
  %v3659 = vmul.f32 %v3637, %v3649
  %v3660 = vadd.f32 %v3658, %v3659
  %v3661 = vtanh.pop %v3660
  %v3662 = vmul.f32 %v3657, %v3661
  %v3663 = vpack.c.bf16 %v3662, %v3662
  %v3664 = vpack.c.bf16 %v3330, %v3330
  %v3665 = vld [vmem:[%s2] sm:$0xff]
  %v3666 = vld [vmem:[%s2 + $0x8] sm:$0xff]
  %v3667 = vld [vmem:[%s2 + $0x10] sm:$0xff]
  %v3668 = vld [vmem:[%s2 + $0x18] sm:$0xff]
  %v3669 = vld [vmem:[%s2 + $0x20] sm:$0xff]
  %v3670 = vld [vmem:[%s2 + $0x28] sm:$0xff]
  %v3671 = vld [vmem:[%s2 + $0x30] sm:$0xff]
  %v3672 = vld [vmem:[%s2 + $0x38] sm:$0xff]
  %v3673 = vld [vmem:[%s2 + $0x40] sm:$0xff]
  %v3674 = vld [vmem:[%s2 + $0x48] sm:$0xff]
  %v3675 = vld [vmem:[%s2 + $0x50] sm:$0xff]
  %v3676 = vld [vmem:[%s2 + $0x58] sm:$0xff]
  %v3677 = vld [vmem:[%s2 + $0x60] sm:$0xff]
  %v3678 = vld [vmem:[%s2 + $0x68] sm:$0xff]
  %v3679 = vld [vmem:[%s2 + $0x70] sm:$0xff]
  %v3680 = vld [vmem:[%s2 + $0x78] sm:$0xff]
  %v3681 = vld [vmem:[%s2 + $0x80] sm:$0xff]
  %v3682 = vld [vmem:[%s2 + $0x88] sm:$0xff]
  %v3683 = vld [vmem:[%s2 + $0x90] sm:$0xff]
  %v3684 = vld [vmem:[%s2 + $0x98] sm:$0xff]
  %v3685 = vld [vmem:[%s2 + $0xa0] sm:$0xff]
  %v3686 = vld [vmem:[%s2 + $0xa8] sm:$0xff]
  %v3687 = vld [vmem:[%s2 + $0xb0] sm:$0xff]
  %v3688 = vld [vmem:[%s2 + $0xb8] sm:$0xff]
  %v3689 = vld [vmem:[%s2 + $0xc0] sm:$0xff]
  %v3690 = vld [vmem:[%s2 + $0xc8] sm:$0xff]
  %v3691 = vld [vmem:[%s2 + $0xd0] sm:$0xff]
  %v3692 = vld [vmem:[%s2 + $0xd8] sm:$0xff]
  %v3693 = vld [vmem:[%s2 + $0xe0] sm:$0xff]
  %v3694 = vld [vmem:[%s2 + $0xe8] sm:$0xff]
  %v3695 = vld [vmem:[%s2 + $0xf0] sm:$0xff]
  %v3696 = vld [vmem:[%s2 + $0xf8] sm:$0xff]
  %v3697 = vld [vmem:[%s2 + $0x100] sm:$0xff]
  %v3698 = vld [vmem:[%s2 + $0x108] sm:$0xff]
  %v3699 = vld [vmem:[%s2 + $0x110] sm:$0xff]
  %v3700 = vld [vmem:[%s2 + $0x118] sm:$0xff]
  %v3701 = vld [vmem:[%s2 + $0x120] sm:$0xff]
  %v3702 = vld [vmem:[%s2 + $0x128] sm:$0xff]
  %v3703 = vld [vmem:[%s2 + $0x130] sm:$0xff]
  %v3704 = vld [vmem:[%s2 + $0x138] sm:$0xff]
  %v3705 = vld [vmem:[%s2 + $0x140] sm:$0xff]
  %v3706 = vld [vmem:[%s2 + $0x148] sm:$0xff]
  %v3707 = vld [vmem:[%s2 + $0x150] sm:$0xff]
  %v3708 = vld [vmem:[%s2 + $0x158] sm:$0xff]
  %v3709 = vld [vmem:[%s2 + $0x160] sm:$0xff]
  %v3710 = vld [vmem:[%s2 + $0x168] sm:$0xff]
  %v3711 = vld [vmem:[%s2 + $0x170] sm:$0xff]
  %v3712 = vld [vmem:[%s2 + $0x178] sm:$0xff]
  %v3713 = vld [vmem:[%s2 + $0x180] sm:$0xff]
  %v3714 = vld [vmem:[%s2 + $0x188] sm:$0xff]
  %v3715 = vld [vmem:[%s2 + $0x190] sm:$0xff]
  %v3716 = vld [vmem:[%s2 + $0x198] sm:$0xff]
  %v3717 = vld [vmem:[%s2 + $0x1a0] sm:$0xff]
  %v3718 = vld [vmem:[%s2 + $0x1a8] sm:$0xff]
  %v3719 = vld [vmem:[%s2 + $0x1b0] sm:$0xff]
  %v3720 = vld [vmem:[%s2 + $0x1b8] sm:$0xff]
  %v3721 = vld [vmem:[%s2 + $0x1c0] sm:$0xff]
  %v3722 = vld [vmem:[%s2 + $0x1c8] sm:$0xff]
  %v3723 = vld [vmem:[%s2 + $0x1d0] sm:$0xff]
  %v3724 = vld [vmem:[%s2 + $0x1d8] sm:$0xff]
  %v3725 = vld [vmem:[%s2 + $0x1e0] sm:$0xff]
  %v3726 = vld [vmem:[%s2 + $0x1e8] sm:$0xff]
  %v3727 = vld [vmem:[%s2 + $0x1f0] sm:$0xff]
  %v3728 = vld [vmem:[%s2 + $0x1f8] sm:$0xff]
  %v3793 = vunpack.c.l.b16 %v3665
  %v3794 = vunpack.c.h.b16 %v3665
  %v3795 = vunpack.c.l.b16 %v3666
  %v3796 = vunpack.c.h.b16 %v3666
  %v3797 = vunpack.c.l.b16 %v3667
  %v3798 = vunpack.c.h.b16 %v3667
  %v3799 = vunpack.c.l.b16 %v3668
  %v3800 = vunpack.c.h.b16 %v3668
  %v3801 = vunpack.c.l.b16 %v3669
  %v3802 = vunpack.c.h.b16 %v3669
  %v3803 = vunpack.c.l.b16 %v3670
  %v3804 = vunpack.c.h.b16 %v3670
  %v3805 = vunpack.c.l.b16 %v3671
  %v3806 = vunpack.c.h.b16 %v3671
  %v3807 = vunpack.c.l.b16 %v3672
  %v3808 = vunpack.c.h.b16 %v3672
  %v3809 = vunpack.c.l.b16 %v3673
  %v3810 = vunpack.c.h.b16 %v3673
  %v3811 = vunpack.c.l.b16 %v3674
  %v3812 = vunpack.c.h.b16 %v3674
  %v3813 = vunpack.c.l.b16 %v3675
  %v3814 = vunpack.c.h.b16 %v3675
  %v3815 = vunpack.c.l.b16 %v3676
  %v3816 = vunpack.c.h.b16 %v3676
  %v3817 = vunpack.c.l.b16 %v3677
  %v3818 = vunpack.c.h.b16 %v3677
  %v3819 = vunpack.c.l.b16 %v3678
  %v3820 = vunpack.c.h.b16 %v3678
  %v3821 = vunpack.c.l.b16 %v3679
  %v3822 = vunpack.c.h.b16 %v3679
  %v3823 = vunpack.c.l.b16 %v3680
  %v3824 = vunpack.c.h.b16 %v3680
  %v3825 = vunpack.c.l.b16 %v3681
  %v3826 = vunpack.c.h.b16 %v3681
  %v3827 = vunpack.c.l.b16 %v3682
  %v3828 = vunpack.c.h.b16 %v3682
  %v3829 = vunpack.c.l.b16 %v3683
  %v3830 = vunpack.c.h.b16 %v3683
  %v3831 = vunpack.c.l.b16 %v3684
  %v3832 = vunpack.c.h.b16 %v3684
  %v3833 = vunpack.c.l.b16 %v3685
  %v3834 = vunpack.c.h.b16 %v3685
  %v3835 = vunpack.c.l.b16 %v3686
  %v3836 = vunpack.c.h.b16 %v3686
  %v3837 = vunpack.c.l.b16 %v3687
  %v3838 = vunpack.c.h.b16 %v3687
  %v3839 = vunpack.c.l.b16 %v3688
  %v3840 = vunpack.c.h.b16 %v3688
  %v3841 = vunpack.c.l.b16 %v3689
  %v3842 = vunpack.c.h.b16 %v3689
  %v3843 = vunpack.c.l.b16 %v3690
  %v3844 = vunpack.c.h.b16 %v3690
  %v3845 = vunpack.c.l.b16 %v3691
  %v3846 = vunpack.c.h.b16 %v3691
  %v3847 = vunpack.c.l.b16 %v3692
  %v3848 = vunpack.c.h.b16 %v3692
  %v3849 = vunpack.c.l.b16 %v3693
  %v3850 = vunpack.c.h.b16 %v3693
  %v3851 = vunpack.c.l.b16 %v3694
  %v3852 = vunpack.c.h.b16 %v3694
  %v3853 = vunpack.c.l.b16 %v3695
  %v3854 = vunpack.c.h.b16 %v3695
  %v3855 = vunpack.c.l.b16 %v3696
  %v3856 = vunpack.c.h.b16 %v3696
  %v3857 = vunpack.c.l.b16 %v3697
  %v3858 = vunpack.c.h.b16 %v3697
  %v3859 = vunpack.c.l.b16 %v3698
  %v3860 = vunpack.c.h.b16 %v3698
  %v3861 = vunpack.c.l.b16 %v3699
  %v3862 = vunpack.c.h.b16 %v3699
  %v3863 = vunpack.c.l.b16 %v3700
  %v3864 = vunpack.c.h.b16 %v3700
  %v3865 = vunpack.c.l.b16 %v3701
  %v3866 = vunpack.c.h.b16 %v3701
  %v3867 = vunpack.c.l.b16 %v3702
  %v3868 = vunpack.c.h.b16 %v3702
  %v3869 = vunpack.c.l.b16 %v3703
  %v3870 = vunpack.c.h.b16 %v3703
  %v3871 = vunpack.c.l.b16 %v3704
  %v3872 = vunpack.c.h.b16 %v3704
  %v3873 = vunpack.c.l.b16 %v3705
  %v3874 = vunpack.c.h.b16 %v3705
  %v3875 = vunpack.c.l.b16 %v3706
  %v3876 = vunpack.c.h.b16 %v3706
  %v3877 = vunpack.c.l.b16 %v3707
  %v3878 = vunpack.c.h.b16 %v3707
  %v3879 = vunpack.c.l.b16 %v3708
  %v3880 = vunpack.c.h.b16 %v3708
  %v3881 = vunpack.c.l.b16 %v3709
  %v3882 = vunpack.c.h.b16 %v3709
  %v3883 = vunpack.c.l.b16 %v3710
  %v3884 = vunpack.c.h.b16 %v3710
  %v3885 = vunpack.c.l.b16 %v3711
  %v3886 = vunpack.c.h.b16 %v3711
  %v3887 = vunpack.c.l.b16 %v3712
  %v3888 = vunpack.c.h.b16 %v3712
  %v3889 = vunpack.c.l.b16 %v3713
  %v3890 = vunpack.c.h.b16 %v3713
  %v3891 = vunpack.c.l.b16 %v3714
  %v3892 = vunpack.c.h.b16 %v3714
  %v3893 = vunpack.c.l.b16 %v3715
  %v3894 = vunpack.c.h.b16 %v3715
  %v3895 = vunpack.c.l.b16 %v3716
  %v3896 = vunpack.c.h.b16 %v3716
  %v3897 = vunpack.c.l.b16 %v3717
  %v3898 = vunpack.c.h.b16 %v3717
  %v3899 = vunpack.c.l.b16 %v3718
  %v3900 = vunpack.c.h.b16 %v3718
  %v3901 = vunpack.c.l.b16 %v3719
  %v3902 = vunpack.c.h.b16 %v3719
  %v3903 = vunpack.c.l.b16 %v3720
  %v3904 = vunpack.c.h.b16 %v3720
  %v3905 = vunpack.c.l.b16 %v3721
  %v3906 = vunpack.c.h.b16 %v3721
  %v3907 = vunpack.c.l.b16 %v3722
  %v3908 = vunpack.c.h.b16 %v3722
  %v3909 = vunpack.c.l.b16 %v3723
  %v3910 = vunpack.c.h.b16 %v3723
  %v3911 = vunpack.c.l.b16 %v3724
  %v3912 = vunpack.c.h.b16 %v3724
  %v3913 = vunpack.c.l.b16 %v3725
  %v3914 = vunpack.c.h.b16 %v3725
  %v3915 = vunpack.c.l.b16 %v3726
  %v3916 = vunpack.c.h.b16 %v3726
  %v3917 = vunpack.c.l.b16 %v3727
  %v3918 = vunpack.c.h.b16 %v3727
  %v3919 = vunpack.c.l.b16 %v3728
  %v3920 = vunpack.c.h.b16 %v3728
  %v3921 = vpack.c.b16 %v3797, %v3793
  %v3922 = vpack.c.b16 %v3798, %v3794
  %v3923 = vpack.c.b16 %v3799, %v3795
  %v3924 = vpack.c.b16 %v3800, %v3796
  %v3925 = vpack.c.b16 %v3805, %v3801
  %v3926 = vpack.c.b16 %v3806, %v3802
  %v3927 = vpack.c.b16 %v3807, %v3803
  %v3928 = vpack.c.b16 %v3808, %v3804
  %v3929 = vpack.c.b16 %v3813, %v3809
  %v3930 = vpack.c.b16 %v3814, %v3810
  %v3931 = vpack.c.b16 %v3815, %v3811
  %v3932 = vpack.c.b16 %v3816, %v3812
  %v3933 = vpack.c.b16 %v3821, %v3817
  %v3934 = vpack.c.b16 %v3822, %v3818
  %v3935 = vpack.c.b16 %v3823, %v3819
  %v3936 = vpack.c.b16 %v3824, %v3820
  %v3937 = vpack.c.b16 %v3829, %v3825
  %v3938 = vpack.c.b16 %v3830, %v3826
  %v3939 = vpack.c.b16 %v3831, %v3827
  %v3940 = vpack.c.b16 %v3832, %v3828
  %v3941 = vpack.c.b16 %v3837, %v3833
  %v3942 = vpack.c.b16 %v3838, %v3834
  %v3943 = vpack.c.b16 %v3839, %v3835
  %v3944 = vpack.c.b16 %v3840, %v3836
  %v3945 = vpack.c.b16 %v3845, %v3841
  %v3946 = vpack.c.b16 %v3846, %v3842
  %v3947 = vpack.c.b16 %v3847, %v3843
  %v3948 = vpack.c.b16 %v3848, %v3844
  %v3949 = vpack.c.b16 %v3853, %v3849
  %v3950 = vpack.c.b16 %v3854, %v3850
  %v3951 = vpack.c.b16 %v3855, %v3851
  %v3952 = vpack.c.b16 %v3856, %v3852
  %v3953 = vpack.c.b16 %v3861, %v3857
  %v3954 = vpack.c.b16 %v3862, %v3858
  %v3955 = vpack.c.b16 %v3863, %v3859
  %v3956 = vpack.c.b16 %v3864, %v3860
  %v3957 = vpack.c.b16 %v3869, %v3865
  %v3958 = vpack.c.b16 %v3870, %v3866
  %v3959 = vpack.c.b16 %v3871, %v3867
  %v3960 = vpack.c.b16 %v3872, %v3868
  %v3961 = vpack.c.b16 %v3877, %v3873
  %v3962 = vpack.c.b16 %v3878, %v3874
  %v3963 = vpack.c.b16 %v3879, %v3875
  %v3964 = vpack.c.b16 %v3880, %v3876
  %v3965 = vpack.c.b16 %v3885, %v3881
  %v3966 = vpack.c.b16 %v3886, %v3882
  %v3967 = vpack.c.b16 %v3887, %v3883
  %v3968 = vpack.c.b16 %v3888, %v3884
  %v3969 = vpack.c.b16 %v3893, %v3889
  %v3970 = vpack.c.b16 %v3894, %v3890
  %v3971 = vpack.c.b16 %v3895, %v3891
  %v3972 = vpack.c.b16 %v3896, %v3892
  %v3973 = vpack.c.b16 %v3901, %v3897
  %v3974 = vpack.c.b16 %v3902, %v3898
  %v3975 = vpack.c.b16 %v3903, %v3899
  %v3976 = vpack.c.b16 %v3904, %v3900
  %v3977 = vpack.c.b16 %v3909, %v3905
  %v3978 = vpack.c.b16 %v3910, %v3906
  %v3979 = vpack.c.b16 %v3911, %v3907
  %v3980 = vpack.c.b16 %v3912, %v3908
  %v3981 = vpack.c.b16 %v3917, %v3913
  %v3982 = vpack.c.b16 %v3918, %v3914
  %v3983 = vpack.c.b16 %v3919, %v3915
  %v3984 = vpack.c.b16 %v3920, %v3916
  %4049 = vmatprep.subr.bf16.mxu0 %v3950
  %4050 = vmatpush1.bf16.msra.mxu0 %v3949
  %4051 = vmatprep.subr.bf16.mxu0 %v3946
  %4052 = vmatpush1.bf16.msra.mxu0 %v3945
  %4053 = vmatprep.subr.bf16.mxu0 %v3942
  %4054 = vmatpush1.bf16.msra.mxu0 %v3941
  %4055 = vmatprep.subr.bf16.mxu0 %v3938
  %4056 = vmatpush1.bf16.msra.mxu0 %v3937
  %4057 = vmatprep.subr.bf16.mxu0 %v3934
  %4058 = vmatpush1.bf16.msra.mxu0 %v3933
  %4059 = vmatprep.subr.bf16.mxu0 %v3930
  %4060 = vmatpush1.bf16.msra.mxu0 %v3929
  %4061 = vmatprep.subr.bf16.mxu0 %v3926
  %4062 = vmatpush1.bf16.msra.mxu0 %v3925
  %4063 = vmatprep.subr.bf16.mxu0 %v3922
  %4064 = vmatpush1.bf16.msra.mxu0 %v3921
  %4065 = vmatprep.subr.bf16.mxu0 %v3982
  %4066 = vmatpush2.bf16.msra.mxu0 %v3981
  %4067 = vmatprep.subr.bf16.mxu0 %v3978
  %4068 = vmatpush2.bf16.msra.mxu0 %v3977
  %4069 = vmatprep.subr.bf16.mxu0 %v3974
  %4070 = vmatpush2.bf16.msra.mxu0 %v3973
  %4071 = vmatprep.subr.bf16.mxu0 %v3970
  %4072 = vmatpush2.bf16.msra.mxu0 %v3969
  %4073 = vmatprep.subr.bf16.mxu0 %v3966
  %4074 = vmatpush2.bf16.msra.mxu0 %v3965
  %4075 = vmatprep.subr.bf16.mxu0 %v3962
  %4076 = vmatpush2.bf16.msra.mxu0 %v3961
  %4077 = vmatprep.subr.bf16.mxu0 %v3958
  %4078 = vmatpush2.bf16.msra.mxu0 %v3957
  %4079 = vmatprep.subr.bf16.mxu0 %v3954
  %4080 = vmatpush2.bf16.msra.mxu0 %v3953
  %4081 = vmatprep.mubr.bf16.mxu0 %v3664
  %4082 = vmatmul.mubr.bf16.gmra.mxu0 %v3663
  %v4083 = vpop.f32.mrf.mxu0
  %v4084 = vadd.f32 %v23, %v4083
  %v4085 = vpop.f32.mrf.mxu0
  %v4086 = vadd.f32 %v27, %v4085
  %v4087 = vpop.f32.mrf.mxu0
  %v4088 = vpop.f32.mrf.mxu0
  %4089 = vdwg.mxu0
  %4090 = vmatprep.subr.bf16.mxu0 %v3952
  %4091 = vmatpush1.bf16.msra.mxu0 %v3951
  %4092 = vmatprep.subr.bf16.mxu0 %v3948
  %4093 = vmatpush1.bf16.msra.mxu0 %v3947
  %4094 = vmatprep.subr.bf16.mxu0 %v3944
  %4095 = vmatpush1.bf16.msra.mxu0 %v3943
  %4096 = vmatprep.subr.bf16.mxu0 %v3940
  %4097 = vmatpush1.bf16.msra.mxu0 %v3939
  %4098 = vmatprep.subr.bf16.mxu0 %v3936
  %4099 = vmatpush1.bf16.msra.mxu0 %v3935
  %4100 = vmatprep.subr.bf16.mxu0 %v3932
  %4101 = vmatpush1.bf16.msra.mxu0 %v3931
  %4102 = vmatprep.subr.bf16.mxu0 %v3928
  %4103 = vmatpush1.bf16.msra.mxu0 %v3927
  %4104 = vmatprep.subr.bf16.mxu0 %v3924
  %4105 = vmatpush1.bf16.msra.mxu0 %v3923
  %4106 = vmatprep.subr.bf16.mxu0 %v3984
  %4107 = vmatpush2.bf16.msra.mxu0 %v3983
  %4108 = vmatprep.subr.bf16.mxu0 %v3980
  %4109 = vmatpush2.bf16.msra.mxu0 %v3979
  %4110 = vmatprep.subr.bf16.mxu0 %v3976
  %4111 = vmatpush2.bf16.msra.mxu0 %v3975
  %4112 = vmatprep.subr.bf16.mxu0 %v3972
  %4113 = vmatpush2.bf16.msra.mxu0 %v3971
  %4114 = vmatprep.subr.bf16.mxu0 %v3968
  %4115 = vmatpush2.bf16.msra.mxu0 %v3967
  %4116 = vmatprep.subr.bf16.mxu0 %v3964
  %4117 = vmatpush2.bf16.msra.mxu0 %v3963
  %4118 = vmatprep.subr.bf16.mxu0 %v3960
  %4119 = vmatpush2.bf16.msra.mxu0 %v3959
  %4120 = vmatprep.subr.bf16.mxu0 %v3956
  %4121 = vmatpush2.bf16.msra.mxu0 %v3955
  %4122 = vmatprep.mubr.bf16.mxu0 %v3664
  %4123 = vmatmul.mubr.bf16.gmra.mxu0 %v3663
  %v4124 = vpop.f32.mrf.mxu0
  %v4125 = vadd.f32 %v31, %v4124
  %v4126 = vpop.f32.mrf.mxu0
  %v4127 = vadd.f32 %v35, %v4126
  %v4128 = vpop.f32.mrf.mxu0
  %v4129 = vpop.f32.mrf.mxu0
  %4130 = vdwg.mxu0
  %v4131 = vxor.u32 %v4084, 2147483648
  %v4132 = vmul.f32 %v4131, 1.442695
  %v4133 = vpow.pop %v4132
  %v4134 = vadd.f32 %v4133, 1.0
  %v4135 = vrcp.pop %v4134
  %v4136 = vmul.f32 1.0, %v4135
  %v4137 = vxor.u32 %v4086, 2147483648
  %v4138 = vmul.f32 %v4137, 1.442695
  %v4139 = vpow.pop %v4138
  %v4140 = vadd.f32 %v4139, 1.0
  %v4141 = vrcp.pop %v4140
  %v4142 = vmul.f32 1.0, %v4141
  %v4143 = vtanh.pop %v4125
  %v4144 = vxor.u32 %v4127, 2147483648
  %v4145 = vmul.f32 %v4144, 1.442695
  %v4146 = vpow.pop %v4145
  %v4147 = vadd.f32 %v4146, 1.0
  %v4148 = vrcp.pop %v4147
  %v4149 = vmul.f32 1.0, %v4148
  %v4150 = vmul.f32 %v4142, %v3328
  %v4151 = vmul.f32 %v4136, %v4143
  %v4152 = vadd.f32 %v4150, %v4151
  %v4153 = vtanh.pop %v4152
  %v4154 = vmul.f32 %v4149, %v4153
  %s4155 = scalar_lea.vmem %s4, 8
  %4156 = vst [vmem:[%s4155] sm:$0x3] %v4154
  %s4157 = scalar_lea.vmem %s0, 40
  %v4158 = vld [vmem:[%s4157] sm:$0xff]
  %v4159 = vld [vmem:[%s1] sm:$0xff]
  %v4160 = vld [vmem:[%s1 + $0x8] sm:$0xff]
  %v4161 = vld [vmem:[%s1 + $0x10] sm:$0xff]
  %v4162 = vld [vmem:[%s1 + $0x18] sm:$0xff]
  %v4163 = vld [vmem:[%s1 + $0x20] sm:$0xff]
  %v4164 = vld [vmem:[%s1 + $0x28] sm:$0xff]
  %v4165 = vld [vmem:[%s1 + $0x30] sm:$0xff]
  %v4166 = vld [vmem:[%s1 + $0x38] sm:$0xff]
  %v4167 = vld [vmem:[%s1 + $0x40] sm:$0xff]
  %v4168 = vld [vmem:[%s1 + $0x48] sm:$0xff]
  %v4169 = vld [vmem:[%s1 + $0x50] sm:$0xff]
  %v4170 = vld [vmem:[%s1 + $0x58] sm:$0xff]
  %v4171 = vld [vmem:[%s1 + $0x60] sm:$0xff]
  %v4172 = vld [vmem:[%s1 + $0x68] sm:$0xff]
  %v4173 = vld [vmem:[%s1 + $0x70] sm:$0xff]
  %v4174 = vld [vmem:[%s1 + $0x78] sm:$0xff]
  %v4175 = vld [vmem:[%s1 + $0x80] sm:$0xff]
  %v4176 = vld [vmem:[%s1 + $0x88] sm:$0xff]
  %v4177 = vld [vmem:[%s1 + $0x90] sm:$0xff]
  %v4178 = vld [vmem:[%s1 + $0x98] sm:$0xff]
  %v4179 = vld [vmem:[%s1 + $0xa0] sm:$0xff]
  %v4180 = vld [vmem:[%s1 + $0xa8] sm:$0xff]
  %v4181 = vld [vmem:[%s1 + $0xb0] sm:$0xff]
  %v4182 = vld [vmem:[%s1 + $0xb8] sm:$0xff]
  %v4183 = vld [vmem:[%s1 + $0xc0] sm:$0xff]
  %v4184 = vld [vmem:[%s1 + $0xc8] sm:$0xff]
  %v4185 = vld [vmem:[%s1 + $0xd0] sm:$0xff]
  %v4186 = vld [vmem:[%s1 + $0xd8] sm:$0xff]
  %v4187 = vld [vmem:[%s1 + $0xe0] sm:$0xff]
  %v4188 = vld [vmem:[%s1 + $0xe8] sm:$0xff]
  %v4189 = vld [vmem:[%s1 + $0xf0] sm:$0xff]
  %v4190 = vld [vmem:[%s1 + $0xf8] sm:$0xff]
  %v4223 = vunpack.c.l.b16 %v4159
  %v4224 = vunpack.c.h.b16 %v4159
  %v4225 = vunpack.c.l.b16 %v4160
  %v4226 = vunpack.c.h.b16 %v4160
  %v4227 = vunpack.c.l.b16 %v4161
  %v4228 = vunpack.c.h.b16 %v4161
  %v4229 = vunpack.c.l.b16 %v4162
  %v4230 = vunpack.c.h.b16 %v4162
  %v4231 = vunpack.c.l.b16 %v4163
  %v4232 = vunpack.c.h.b16 %v4163
  %v4233 = vunpack.c.l.b16 %v4164
  %v4234 = vunpack.c.h.b16 %v4164
  %v4235 = vunpack.c.l.b16 %v4165
  %v4236 = vunpack.c.h.b16 %v4165
  %v4237 = vunpack.c.l.b16 %v4166
  %v4238 = vunpack.c.h.b16 %v4166
  %v4239 = vunpack.c.l.b16 %v4167
  %v4240 = vunpack.c.h.b16 %v4167
  %v4241 = vunpack.c.l.b16 %v4168
  %v4242 = vunpack.c.h.b16 %v4168
  %v4243 = vunpack.c.l.b16 %v4169
  %v4244 = vunpack.c.h.b16 %v4169
  %v4245 = vunpack.c.l.b16 %v4170
  %v4246 = vunpack.c.h.b16 %v4170
  %v4247 = vunpack.c.l.b16 %v4171
  %v4248 = vunpack.c.h.b16 %v4171
  %v4249 = vunpack.c.l.b16 %v4172
  %v4250 = vunpack.c.h.b16 %v4172
  %v4251 = vunpack.c.l.b16 %v4173
  %v4252 = vunpack.c.h.b16 %v4173
  %v4253 = vunpack.c.l.b16 %v4174
  %v4254 = vunpack.c.h.b16 %v4174
  %v4255 = vunpack.c.l.b16 %v4175
  %v4256 = vunpack.c.h.b16 %v4175
  %v4257 = vunpack.c.l.b16 %v4176
  %v4258 = vunpack.c.h.b16 %v4176
  %v4259 = vunpack.c.l.b16 %v4177
  %v4260 = vunpack.c.h.b16 %v4177
  %v4261 = vunpack.c.l.b16 %v4178
  %v4262 = vunpack.c.h.b16 %v4178
  %v4263 = vunpack.c.l.b16 %v4179
  %v4264 = vunpack.c.h.b16 %v4179
  %v4265 = vunpack.c.l.b16 %v4180
  %v4266 = vunpack.c.h.b16 %v4180
  %v4267 = vunpack.c.l.b16 %v4181
  %v4268 = vunpack.c.h.b16 %v4181
  %v4269 = vunpack.c.l.b16 %v4182
  %v4270 = vunpack.c.h.b16 %v4182
  %v4271 = vunpack.c.l.b16 %v4183
  %v4272 = vunpack.c.h.b16 %v4183
  %v4273 = vunpack.c.l.b16 %v4184
  %v4274 = vunpack.c.h.b16 %v4184
  %v4275 = vunpack.c.l.b16 %v4185
  %v4276 = vunpack.c.h.b16 %v4185
  %v4277 = vunpack.c.l.b16 %v4186
  %v4278 = vunpack.c.h.b16 %v4186
  %v4279 = vunpack.c.l.b16 %v4187
  %v4280 = vunpack.c.h.b16 %v4187
  %v4281 = vunpack.c.l.b16 %v4188
  %v4282 = vunpack.c.h.b16 %v4188
  %v4283 = vunpack.c.l.b16 %v4189
  %v4284 = vunpack.c.h.b16 %v4189
  %v4285 = vunpack.c.l.b16 %v4190
  %v4286 = vunpack.c.h.b16 %v4190
  %v4287 = vpack.c.b16 %v4227, %v4223
  %v4288 = vpack.c.b16 %v4228, %v4224
  %v4289 = vpack.c.b16 %v4229, %v4225
  %v4290 = vpack.c.b16 %v4230, %v4226
  %v4291 = vpack.c.b16 %v4235, %v4231
  %v4292 = vpack.c.b16 %v4236, %v4232
  %v4293 = vpack.c.b16 %v4237, %v4233
  %v4294 = vpack.c.b16 %v4238, %v4234
  %v4295 = vpack.c.b16 %v4243, %v4239
  %v4296 = vpack.c.b16 %v4244, %v4240
  %v4297 = vpack.c.b16 %v4245, %v4241
  %v4298 = vpack.c.b16 %v4246, %v4242
  %v4299 = vpack.c.b16 %v4251, %v4247
  %v4300 = vpack.c.b16 %v4252, %v4248
  %v4301 = vpack.c.b16 %v4253, %v4249
  %v4302 = vpack.c.b16 %v4254, %v4250
  %v4303 = vpack.c.b16 %v4259, %v4255
  %v4304 = vpack.c.b16 %v4260, %v4256
  %v4305 = vpack.c.b16 %v4261, %v4257
  %v4306 = vpack.c.b16 %v4262, %v4258
  %v4307 = vpack.c.b16 %v4267, %v4263
  %v4308 = vpack.c.b16 %v4268, %v4264
  %v4309 = vpack.c.b16 %v4269, %v4265
  %v4310 = vpack.c.b16 %v4270, %v4266
  %v4311 = vpack.c.b16 %v4275, %v4271
  %v4312 = vpack.c.b16 %v4276, %v4272
  %v4313 = vpack.c.b16 %v4277, %v4273
  %v4314 = vpack.c.b16 %v4278, %v4274
  %v4315 = vpack.c.b16 %v4283, %v4279
  %v4316 = vpack.c.b16 %v4284, %v4280
  %v4317 = vpack.c.b16 %v4285, %v4281
  %v4318 = vpack.c.b16 %v4286, %v4282
  %4351 = vmatprep.subr.bf16.mxu0 %v4316
  %4352 = vmatpush1.bf16.msra.mxu0 %v4315
  %4353 = vmatprep.subr.bf16.mxu0 %v4312
  %4354 = vmatpush1.bf16.msra.mxu0 %v4311
  %4355 = vmatprep.subr.bf16.mxu0 %v4308
  %4356 = vmatpush1.bf16.msra.mxu0 %v4307
  %4357 = vmatprep.subr.bf16.mxu0 %v4304
  %4358 = vmatpush1.bf16.msra.mxu0 %v4303
  %4359 = vmatprep.subr.bf16.mxu0 %v4300
  %4360 = vmatpush1.bf16.msra.mxu0 %v4299
  %4361 = vmatprep.subr.bf16.mxu0 %v4296
  %4362 = vmatpush1.bf16.msra.mxu0 %v4295
  %4363 = vmatprep.subr.bf16.mxu0 %v4292
  %4364 = vmatpush1.bf16.msra.mxu0 %v4291
  %4365 = vmatprep.subr.bf16.mxu0 %v4288
  %4366 = vmatpush1.bf16.msra.mxu0 %v4287
  %4367 = vmatprep.subr.bf16.mxu0 0
  %4368 = vmatpush2.bf16.msra.mxu0 0
  %4369 = vmatprep.subr.bf16.mxu0 0
  %4370 = vmatpush2.bf16.msra.mxu0 0
  %4371 = vmatprep.subr.bf16.mxu0 0
  %4372 = vmatpush2.bf16.msra.mxu0 0
  %4373 = vmatprep.subr.bf16.mxu0 0
  %4374 = vmatpush2.bf16.msra.mxu0 0
  %4375 = vmatprep.subr.bf16.mxu0 0
  %4376 = vmatpush2.bf16.msra.mxu0 0
  %4377 = vmatprep.subr.bf16.mxu0 0
  %4378 = vmatpush2.bf16.msra.mxu0 0
  %4379 = vmatprep.subr.bf16.mxu0 0
  %4380 = vmatpush2.bf16.msra.mxu0 0
  %4381 = vmatprep.subr.bf16.mxu0 0
  %4382 = vmatpush2.bf16.msra.mxu0 0
  %4383 = vmatprep.mubr.bf16.mxu0 0
  %4384 = vmatmul.mubr.bf16.gmra.mxu0 %v3663
  %v4385 = vpop.f32.mrf.mxu0
  %v4386 = vadd.f32 0.0, %v4385
  %v4387 = vpop.f32.mrf.mxu0
  %v4388 = vadd.f32 0.0, %v4387
  %v4389 = vpop.f32.mrf.mxu0
  %v4390 = vpop.f32.mrf.mxu0
  %4391 = vdwg.mxu0
  %4392 = vmatprep.subr.bf16.mxu0 %v4318
  %4393 = vmatpush1.bf16.msra.mxu0 %v4317
  %4394 = vmatprep.subr.bf16.mxu0 %v4314
  %4395 = vmatpush1.bf16.msra.mxu0 %v4313
  %4396 = vmatprep.subr.bf16.mxu0 %v4310
  %4397 = vmatpush1.bf16.msra.mxu0 %v4309
  %4398 = vmatprep.subr.bf16.mxu0 %v4306
  %4399 = vmatpush1.bf16.msra.mxu0 %v4305
  %4400 = vmatprep.subr.bf16.mxu0 %v4302
  %4401 = vmatpush1.bf16.msra.mxu0 %v4301
  %4402 = vmatprep.subr.bf16.mxu0 %v4298
  %4403 = vmatpush1.bf16.msra.mxu0 %v4297
  %4404 = vmatprep.subr.bf16.mxu0 %v4294
  %4405 = vmatpush1.bf16.msra.mxu0 %v4293
  %4406 = vmatprep.subr.bf16.mxu0 %v4290
  %4407 = vmatpush1.bf16.msra.mxu0 %v4289
  %4408 = vmatprep.subr.bf16.mxu0 0
  %4409 = vmatpush2.bf16.msra.mxu0 0
  %4410 = vmatprep.subr.bf16.mxu0 0
  %4411 = vmatpush2.bf16.msra.mxu0 0
  %4412 = vmatprep.subr.bf16.mxu0 0
  %4413 = vmatpush2.bf16.msra.mxu0 0
  %4414 = vmatprep.subr.bf16.mxu0 0
  %4415 = vmatpush2.bf16.msra.mxu0 0
  %4416 = vmatprep.subr.bf16.mxu0 0
  %4417 = vmatpush2.bf16.msra.mxu0 0
  %4418 = vmatprep.subr.bf16.mxu0 0
  %4419 = vmatpush2.bf16.msra.mxu0 0
  %4420 = vmatprep.subr.bf16.mxu0 0
  %4421 = vmatpush2.bf16.msra.mxu0 0
  %4422 = vmatprep.subr.bf16.mxu0 0
  %4423 = vmatpush2.bf16.msra.mxu0 0
  %4424 = vmatprep.mubr.bf16.mxu0 0
  %4425 = vmatmul.mubr.bf16.gmra.mxu0 %v3663
  %v4426 = vpop.f32.mrf.mxu0
  %v4427 = vadd.f32 0.0, %v4426
  %v4428 = vpop.f32.mrf.mxu0
  %v4429 = vadd.f32 0.0, %v4428
  %v4430 = vpop.f32.mrf.mxu0
  %v4431 = vpop.f32.mrf.mxu0
  %4432 = vdwg.mxu0
  %v4437 = vcombine.low %v4386, %v4388
  %v4438 = vcombine.low %v4427, %v4429
  %v4440 = vunpack.c.l.s4 1983009808
  %v4441 = vunpack.c.0.s8 %v4440
  %v4442 = vlaneseq
  %v4443 = vshrl.u32 %v4442, 7
  %v4444 = vsub.s32 %v4441, %v4443
  %v4445 = vrot.slane %v4437, %v4444
  %v4447 = vunpack.c.l.s4 1983009808
  %v4448 = vunpack.c.0.s8 %v4447
  %v4449 = vlaneseq
  %v4450 = vshrl.u32 %v4449, 7
  %v4451 = vsub.s32 %v4448, %v4450
  %v4452 = vrot.slane %v4438, %v4451
  %v4453 = vcombine.low %v4445, %v4452
  %v4455 = vadd.f32 %v4158, %v4453
  %v4456 = vxor.u32 %v4455, 2147483648
  %v4457 = vmul.f32 %v4456, 1.442695
  %v4458 = vpow.pop %v4457
  %v4459 = vadd.f32 %v4458, 1.0
  %v4460 = vrcp.pop %v4459
  %v4461 = vmul.f32 1.0, %v4460
  %v4463 = vrot.slane %v4455, 2
  %v4465 = vxor.u32 %v4463, 2147483648
  %v4466 = vmul.f32 %v4465, 1.442695
  %v4467 = vpow.pop %v4466
  %v4468 = vadd.f32 %v4467, 1.0
  %v4469 = vrcp.pop %v4468
  %v4470 = vmul.f32 1.0, %v4469
  %v4471 = vrot.slane %v4455, 4
  %v4473 = vtanh.pop %v4471
  %v4474 = vrot.slane %v4455, 6
  %v4476 = vxor.u32 %v4474, 2147483648
  %v4477 = vmul.f32 %v4476, 1.442695
  %v4478 = vpow.pop %v4477
  %v4479 = vadd.f32 %v4478, 1.0
  %v4480 = vrcp.pop %v4479
  %v4481 = vmul.f32 1.0, %v4480
  %v4482 = vmul.f32 %v4470, %v3660
  %v4483 = vmul.f32 %v4461, %v4473
  %v4484 = vadd.f32 %v4482, %v4483
  %v4485 = vtanh.pop %v4484
  %v4486 = vmul.f32 %v4481, %v4485
  %v4487 = vpack.c.bf16 %v4486, %v4486
  %v4488 = vpack.c.bf16 %v4154, %v4154
  %v4489 = vld [vmem:[%s2] sm:$0xff]
  %v4490 = vld [vmem:[%s2 + $0x8] sm:$0xff]
  %v4491 = vld [vmem:[%s2 + $0x10] sm:$0xff]
  %v4492 = vld [vmem:[%s2 + $0x18] sm:$0xff]
  %v4493 = vld [vmem:[%s2 + $0x20] sm:$0xff]
  %v4494 = vld [vmem:[%s2 + $0x28] sm:$0xff]
  %v4495 = vld [vmem:[%s2 + $0x30] sm:$0xff]
  %v4496 = vld [vmem:[%s2 + $0x38] sm:$0xff]
  %v4497 = vld [vmem:[%s2 + $0x40] sm:$0xff]
  %v4498 = vld [vmem:[%s2 + $0x48] sm:$0xff]
  %v4499 = vld [vmem:[%s2 + $0x50] sm:$0xff]
  %v4500 = vld [vmem:[%s2 + $0x58] sm:$0xff]
  %v4501 = vld [vmem:[%s2 + $0x60] sm:$0xff]
  %v4502 = vld [vmem:[%s2 + $0x68] sm:$0xff]
  %v4503 = vld [vmem:[%s2 + $0x70] sm:$0xff]
  %v4504 = vld [vmem:[%s2 + $0x78] sm:$0xff]
  %v4505 = vld [vmem:[%s2 + $0x80] sm:$0xff]
  %v4506 = vld [vmem:[%s2 + $0x88] sm:$0xff]
  %v4507 = vld [vmem:[%s2 + $0x90] sm:$0xff]
  %v4508 = vld [vmem:[%s2 + $0x98] sm:$0xff]
  %v4509 = vld [vmem:[%s2 + $0xa0] sm:$0xff]
  %v4510 = vld [vmem:[%s2 + $0xa8] sm:$0xff]
  %v4511 = vld [vmem:[%s2 + $0xb0] sm:$0xff]
  %v4512 = vld [vmem:[%s2 + $0xb8] sm:$0xff]
  %v4513 = vld [vmem:[%s2 + $0xc0] sm:$0xff]
  %v4514 = vld [vmem:[%s2 + $0xc8] sm:$0xff]
  %v4515 = vld [vmem:[%s2 + $0xd0] sm:$0xff]
  %v4516 = vld [vmem:[%s2 + $0xd8] sm:$0xff]
  %v4517 = vld [vmem:[%s2 + $0xe0] sm:$0xff]
  %v4518 = vld [vmem:[%s2 + $0xe8] sm:$0xff]
  %v4519 = vld [vmem:[%s2 + $0xf0] sm:$0xff]
  %v4520 = vld [vmem:[%s2 + $0xf8] sm:$0xff]
  %v4521 = vld [vmem:[%s2 + $0x100] sm:$0xff]
  %v4522 = vld [vmem:[%s2 + $0x108] sm:$0xff]
  %v4523 = vld [vmem:[%s2 + $0x110] sm:$0xff]
  %v4524 = vld [vmem:[%s2 + $0x118] sm:$0xff]
  %v4525 = vld [vmem:[%s2 + $0x120] sm:$0xff]
  %v4526 = vld [vmem:[%s2 + $0x128] sm:$0xff]
  %v4527 = vld [vmem:[%s2 + $0x130] sm:$0xff]
  %v4528 = vld [vmem:[%s2 + $0x138] sm:$0xff]
  %v4529 = vld [vmem:[%s2 + $0x140] sm:$0xff]
  %v4530 = vld [vmem:[%s2 + $0x148] sm:$0xff]
  %v4531 = vld [vmem:[%s2 + $0x150] sm:$0xff]
  %v4532 = vld [vmem:[%s2 + $0x158] sm:$0xff]
  %v4533 = vld [vmem:[%s2 + $0x160] sm:$0xff]
  %v4534 = vld [vmem:[%s2 + $0x168] sm:$0xff]
  %v4535 = vld [vmem:[%s2 + $0x170] sm:$0xff]
  %v4536 = vld [vmem:[%s2 + $0x178] sm:$0xff]
  %v4537 = vld [vmem:[%s2 + $0x180] sm:$0xff]
  %v4538 = vld [vmem:[%s2 + $0x188] sm:$0xff]
  %v4539 = vld [vmem:[%s2 + $0x190] sm:$0xff]
  %v4540 = vld [vmem:[%s2 + $0x198] sm:$0xff]
  %v4541 = vld [vmem:[%s2 + $0x1a0] sm:$0xff]
  %v4542 = vld [vmem:[%s2 + $0x1a8] sm:$0xff]
  %v4543 = vld [vmem:[%s2 + $0x1b0] sm:$0xff]
  %v4544 = vld [vmem:[%s2 + $0x1b8] sm:$0xff]
  %v4545 = vld [vmem:[%s2 + $0x1c0] sm:$0xff]
  %v4546 = vld [vmem:[%s2 + $0x1c8] sm:$0xff]
  %v4547 = vld [vmem:[%s2 + $0x1d0] sm:$0xff]
  %v4548 = vld [vmem:[%s2 + $0x1d8] sm:$0xff]
  %v4549 = vld [vmem:[%s2 + $0x1e0] sm:$0xff]
  %v4550 = vld [vmem:[%s2 + $0x1e8] sm:$0xff]
  %v4551 = vld [vmem:[%s2 + $0x1f0] sm:$0xff]
  %v4552 = vld [vmem:[%s2 + $0x1f8] sm:$0xff]
  %v4617 = vunpack.c.l.b16 %v4489
  %v4618 = vunpack.c.h.b16 %v4489
  %v4619 = vunpack.c.l.b16 %v4490
  %v4620 = vunpack.c.h.b16 %v4490
  %v4621 = vunpack.c.l.b16 %v4491
  %v4622 = vunpack.c.h.b16 %v4491
  %v4623 = vunpack.c.l.b16 %v4492
  %v4624 = vunpack.c.h.b16 %v4492
  %v4625 = vunpack.c.l.b16 %v4493
  %v4626 = vunpack.c.h.b16 %v4493
  %v4627 = vunpack.c.l.b16 %v4494
  %v4628 = vunpack.c.h.b16 %v4494
  %v4629 = vunpack.c.l.b16 %v4495
  %v4630 = vunpack.c.h.b16 %v4495
  %v4631 = vunpack.c.l.b16 %v4496
  %v4632 = vunpack.c.h.b16 %v4496
  %v4633 = vunpack.c.l.b16 %v4497
  %v4634 = vunpack.c.h.b16 %v4497
  %v4635 = vunpack.c.l.b16 %v4498
  %v4636 = vunpack.c.h.b16 %v4498
  %v4637 = vunpack.c.l.b16 %v4499
  %v4638 = vunpack.c.h.b16 %v4499
  %v4639 = vunpack.c.l.b16 %v4500
  %v4640 = vunpack.c.h.b16 %v4500
  %v4641 = vunpack.c.l.b16 %v4501
  %v4642 = vunpack.c.h.b16 %v4501
  %v4643 = vunpack.c.l.b16 %v4502
  %v4644 = vunpack.c.h.b16 %v4502
  %v4645 = vunpack.c.l.b16 %v4503
  %v4646 = vunpack.c.h.b16 %v4503
  %v4647 = vunpack.c.l.b16 %v4504
  %v4648 = vunpack.c.h.b16 %v4504
  %v4649 = vunpack.c.l.b16 %v4505
  %v4650 = vunpack.c.h.b16 %v4505
  %v4651 = vunpack.c.l.b16 %v4506
  %v4652 = vunpack.c.h.b16 %v4506
  %v4653 = vunpack.c.l.b16 %v4507
  %v4654 = vunpack.c.h.b16 %v4507
  %v4655 = vunpack.c.l.b16 %v4508
  %v4656 = vunpack.c.h.b16 %v4508
  %v4657 = vunpack.c.l.b16 %v4509
  %v4658 = vunpack.c.h.b16 %v4509
  %v4659 = vunpack.c.l.b16 %v4510
  %v4660 = vunpack.c.h.b16 %v4510
  %v4661 = vunpack.c.l.b16 %v4511
  %v4662 = vunpack.c.h.b16 %v4511
  %v4663 = vunpack.c.l.b16 %v4512
  %v4664 = vunpack.c.h.b16 %v4512
  %v4665 = vunpack.c.l.b16 %v4513
  %v4666 = vunpack.c.h.b16 %v4513
  %v4667 = vunpack.c.l.b16 %v4514
  %v4668 = vunpack.c.h.b16 %v4514
  %v4669 = vunpack.c.l.b16 %v4515
  %v4670 = vunpack.c.h.b16 %v4515
  %v4671 = vunpack.c.l.b16 %v4516
  %v4672 = vunpack.c.h.b16 %v4516
  %v4673 = vunpack.c.l.b16 %v4517
  %v4674 = vunpack.c.h.b16 %v4517
  %v4675 = vunpack.c.l.b16 %v4518
  %v4676 = vunpack.c.h.b16 %v4518
  %v4677 = vunpack.c.l.b16 %v4519
  %v4678 = vunpack.c.h.b16 %v4519
  %v4679 = vunpack.c.l.b16 %v4520
  %v4680 = vunpack.c.h.b16 %v4520
  %v4681 = vunpack.c.l.b16 %v4521
  %v4682 = vunpack.c.h.b16 %v4521
  %v4683 = vunpack.c.l.b16 %v4522
  %v4684 = vunpack.c.h.b16 %v4522
  %v4685 = vunpack.c.l.b16 %v4523
  %v4686 = vunpack.c.h.b16 %v4523
  %v4687 = vunpack.c.l.b16 %v4524
  %v4688 = vunpack.c.h.b16 %v4524
  %v4689 = vunpack.c.l.b16 %v4525
  %v4690 = vunpack.c.h.b16 %v4525
  %v4691 = vunpack.c.l.b16 %v4526
  %v4692 = vunpack.c.h.b16 %v4526
  %v4693 = vunpack.c.l.b16 %v4527
  %v4694 = vunpack.c.h.b16 %v4527
  %v4695 = vunpack.c.l.b16 %v4528
  %v4696 = vunpack.c.h.b16 %v4528
  %v4697 = vunpack.c.l.b16 %v4529
  %v4698 = vunpack.c.h.b16 %v4529
  %v4699 = vunpack.c.l.b16 %v4530
  %v4700 = vunpack.c.h.b16 %v4530
  %v4701 = vunpack.c.l.b16 %v4531
  %v4702 = vunpack.c.h.b16 %v4531
  %v4703 = vunpack.c.l.b16 %v4532
  %v4704 = vunpack.c.h.b16 %v4532
  %v4705 = vunpack.c.l.b16 %v4533
  %v4706 = vunpack.c.h.b16 %v4533
  %v4707 = vunpack.c.l.b16 %v4534
  %v4708 = vunpack.c.h.b16 %v4534
  %v4709 = vunpack.c.l.b16 %v4535
  %v4710 = vunpack.c.h.b16 %v4535
  %v4711 = vunpack.c.l.b16 %v4536
  %v4712 = vunpack.c.h.b16 %v4536
  %v4713 = vunpack.c.l.b16 %v4537
  %v4714 = vunpack.c.h.b16 %v4537
  %v4715 = vunpack.c.l.b16 %v4538
  %v4716 = vunpack.c.h.b16 %v4538
  %v4717 = vunpack.c.l.b16 %v4539
  %v4718 = vunpack.c.h.b16 %v4539
  %v4719 = vunpack.c.l.b16 %v4540
  %v4720 = vunpack.c.h.b16 %v4540
  %v4721 = vunpack.c.l.b16 %v4541
  %v4722 = vunpack.c.h.b16 %v4541
  %v4723 = vunpack.c.l.b16 %v4542
  %v4724 = vunpack.c.h.b16 %v4542
  %v4725 = vunpack.c.l.b16 %v4543
  %v4726 = vunpack.c.h.b16 %v4543
  %v4727 = vunpack.c.l.b16 %v4544
  %v4728 = vunpack.c.h.b16 %v4544
  %v4729 = vunpack.c.l.b16 %v4545
  %v4730 = vunpack.c.h.b16 %v4545
  %v4731 = vunpack.c.l.b16 %v4546
  %v4732 = vunpack.c.h.b16 %v4546
  %v4733 = vunpack.c.l.b16 %v4547
  %v4734 = vunpack.c.h.b16 %v4547
  %v4735 = vunpack.c.l.b16 %v4548
  %v4736 = vunpack.c.h.b16 %v4548
  %v4737 = vunpack.c.l.b16 %v4549
  %v4738 = vunpack.c.h.b16 %v4549
  %v4739 = vunpack.c.l.b16 %v4550
  %v4740 = vunpack.c.h.b16 %v4550
  %v4741 = vunpack.c.l.b16 %v4551
  %v4742 = vunpack.c.h.b16 %v4551
  %v4743 = vunpack.c.l.b16 %v4552
  %v4744 = vunpack.c.h.b16 %v4552
  %v4745 = vpack.c.b16 %v4621, %v4617
  %v4746 = vpack.c.b16 %v4622, %v4618
  %v4747 = vpack.c.b16 %v4623, %v4619
  %v4748 = vpack.c.b16 %v4624, %v4620
  %v4749 = vpack.c.b16 %v4629, %v4625
  %v4750 = vpack.c.b16 %v4630, %v4626
  %v4751 = vpack.c.b16 %v4631, %v4627
  %v4752 = vpack.c.b16 %v4632, %v4628
  %v4753 = vpack.c.b16 %v4637, %v4633
  %v4754 = vpack.c.b16 %v4638, %v4634
  %v4755 = vpack.c.b16 %v4639, %v4635
  %v4756 = vpack.c.b16 %v4640, %v4636
  %v4757 = vpack.c.b16 %v4645, %v4641
  %v4758 = vpack.c.b16 %v4646, %v4642
  %v4759 = vpack.c.b16 %v4647, %v4643
  %v4760 = vpack.c.b16 %v4648, %v4644
  %v4761 = vpack.c.b16 %v4653, %v4649
  %v4762 = vpack.c.b16 %v4654, %v4650
  %v4763 = vpack.c.b16 %v4655, %v4651
  %v4764 = vpack.c.b16 %v4656, %v4652
  %v4765 = vpack.c.b16 %v4661, %v4657
  %v4766 = vpack.c.b16 %v4662, %v4658
  %v4767 = vpack.c.b16 %v4663, %v4659
  %v4768 = vpack.c.b16 %v4664, %v4660
  %v4769 = vpack.c.b16 %v4669, %v4665
  %v4770 = vpack.c.b16 %v4670, %v4666
  %v4771 = vpack.c.b16 %v4671, %v4667
  %v4772 = vpack.c.b16 %v4672, %v4668
  %v4773 = vpack.c.b16 %v4677, %v4673
  %v4774 = vpack.c.b16 %v4678, %v4674
  %v4775 = vpack.c.b16 %v4679, %v4675
  %v4776 = vpack.c.b16 %v4680, %v4676
  %v4777 = vpack.c.b16 %v4685, %v4681
  %v4778 = vpack.c.b16 %v4686, %v4682
  %v4779 = vpack.c.b16 %v4687, %v4683
  %v4780 = vpack.c.b16 %v4688, %v4684
  %v4781 = vpack.c.b16 %v4693, %v4689
  %v4782 = vpack.c.b16 %v4694, %v4690
  %v4783 = vpack.c.b16 %v4695, %v4691
  %v4784 = vpack.c.b16 %v4696, %v4692
  %v4785 = vpack.c.b16 %v4701, %v4697
  %v4786 = vpack.c.b16 %v4702, %v4698
  %v4787 = vpack.c.b16 %v4703, %v4699
  %v4788 = vpack.c.b16 %v4704, %v4700
  %v4789 = vpack.c.b16 %v4709, %v4705
  %v4790 = vpack.c.b16 %v4710, %v4706
  %v4791 = vpack.c.b16 %v4711, %v4707
  %v4792 = vpack.c.b16 %v4712, %v4708
  %v4793 = vpack.c.b16 %v4717, %v4713
  %v4794 = vpack.c.b16 %v4718, %v4714
  %v4795 = vpack.c.b16 %v4719, %v4715
  %v4796 = vpack.c.b16 %v4720, %v4716
  %v4797 = vpack.c.b16 %v4725, %v4721
  %v4798 = vpack.c.b16 %v4726, %v4722
  %v4799 = vpack.c.b16 %v4727, %v4723
  %v4800 = vpack.c.b16 %v4728, %v4724
  %v4801 = vpack.c.b16 %v4733, %v4729
  %v4802 = vpack.c.b16 %v4734, %v4730
  %v4803 = vpack.c.b16 %v4735, %v4731
  %v4804 = vpack.c.b16 %v4736, %v4732
  %v4805 = vpack.c.b16 %v4741, %v4737
  %v4806 = vpack.c.b16 %v4742, %v4738
  %v4807 = vpack.c.b16 %v4743, %v4739
  %v4808 = vpack.c.b16 %v4744, %v4740
  %4873 = vmatprep.subr.bf16.mxu0 %v4774
  %4874 = vmatpush1.bf16.msra.mxu0 %v4773
  %4875 = vmatprep.subr.bf16.mxu0 %v4770
  %4876 = vmatpush1.bf16.msra.mxu0 %v4769
  %4877 = vmatprep.subr.bf16.mxu0 %v4766
  %4878 = vmatpush1.bf16.msra.mxu0 %v4765
  %4879 = vmatprep.subr.bf16.mxu0 %v4762
  %4880 = vmatpush1.bf16.msra.mxu0 %v4761
  %4881 = vmatprep.subr.bf16.mxu0 %v4758
  %4882 = vmatpush1.bf16.msra.mxu0 %v4757
  %4883 = vmatprep.subr.bf16.mxu0 %v4754
  %4884 = vmatpush1.bf16.msra.mxu0 %v4753
  %4885 = vmatprep.subr.bf16.mxu0 %v4750
  %4886 = vmatpush1.bf16.msra.mxu0 %v4749
  %4887 = vmatprep.subr.bf16.mxu0 %v4746
  %4888 = vmatpush1.bf16.msra.mxu0 %v4745
  %4889 = vmatprep.subr.bf16.mxu0 %v4806
  %4890 = vmatpush2.bf16.msra.mxu0 %v4805
  %4891 = vmatprep.subr.bf16.mxu0 %v4802
  %4892 = vmatpush2.bf16.msra.mxu0 %v4801
  %4893 = vmatprep.subr.bf16.mxu0 %v4798
  %4894 = vmatpush2.bf16.msra.mxu0 %v4797
  %4895 = vmatprep.subr.bf16.mxu0 %v4794
  %4896 = vmatpush2.bf16.msra.mxu0 %v4793
  %4897 = vmatprep.subr.bf16.mxu0 %v4790
  %4898 = vmatpush2.bf16.msra.mxu0 %v4789
  %4899 = vmatprep.subr.bf16.mxu0 %v4786
  %4900 = vmatpush2.bf16.msra.mxu0 %v4785
  %4901 = vmatprep.subr.bf16.mxu0 %v4782
  %4902 = vmatpush2.bf16.msra.mxu0 %v4781
  %4903 = vmatprep.subr.bf16.mxu0 %v4778
  %4904 = vmatpush2.bf16.msra.mxu0 %v4777
  %4905 = vmatprep.mubr.bf16.mxu0 %v4488
  %4906 = vmatmul.mubr.bf16.gmra.mxu0 %v4487
  %v4907 = vpop.f32.mrf.mxu0
  %v4908 = vadd.f32 %v23, %v4907
  %v4909 = vpop.f32.mrf.mxu0
  %v4910 = vadd.f32 %v27, %v4909
  %v4911 = vpop.f32.mrf.mxu0
  %v4912 = vpop.f32.mrf.mxu0
  %4913 = vdwg.mxu0
  %4914 = vmatprep.subr.bf16.mxu0 %v4776
  %4915 = vmatpush1.bf16.msra.mxu0 %v4775
  %4916 = vmatprep.subr.bf16.mxu0 %v4772
  %4917 = vmatpush1.bf16.msra.mxu0 %v4771
  %4918 = vmatprep.subr.bf16.mxu0 %v4768
  %4919 = vmatpush1.bf16.msra.mxu0 %v4767
  %4920 = vmatprep.subr.bf16.mxu0 %v4764
  %4921 = vmatpush1.bf16.msra.mxu0 %v4763
  %4922 = vmatprep.subr.bf16.mxu0 %v4760
  %4923 = vmatpush1.bf16.msra.mxu0 %v4759
  %4924 = vmatprep.subr.bf16.mxu0 %v4756
  %4925 = vmatpush1.bf16.msra.mxu0 %v4755
  %4926 = vmatprep.subr.bf16.mxu0 %v4752
  %4927 = vmatpush1.bf16.msra.mxu0 %v4751
  %4928 = vmatprep.subr.bf16.mxu0 %v4748
  %4929 = vmatpush1.bf16.msra.mxu0 %v4747
  %4930 = vmatprep.subr.bf16.mxu0 %v4808
  %4931 = vmatpush2.bf16.msra.mxu0 %v4807
  %4932 = vmatprep.subr.bf16.mxu0 %v4804
  %4933 = vmatpush2.bf16.msra.mxu0 %v4803
  %4934 = vmatprep.subr.bf16.mxu0 %v4800
  %4935 = vmatpush2.bf16.msra.mxu0 %v4799
  %4936 = vmatprep.subr.bf16.mxu0 %v4796
  %4937 = vmatpush2.bf16.msra.mxu0 %v4795
  %4938 = vmatprep.subr.bf16.mxu0 %v4792
  %4939 = vmatpush2.bf16.msra.mxu0 %v4791
  %4940 = vmatprep.subr.bf16.mxu0 %v4788
  %4941 = vmatpush2.bf16.msra.mxu0 %v4787
  %4942 = vmatprep.subr.bf16.mxu0 %v4784
  %4943 = vmatpush2.bf16.msra.mxu0 %v4783
  %4944 = vmatprep.subr.bf16.mxu0 %v4780
  %4945 = vmatpush2.bf16.msra.mxu0 %v4779
  %4946 = vmatprep.mubr.bf16.mxu0 %v4488
  %4947 = vmatmul.mubr.bf16.gmra.mxu0 %v4487
  %v4948 = vpop.f32.mrf.mxu0
  %v4949 = vadd.f32 %v31, %v4948
  %v4950 = vpop.f32.mrf.mxu0
  %v4951 = vadd.f32 %v35, %v4950
  %v4952 = vpop.f32.mrf.mxu0
  %v4953 = vpop.f32.mrf.mxu0
  %4954 = vdwg.mxu0
  %v4955 = vxor.u32 %v4908, 2147483648
  %v4956 = vmul.f32 %v4955, 1.442695
  %v4957 = vpow.pop %v4956
  %v4958 = vadd.f32 %v4957, 1.0
  %v4959 = vrcp.pop %v4958
  %v4960 = vmul.f32 1.0, %v4959
  %v4961 = vxor.u32 %v4910, 2147483648
  %v4962 = vmul.f32 %v4961, 1.442695
  %v4963 = vpow.pop %v4962
  %v4964 = vadd.f32 %v4963, 1.0
  %v4965 = vrcp.pop %v4964
  %v4966 = vmul.f32 1.0, %v4965
  %v4967 = vtanh.pop %v4949
  %v4968 = vxor.u32 %v4951, 2147483648
  %v4969 = vmul.f32 %v4968, 1.442695
  %v4970 = vpow.pop %v4969
  %v4971 = vadd.f32 %v4970, 1.0
  %v4972 = vrcp.pop %v4971
  %v4973 = vmul.f32 1.0, %v4972
  %v4974 = vmul.f32 %v4966, %v4152
  %v4975 = vmul.f32 %v4960, %v4967
  %v4976 = vadd.f32 %v4974, %v4975
  %v4977 = vtanh.pop %v4976
  %v4978 = vmul.f32 %v4973, %v4977
  %s4979 = scalar_lea.vmem %s4, 10
  %4980 = vst [vmem:[%s4979] sm:$0x3] %v4978
  %s4981 = scalar_lea.vmem %s0, 48
  %v4982 = vld [vmem:[%s4981] sm:$0xff]
  %v4983 = vld [vmem:[%s1] sm:$0xff]
  %v4984 = vld [vmem:[%s1 + $0x8] sm:$0xff]
  %v4985 = vld [vmem:[%s1 + $0x10] sm:$0xff]
  %v4986 = vld [vmem:[%s1 + $0x18] sm:$0xff]
  %v4987 = vld [vmem:[%s1 + $0x20] sm:$0xff]
  %v4988 = vld [vmem:[%s1 + $0x28] sm:$0xff]
  %v4989 = vld [vmem:[%s1 + $0x30] sm:$0xff]
  %v4990 = vld [vmem:[%s1 + $0x38] sm:$0xff]
  %v4991 = vld [vmem:[%s1 + $0x40] sm:$0xff]
  %v4992 = vld [vmem:[%s1 + $0x48] sm:$0xff]
  %v4993 = vld [vmem:[%s1 + $0x50] sm:$0xff]
  %v4994 = vld [vmem:[%s1 + $0x58] sm:$0xff]
  %v4995 = vld [vmem:[%s1 + $0x60] sm:$0xff]
  %v4996 = vld [vmem:[%s1 + $0x68] sm:$0xff]
  %v4997 = vld [vmem:[%s1 + $0x70] sm:$0xff]
  %v4998 = vld [vmem:[%s1 + $0x78] sm:$0xff]
  %v4999 = vld [vmem:[%s1 + $0x80] sm:$0xff]
  %v5000 = vld [vmem:[%s1 + $0x88] sm:$0xff]
  %v5001 = vld [vmem:[%s1 + $0x90] sm:$0xff]
  %v5002 = vld [vmem:[%s1 + $0x98] sm:$0xff]
  %v5003 = vld [vmem:[%s1 + $0xa0] sm:$0xff]
  %v5004 = vld [vmem:[%s1 + $0xa8] sm:$0xff]
  %v5005 = vld [vmem:[%s1 + $0xb0] sm:$0xff]
  %v5006 = vld [vmem:[%s1 + $0xb8] sm:$0xff]
  %v5007 = vld [vmem:[%s1 + $0xc0] sm:$0xff]
  %v5008 = vld [vmem:[%s1 + $0xc8] sm:$0xff]
  %v5009 = vld [vmem:[%s1 + $0xd0] sm:$0xff]
  %v5010 = vld [vmem:[%s1 + $0xd8] sm:$0xff]
  %v5011 = vld [vmem:[%s1 + $0xe0] sm:$0xff]
  %v5012 = vld [vmem:[%s1 + $0xe8] sm:$0xff]
  %v5013 = vld [vmem:[%s1 + $0xf0] sm:$0xff]
  %v5014 = vld [vmem:[%s1 + $0xf8] sm:$0xff]
  %v5047 = vunpack.c.l.b16 %v4983
  %v5048 = vunpack.c.h.b16 %v4983
  %v5049 = vunpack.c.l.b16 %v4984
  %v5050 = vunpack.c.h.b16 %v4984
  %v5051 = vunpack.c.l.b16 %v4985
  %v5052 = vunpack.c.h.b16 %v4985
  %v5053 = vunpack.c.l.b16 %v4986
  %v5054 = vunpack.c.h.b16 %v4986
  %v5055 = vunpack.c.l.b16 %v4987
  %v5056 = vunpack.c.h.b16 %v4987
  %v5057 = vunpack.c.l.b16 %v4988
  %v5058 = vunpack.c.h.b16 %v4988
  %v5059 = vunpack.c.l.b16 %v4989
  %v5060 = vunpack.c.h.b16 %v4989
  %v5061 = vunpack.c.l.b16 %v4990
  %v5062 = vunpack.c.h.b16 %v4990
  %v5063 = vunpack.c.l.b16 %v4991
  %v5064 = vunpack.c.h.b16 %v4991
  %v5065 = vunpack.c.l.b16 %v4992
  %v5066 = vunpack.c.h.b16 %v4992
  %v5067 = vunpack.c.l.b16 %v4993
  %v5068 = vunpack.c.h.b16 %v4993
  %v5069 = vunpack.c.l.b16 %v4994
  %v5070 = vunpack.c.h.b16 %v4994
  %v5071 = vunpack.c.l.b16 %v4995
  %v5072 = vunpack.c.h.b16 %v4995
  %v5073 = vunpack.c.l.b16 %v4996
  %v5074 = vunpack.c.h.b16 %v4996
  %v5075 = vunpack.c.l.b16 %v4997
  %v5076 = vunpack.c.h.b16 %v4997
  %v5077 = vunpack.c.l.b16 %v4998
  %v5078 = vunpack.c.h.b16 %v4998
  %v5079 = vunpack.c.l.b16 %v4999
  %v5080 = vunpack.c.h.b16 %v4999
  %v5081 = vunpack.c.l.b16 %v5000
  %v5082 = vunpack.c.h.b16 %v5000
  %v5083 = vunpack.c.l.b16 %v5001
  %v5084 = vunpack.c.h.b16 %v5001
  %v5085 = vunpack.c.l.b16 %v5002
  %v5086 = vunpack.c.h.b16 %v5002
  %v5087 = vunpack.c.l.b16 %v5003
  %v5088 = vunpack.c.h.b16 %v5003
  %v5089 = vunpack.c.l.b16 %v5004
  %v5090 = vunpack.c.h.b16 %v5004
  %v5091 = vunpack.c.l.b16 %v5005
  %v5092 = vunpack.c.h.b16 %v5005
  %v5093 = vunpack.c.l.b16 %v5006
  %v5094 = vunpack.c.h.b16 %v5006
  %v5095 = vunpack.c.l.b16 %v5007
  %v5096 = vunpack.c.h.b16 %v5007
  %v5097 = vunpack.c.l.b16 %v5008
  %v5098 = vunpack.c.h.b16 %v5008
  %v5099 = vunpack.c.l.b16 %v5009
  %v5100 = vunpack.c.h.b16 %v5009
  %v5101 = vunpack.c.l.b16 %v5010
  %v5102 = vunpack.c.h.b16 %v5010
  %v5103 = vunpack.c.l.b16 %v5011
  %v5104 = vunpack.c.h.b16 %v5011
  %v5105 = vunpack.c.l.b16 %v5012
  %v5106 = vunpack.c.h.b16 %v5012
  %v5107 = vunpack.c.l.b16 %v5013
  %v5108 = vunpack.c.h.b16 %v5013
  %v5109 = vunpack.c.l.b16 %v5014
  %v5110 = vunpack.c.h.b16 %v5014
  %v5111 = vpack.c.b16 %v5051, %v5047
  %v5112 = vpack.c.b16 %v5052, %v5048
  %v5113 = vpack.c.b16 %v5053, %v5049
  %v5114 = vpack.c.b16 %v5054, %v5050
  %v5115 = vpack.c.b16 %v5059, %v5055
  %v5116 = vpack.c.b16 %v5060, %v5056
  %v5117 = vpack.c.b16 %v5061, %v5057
  %v5118 = vpack.c.b16 %v5062, %v5058
  %v5119 = vpack.c.b16 %v5067, %v5063
  %v5120 = vpack.c.b16 %v5068, %v5064
  %v5121 = vpack.c.b16 %v5069, %v5065
  %v5122 = vpack.c.b16 %v5070, %v5066
  %v5123 = vpack.c.b16 %v5075, %v5071
  %v5124 = vpack.c.b16 %v5076, %v5072
  %v5125 = vpack.c.b16 %v5077, %v5073
  %v5126 = vpack.c.b16 %v5078, %v5074
  %v5127 = vpack.c.b16 %v5083, %v5079
  %v5128 = vpack.c.b16 %v5084, %v5080
  %v5129 = vpack.c.b16 %v5085, %v5081
  %v5130 = vpack.c.b16 %v5086, %v5082
  %v5131 = vpack.c.b16 %v5091, %v5087
  %v5132 = vpack.c.b16 %v5092, %v5088
  %v5133 = vpack.c.b16 %v5093, %v5089
  %v5134 = vpack.c.b16 %v5094, %v5090
  %v5135 = vpack.c.b16 %v5099, %v5095
  %v5136 = vpack.c.b16 %v5100, %v5096
  %v5137 = vpack.c.b16 %v5101, %v5097
  %v5138 = vpack.c.b16 %v5102, %v5098
  %v5139 = vpack.c.b16 %v5107, %v5103
  %v5140 = vpack.c.b16 %v5108, %v5104
  %v5141 = vpack.c.b16 %v5109, %v5105
  %v5142 = vpack.c.b16 %v5110, %v5106
  %5175 = vmatprep.subr.bf16.mxu0 %v5140
  %5176 = vmatpush1.bf16.msra.mxu0 %v5139
  %5177 = vmatprep.subr.bf16.mxu0 %v5136
  %5178 = vmatpush1.bf16.msra.mxu0 %v5135
  %5179 = vmatprep.subr.bf16.mxu0 %v5132
  %5180 = vmatpush1.bf16.msra.mxu0 %v5131
  %5181 = vmatprep.subr.bf16.mxu0 %v5128
  %5182 = vmatpush1.bf16.msra.mxu0 %v5127
  %5183 = vmatprep.subr.bf16.mxu0 %v5124
  %5184 = vmatpush1.bf16.msra.mxu0 %v5123
  %5185 = vmatprep.subr.bf16.mxu0 %v5120
  %5186 = vmatpush1.bf16.msra.mxu0 %v5119
  %5187 = vmatprep.subr.bf16.mxu0 %v5116
  %5188 = vmatpush1.bf16.msra.mxu0 %v5115
  %5189 = vmatprep.subr.bf16.mxu0 %v5112
  %5190 = vmatpush1.bf16.msra.mxu0 %v5111
  %5191 = vmatprep.subr.bf16.mxu0 0
  %5192 = vmatpush2.bf16.msra.mxu0 0
  %5193 = vmatprep.subr.bf16.mxu0 0
  %5194 = vmatpush2.bf16.msra.mxu0 0
  %5195 = vmatprep.subr.bf16.mxu0 0
  %5196 = vmatpush2.bf16.msra.mxu0 0
  %5197 = vmatprep.subr.bf16.mxu0 0
  %5198 = vmatpush2.bf16.msra.mxu0 0
  %5199 = vmatprep.subr.bf16.mxu0 0
  %5200 = vmatpush2.bf16.msra.mxu0 0
  %5201 = vmatprep.subr.bf16.mxu0 0
  %5202 = vmatpush2.bf16.msra.mxu0 0
  %5203 = vmatprep.subr.bf16.mxu0 0
  %5204 = vmatpush2.bf16.msra.mxu0 0
  %5205 = vmatprep.subr.bf16.mxu0 0
  %5206 = vmatpush2.bf16.msra.mxu0 0
  %5207 = vmatprep.mubr.bf16.mxu0 0
  %5208 = vmatmul.mubr.bf16.gmra.mxu0 %v4487
  %v5209 = vpop.f32.mrf.mxu0
  %v5210 = vadd.f32 0.0, %v5209
  %v5211 = vpop.f32.mrf.mxu0
  %v5212 = vadd.f32 0.0, %v5211
  %v5213 = vpop.f32.mrf.mxu0
  %v5214 = vpop.f32.mrf.mxu0
  %5215 = vdwg.mxu0
  %5216 = vmatprep.subr.bf16.mxu0 %v5142
  %5217 = vmatpush1.bf16.msra.mxu0 %v5141
  %5218 = vmatprep.subr.bf16.mxu0 %v5138
  %5219 = vmatpush1.bf16.msra.mxu0 %v5137
  %5220 = vmatprep.subr.bf16.mxu0 %v5134
  %5221 = vmatpush1.bf16.msra.mxu0 %v5133
  %5222 = vmatprep.subr.bf16.mxu0 %v5130
  %5223 = vmatpush1.bf16.msra.mxu0 %v5129
  %5224 = vmatprep.subr.bf16.mxu0 %v5126
  %5225 = vmatpush1.bf16.msra.mxu0 %v5125
  %5226 = vmatprep.subr.bf16.mxu0 %v5122
  %5227 = vmatpush1.bf16.msra.mxu0 %v5121
  %5228 = vmatprep.subr.bf16.mxu0 %v5118
  %5229 = vmatpush1.bf16.msra.mxu0 %v5117
  %5230 = vmatprep.subr.bf16.mxu0 %v5114
  %5231 = vmatpush1.bf16.msra.mxu0 %v5113
  %5232 = vmatprep.subr.bf16.mxu0 0
  %5233 = vmatpush2.bf16.msra.mxu0 0
  %5234 = vmatprep.subr.bf16.mxu0 0
  %5235 = vmatpush2.bf16.msra.mxu0 0
  %5236 = vmatprep.subr.bf16.mxu0 0
  %5237 = vmatpush2.bf16.msra.mxu0 0
  %5238 = vmatprep.subr.bf16.mxu0 0
  %5239 = vmatpush2.bf16.msra.mxu0 0
  %5240 = vmatprep.subr.bf16.mxu0 0
  %5241 = vmatpush2.bf16.msra.mxu0 0
  %5242 = vmatprep.subr.bf16.mxu0 0
  %5243 = vmatpush2.bf16.msra.mxu0 0
  %5244 = vmatprep.subr.bf16.mxu0 0
  %5245 = vmatpush2.bf16.msra.mxu0 0
  %5246 = vmatprep.subr.bf16.mxu0 0
  %5247 = vmatpush2.bf16.msra.mxu0 0
  %5248 = vmatprep.mubr.bf16.mxu0 0
  %5249 = vmatmul.mubr.bf16.gmra.mxu0 %v4487
  %v5250 = vpop.f32.mrf.mxu0
  %v5251 = vadd.f32 0.0, %v5250
  %v5252 = vpop.f32.mrf.mxu0
  %v5253 = vadd.f32 0.0, %v5252
  %v5254 = vpop.f32.mrf.mxu0
  %v5255 = vpop.f32.mrf.mxu0
  %5256 = vdwg.mxu0
  %v5261 = vcombine.low %v5210, %v5212
  %v5262 = vcombine.low %v5251, %v5253
  %v5264 = vunpack.c.l.s4 1983009808
  %v5265 = vunpack.c.0.s8 %v5264
  %v5266 = vlaneseq
  %v5267 = vshrl.u32 %v5266, 7
  %v5268 = vsub.s32 %v5265, %v5267
  %v5269 = vrot.slane %v5261, %v5268
  %v5271 = vunpack.c.l.s4 1983009808
  %v5272 = vunpack.c.0.s8 %v5271
  %v5273 = vlaneseq
  %v5274 = vshrl.u32 %v5273, 7
  %v5275 = vsub.s32 %v5272, %v5274
  %v5276 = vrot.slane %v5262, %v5275
  %v5277 = vcombine.low %v5269, %v5276
  %v5279 = vadd.f32 %v4982, %v5277
  %v5280 = vxor.u32 %v5279, 2147483648
  %v5281 = vmul.f32 %v5280, 1.442695
  %v5282 = vpow.pop %v5281
  %v5283 = vadd.f32 %v5282, 1.0
  %v5284 = vrcp.pop %v5283
  %v5285 = vmul.f32 1.0, %v5284
  %v5287 = vrot.slane %v5279, 2
  %v5289 = vxor.u32 %v5287, 2147483648
  %v5290 = vmul.f32 %v5289, 1.442695
  %v5291 = vpow.pop %v5290
  %v5292 = vadd.f32 %v5291, 1.0
  %v5293 = vrcp.pop %v5292
  %v5294 = vmul.f32 1.0, %v5293
  %v5295 = vrot.slane %v5279, 4
  %v5297 = vtanh.pop %v5295
  %v5298 = vrot.slane %v5279, 6
  %v5300 = vxor.u32 %v5298, 2147483648
  %v5301 = vmul.f32 %v5300, 1.442695
  %v5302 = vpow.pop %v5301
  %v5303 = vadd.f32 %v5302, 1.0
  %v5304 = vrcp.pop %v5303
  %v5305 = vmul.f32 1.0, %v5304
  %v5306 = vmul.f32 %v5294, %v4484
  %v5307 = vmul.f32 %v5285, %v5297
  %v5308 = vadd.f32 %v5306, %v5307
  %v5309 = vtanh.pop %v5308
  %v5310 = vmul.f32 %v5305, %v5309
  %v5311 = vpack.c.bf16 %v5310, %v5310
  %v5312 = vpack.c.bf16 %v4978, %v4978
  %v5313 = vld [vmem:[%s2] sm:$0xff]
  %v5314 = vld [vmem:[%s2 + $0x8] sm:$0xff]
  %v5315 = vld [vmem:[%s2 + $0x10] sm:$0xff]
  %v5316 = vld [vmem:[%s2 + $0x18] sm:$0xff]
  %v5317 = vld [vmem:[%s2 + $0x20] sm:$0xff]
  %v5318 = vld [vmem:[%s2 + $0x28] sm:$0xff]
  %v5319 = vld [vmem:[%s2 + $0x30] sm:$0xff]
  %v5320 = vld [vmem:[%s2 + $0x38] sm:$0xff]
  %v5321 = vld [vmem:[%s2 + $0x40] sm:$0xff]
  %v5322 = vld [vmem:[%s2 + $0x48] sm:$0xff]
  %v5323 = vld [vmem:[%s2 + $0x50] sm:$0xff]
  %v5324 = vld [vmem:[%s2 + $0x58] sm:$0xff]
  %v5325 = vld [vmem:[%s2 + $0x60] sm:$0xff]
  %v5326 = vld [vmem:[%s2 + $0x68] sm:$0xff]
  %v5327 = vld [vmem:[%s2 + $0x70] sm:$0xff]
  %v5328 = vld [vmem:[%s2 + $0x78] sm:$0xff]
  %v5329 = vld [vmem:[%s2 + $0x80] sm:$0xff]
  %v5330 = vld [vmem:[%s2 + $0x88] sm:$0xff]
  %v5331 = vld [vmem:[%s2 + $0x90] sm:$0xff]
  %v5332 = vld [vmem:[%s2 + $0x98] sm:$0xff]
  %v5333 = vld [vmem:[%s2 + $0xa0] sm:$0xff]
  %v5334 = vld [vmem:[%s2 + $0xa8] sm:$0xff]
  %v5335 = vld [vmem:[%s2 + $0xb0] sm:$0xff]
  %v5336 = vld [vmem:[%s2 + $0xb8] sm:$0xff]
  %v5337 = vld [vmem:[%s2 + $0xc0] sm:$0xff]
  %v5338 = vld [vmem:[%s2 + $0xc8] sm:$0xff]
  %v5339 = vld [vmem:[%s2 + $0xd0] sm:$0xff]
  %v5340 = vld [vmem:[%s2 + $0xd8] sm:$0xff]
  %v5341 = vld [vmem:[%s2 + $0xe0] sm:$0xff]
  %v5342 = vld [vmem:[%s2 + $0xe8] sm:$0xff]
  %v5343 = vld [vmem:[%s2 + $0xf0] sm:$0xff]
  %v5344 = vld [vmem:[%s2 + $0xf8] sm:$0xff]
  %v5345 = vld [vmem:[%s2 + $0x100] sm:$0xff]
  %v5346 = vld [vmem:[%s2 + $0x108] sm:$0xff]
  %v5347 = vld [vmem:[%s2 + $0x110] sm:$0xff]
  %v5348 = vld [vmem:[%s2 + $0x118] sm:$0xff]
  %v5349 = vld [vmem:[%s2 + $0x120] sm:$0xff]
  %v5350 = vld [vmem:[%s2 + $0x128] sm:$0xff]
  %v5351 = vld [vmem:[%s2 + $0x130] sm:$0xff]
  %v5352 = vld [vmem:[%s2 + $0x138] sm:$0xff]
  %v5353 = vld [vmem:[%s2 + $0x140] sm:$0xff]
  %v5354 = vld [vmem:[%s2 + $0x148] sm:$0xff]
  %v5355 = vld [vmem:[%s2 + $0x150] sm:$0xff]
  %v5356 = vld [vmem:[%s2 + $0x158] sm:$0xff]
  %v5357 = vld [vmem:[%s2 + $0x160] sm:$0xff]
  %v5358 = vld [vmem:[%s2 + $0x168] sm:$0xff]
  %v5359 = vld [vmem:[%s2 + $0x170] sm:$0xff]
  %v5360 = vld [vmem:[%s2 + $0x178] sm:$0xff]
  %v5361 = vld [vmem:[%s2 + $0x180] sm:$0xff]
  %v5362 = vld [vmem:[%s2 + $0x188] sm:$0xff]
  %v5363 = vld [vmem:[%s2 + $0x190] sm:$0xff]
  %v5364 = vld [vmem:[%s2 + $0x198] sm:$0xff]
  %v5365 = vld [vmem:[%s2 + $0x1a0] sm:$0xff]
  %v5366 = vld [vmem:[%s2 + $0x1a8] sm:$0xff]
  %v5367 = vld [vmem:[%s2 + $0x1b0] sm:$0xff]
  %v5368 = vld [vmem:[%s2 + $0x1b8] sm:$0xff]
  %v5369 = vld [vmem:[%s2 + $0x1c0] sm:$0xff]
  %v5370 = vld [vmem:[%s2 + $0x1c8] sm:$0xff]
  %v5371 = vld [vmem:[%s2 + $0x1d0] sm:$0xff]
  %v5372 = vld [vmem:[%s2 + $0x1d8] sm:$0xff]
  %v5373 = vld [vmem:[%s2 + $0x1e0] sm:$0xff]
  %v5374 = vld [vmem:[%s2 + $0x1e8] sm:$0xff]
  %v5375 = vld [vmem:[%s2 + $0x1f0] sm:$0xff]
  %v5376 = vld [vmem:[%s2 + $0x1f8] sm:$0xff]
  %v5441 = vunpack.c.l.b16 %v5313
  %v5442 = vunpack.c.h.b16 %v5313
  %v5443 = vunpack.c.l.b16 %v5314
  %v5444 = vunpack.c.h.b16 %v5314
  %v5445 = vunpack.c.l.b16 %v5315
  %v5446 = vunpack.c.h.b16 %v5315
  %v5447 = vunpack.c.l.b16 %v5316
  %v5448 = vunpack.c.h.b16 %v5316
  %v5449 = vunpack.c.l.b16 %v5317
  %v5450 = vunpack.c.h.b16 %v5317
  %v5451 = vunpack.c.l.b16 %v5318
  %v5452 = vunpack.c.h.b16 %v5318
  %v5453 = vunpack.c.l.b16 %v5319
  %v5454 = vunpack.c.h.b16 %v5319
  %v5455 = vunpack.c.l.b16 %v5320
  %v5456 = vunpack.c.h.b16 %v5320
  %v5457 = vunpack.c.l.b16 %v5321
  %v5458 = vunpack.c.h.b16 %v5321
  %v5459 = vunpack.c.l.b16 %v5322
  %v5460 = vunpack.c.h.b16 %v5322
  %v5461 = vunpack.c.l.b16 %v5323
  %v5462 = vunpack.c.h.b16 %v5323
  %v5463 = vunpack.c.l.b16 %v5324
  %v5464 = vunpack.c.h.b16 %v5324
  %v5465 = vunpack.c.l.b16 %v5325
  %v5466 = vunpack.c.h.b16 %v5325
  %v5467 = vunpack.c.l.b16 %v5326
  %v5468 = vunpack.c.h.b16 %v5326
  %v5469 = vunpack.c.l.b16 %v5327
  %v5470 = vunpack.c.h.b16 %v5327
  %v5471 = vunpack.c.l.b16 %v5328
  %v5472 = vunpack.c.h.b16 %v5328
  %v5473 = vunpack.c.l.b16 %v5329
  %v5474 = vunpack.c.h.b16 %v5329
  %v5475 = vunpack.c.l.b16 %v5330
  %v5476 = vunpack.c.h.b16 %v5330
  %v5477 = vunpack.c.l.b16 %v5331
  %v5478 = vunpack.c.h.b16 %v5331
  %v5479 = vunpack.c.l.b16 %v5332
  %v5480 = vunpack.c.h.b16 %v5332
  %v5481 = vunpack.c.l.b16 %v5333
  %v5482 = vunpack.c.h.b16 %v5333
  %v5483 = vunpack.c.l.b16 %v5334
  %v5484 = vunpack.c.h.b16 %v5334
  %v5485 = vunpack.c.l.b16 %v5335
  %v5486 = vunpack.c.h.b16 %v5335
  %v5487 = vunpack.c.l.b16 %v5336
  %v5488 = vunpack.c.h.b16 %v5336
  %v5489 = vunpack.c.l.b16 %v5337
  %v5490 = vunpack.c.h.b16 %v5337
  %v5491 = vunpack.c.l.b16 %v5338
  %v5492 = vunpack.c.h.b16 %v5338
  %v5493 = vunpack.c.l.b16 %v5339
  %v5494 = vunpack.c.h.b16 %v5339
  %v5495 = vunpack.c.l.b16 %v5340
  %v5496 = vunpack.c.h.b16 %v5340
  %v5497 = vunpack.c.l.b16 %v5341
  %v5498 = vunpack.c.h.b16 %v5341
  %v5499 = vunpack.c.l.b16 %v5342
  %v5500 = vunpack.c.h.b16 %v5342
  %v5501 = vunpack.c.l.b16 %v5343
  %v5502 = vunpack.c.h.b16 %v5343
  %v5503 = vunpack.c.l.b16 %v5344
  %v5504 = vunpack.c.h.b16 %v5344
  %v5505 = vunpack.c.l.b16 %v5345
  %v5506 = vunpack.c.h.b16 %v5345
  %v5507 = vunpack.c.l.b16 %v5346
  %v5508 = vunpack.c.h.b16 %v5346
  %v5509 = vunpack.c.l.b16 %v5347
  %v5510 = vunpack.c.h.b16 %v5347
  %v5511 = vunpack.c.l.b16 %v5348
  %v5512 = vunpack.c.h.b16 %v5348
  %v5513 = vunpack.c.l.b16 %v5349
  %v5514 = vunpack.c.h.b16 %v5349
  %v5515 = vunpack.c.l.b16 %v5350
  %v5516 = vunpack.c.h.b16 %v5350
  %v5517 = vunpack.c.l.b16 %v5351
  %v5518 = vunpack.c.h.b16 %v5351
  %v5519 = vunpack.c.l.b16 %v5352
  %v5520 = vunpack.c.h.b16 %v5352
  %v5521 = vunpack.c.l.b16 %v5353
  %v5522 = vunpack.c.h.b16 %v5353
  %v5523 = vunpack.c.l.b16 %v5354
  %v5524 = vunpack.c.h.b16 %v5354
  %v5525 = vunpack.c.l.b16 %v5355
  %v5526 = vunpack.c.h.b16 %v5355
  %v5527 = vunpack.c.l.b16 %v5356
  %v5528 = vunpack.c.h.b16 %v5356
  %v5529 = vunpack.c.l.b16 %v5357
  %v5530 = vunpack.c.h.b16 %v5357
  %v5531 = vunpack.c.l.b16 %v5358
  %v5532 = vunpack.c.h.b16 %v5358
  %v5533 = vunpack.c.l.b16 %v5359
  %v5534 = vunpack.c.h.b16 %v5359
  %v5535 = vunpack.c.l.b16 %v5360
  %v5536 = vunpack.c.h.b16 %v5360
  %v5537 = vunpack.c.l.b16 %v5361
  %v5538 = vunpack.c.h.b16 %v5361
  %v5539 = vunpack.c.l.b16 %v5362
  %v5540 = vunpack.c.h.b16 %v5362
  %v5541 = vunpack.c.l.b16 %v5363
  %v5542 = vunpack.c.h.b16 %v5363
  %v5543 = vunpack.c.l.b16 %v5364
  %v5544 = vunpack.c.h.b16 %v5364
  %v5545 = vunpack.c.l.b16 %v5365
  %v5546 = vunpack.c.h.b16 %v5365
  %v5547 = vunpack.c.l.b16 %v5366
  %v5548 = vunpack.c.h.b16 %v5366
  %v5549 = vunpack.c.l.b16 %v5367
  %v5550 = vunpack.c.h.b16 %v5367
  %v5551 = vunpack.c.l.b16 %v5368
  %v5552 = vunpack.c.h.b16 %v5368
  %v5553 = vunpack.c.l.b16 %v5369
  %v5554 = vunpack.c.h.b16 %v5369
  %v5555 = vunpack.c.l.b16 %v5370
  %v5556 = vunpack.c.h.b16 %v5370
  %v5557 = vunpack.c.l.b16 %v5371
  %v5558 = vunpack.c.h.b16 %v5371
  %v5559 = vunpack.c.l.b16 %v5372
  %v5560 = vunpack.c.h.b16 %v5372
  %v5561 = vunpack.c.l.b16 %v5373
  %v5562 = vunpack.c.h.b16 %v5373
  %v5563 = vunpack.c.l.b16 %v5374
  %v5564 = vunpack.c.h.b16 %v5374
  %v5565 = vunpack.c.l.b16 %v5375
  %v5566 = vunpack.c.h.b16 %v5375
  %v5567 = vunpack.c.l.b16 %v5376
  %v5568 = vunpack.c.h.b16 %v5376
  %v5569 = vpack.c.b16 %v5445, %v5441
  %v5570 = vpack.c.b16 %v5446, %v5442
  %v5571 = vpack.c.b16 %v5447, %v5443
  %v5572 = vpack.c.b16 %v5448, %v5444
  %v5573 = vpack.c.b16 %v5453, %v5449
  %v5574 = vpack.c.b16 %v5454, %v5450
  %v5575 = vpack.c.b16 %v5455, %v5451
  %v5576 = vpack.c.b16 %v5456, %v5452
  %v5577 = vpack.c.b16 %v5461, %v5457
  %v5578 = vpack.c.b16 %v5462, %v5458
  %v5579 = vpack.c.b16 %v5463, %v5459
  %v5580 = vpack.c.b16 %v5464, %v5460
  %v5581 = vpack.c.b16 %v5469, %v5465
  %v5582 = vpack.c.b16 %v5470, %v5466
  %v5583 = vpack.c.b16 %v5471, %v5467
  %v5584 = vpack.c.b16 %v5472, %v5468
  %v5585 = vpack.c.b16 %v5477, %v5473
  %v5586 = vpack.c.b16 %v5478, %v5474
  %v5587 = vpack.c.b16 %v5479, %v5475
  %v5588 = vpack.c.b16 %v5480, %v5476
  %v5589 = vpack.c.b16 %v5485, %v5481
  %v5590 = vpack.c.b16 %v5486, %v5482
  %v5591 = vpack.c.b16 %v5487, %v5483
  %v5592 = vpack.c.b16 %v5488, %v5484
  %v5593 = vpack.c.b16 %v5493, %v5489
  %v5594 = vpack.c.b16 %v5494, %v5490
  %v5595 = vpack.c.b16 %v5495, %v5491
  %v5596 = vpack.c.b16 %v5496, %v5492
  %v5597 = vpack.c.b16 %v5501, %v5497
  %v5598 = vpack.c.b16 %v5502, %v5498
  %v5599 = vpack.c.b16 %v5503, %v5499
  %v5600 = vpack.c.b16 %v5504, %v5500
  %v5601 = vpack.c.b16 %v5509, %v5505
  %v5602 = vpack.c.b16 %v5510, %v5506
  %v5603 = vpack.c.b16 %v5511, %v5507
  %v5604 = vpack.c.b16 %v5512, %v5508
  %v5605 = vpack.c.b16 %v5517, %v5513
  %v5606 = vpack.c.b16 %v5518, %v5514
  %v5607 = vpack.c.b16 %v5519, %v5515
  %v5608 = vpack.c.b16 %v5520, %v5516
  %v5609 = vpack.c.b16 %v5525, %v5521
  %v5610 = vpack.c.b16 %v5526, %v5522
  %v5611 = vpack.c.b16 %v5527, %v5523
  %v5612 = vpack.c.b16 %v5528, %v5524
  %v5613 = vpack.c.b16 %v5533, %v5529
  %v5614 = vpack.c.b16 %v5534, %v5530
  %v5615 = vpack.c.b16 %v5535, %v5531
  %v5616 = vpack.c.b16 %v5536, %v5532
  %v5617 = vpack.c.b16 %v5541, %v5537
  %v5618 = vpack.c.b16 %v5542, %v5538
  %v5619 = vpack.c.b16 %v5543, %v5539
  %v5620 = vpack.c.b16 %v5544, %v5540
  %v5621 = vpack.c.b16 %v5549, %v5545
  %v5622 = vpack.c.b16 %v5550, %v5546
  %v5623 = vpack.c.b16 %v5551, %v5547
  %v5624 = vpack.c.b16 %v5552, %v5548
  %v5625 = vpack.c.b16 %v5557, %v5553
  %v5626 = vpack.c.b16 %v5558, %v5554
  %v5627 = vpack.c.b16 %v5559, %v5555
  %v5628 = vpack.c.b16 %v5560, %v5556
  %v5629 = vpack.c.b16 %v5565, %v5561
  %v5630 = vpack.c.b16 %v5566, %v5562
  %v5631 = vpack.c.b16 %v5567, %v5563
  %v5632 = vpack.c.b16 %v5568, %v5564
  %5697 = vmatprep.subr.bf16.mxu0 %v5598
  %5698 = vmatpush1.bf16.msra.mxu0 %v5597
  %5699 = vmatprep.subr.bf16.mxu0 %v5594
  %5700 = vmatpush1.bf16.msra.mxu0 %v5593
  %5701 = vmatprep.subr.bf16.mxu0 %v5590
  %5702 = vmatpush1.bf16.msra.mxu0 %v5589
  %5703 = vmatprep.subr.bf16.mxu0 %v5586
  %5704 = vmatpush1.bf16.msra.mxu0 %v5585
  %5705 = vmatprep.subr.bf16.mxu0 %v5582
  %5706 = vmatpush1.bf16.msra.mxu0 %v5581
  %5707 = vmatprep.subr.bf16.mxu0 %v5578
  %5708 = vmatpush1.bf16.msra.mxu0 %v5577
  %5709 = vmatprep.subr.bf16.mxu0 %v5574
  %5710 = vmatpush1.bf16.msra.mxu0 %v5573
  %5711 = vmatprep.subr.bf16.mxu0 %v5570
  %5712 = vmatpush1.bf16.msra.mxu0 %v5569
  %5713 = vmatprep.subr.bf16.mxu0 %v5630
  %5714 = vmatpush2.bf16.msra.mxu0 %v5629
  %5715 = vmatprep.subr.bf16.mxu0 %v5626
  %5716 = vmatpush2.bf16.msra.mxu0 %v5625
  %5717 = vmatprep.subr.bf16.mxu0 %v5622
  %5718 = vmatpush2.bf16.msra.mxu0 %v5621
  %5719 = vmatprep.subr.bf16.mxu0 %v5618
  %5720 = vmatpush2.bf16.msra.mxu0 %v5617
  %5721 = vmatprep.subr.bf16.mxu0 %v5614
  %5722 = vmatpush2.bf16.msra.mxu0 %v5613
  %5723 = vmatprep.subr.bf16.mxu0 %v5610
  %5724 = vmatpush2.bf16.msra.mxu0 %v5609
  %5725 = vmatprep.subr.bf16.mxu0 %v5606
  %5726 = vmatpush2.bf16.msra.mxu0 %v5605
  %5727 = vmatprep.subr.bf16.mxu0 %v5602
  %5728 = vmatpush2.bf16.msra.mxu0 %v5601
  %5729 = vmatprep.mubr.bf16.mxu0 %v5312
  %5730 = vmatmul.mubr.bf16.gmra.mxu0 %v5311
  %v5731 = vpop.f32.mrf.mxu0
  %v5732 = vadd.f32 %v23, %v5731
  %v5733 = vpop.f32.mrf.mxu0
  %v5734 = vadd.f32 %v27, %v5733
  %v5735 = vpop.f32.mrf.mxu0
  %v5736 = vpop.f32.mrf.mxu0
  %5737 = vdwg.mxu0
  %5738 = vmatprep.subr.bf16.mxu0 %v5600
  %5739 = vmatpush1.bf16.msra.mxu0 %v5599
  %5740 = vmatprep.subr.bf16.mxu0 %v5596
  %5741 = vmatpush1.bf16.msra.mxu0 %v5595
  %5742 = vmatprep.subr.bf16.mxu0 %v5592
  %5743 = vmatpush1.bf16.msra.mxu0 %v5591
  %5744 = vmatprep.subr.bf16.mxu0 %v5588
  %5745 = vmatpush1.bf16.msra.mxu0 %v5587
  %5746 = vmatprep.subr.bf16.mxu0 %v5584
  %5747 = vmatpush1.bf16.msra.mxu0 %v5583
  %5748 = vmatprep.subr.bf16.mxu0 %v5580
  %5749 = vmatpush1.bf16.msra.mxu0 %v5579
  %5750 = vmatprep.subr.bf16.mxu0 %v5576
  %5751 = vmatpush1.bf16.msra.mxu0 %v5575
  %5752 = vmatprep.subr.bf16.mxu0 %v5572
  %5753 = vmatpush1.bf16.msra.mxu0 %v5571
  %5754 = vmatprep.subr.bf16.mxu0 %v5632
  %5755 = vmatpush2.bf16.msra.mxu0 %v5631
  %5756 = vmatprep.subr.bf16.mxu0 %v5628
  %5757 = vmatpush2.bf16.msra.mxu0 %v5627
  %5758 = vmatprep.subr.bf16.mxu0 %v5624
  %5759 = vmatpush2.bf16.msra.mxu0 %v5623
  %5760 = vmatprep.subr.bf16.mxu0 %v5620
  %5761 = vmatpush2.bf16.msra.mxu0 %v5619
  %5762 = vmatprep.subr.bf16.mxu0 %v5616
  %5763 = vmatpush2.bf16.msra.mxu0 %v5615
  %5764 = vmatprep.subr.bf16.mxu0 %v5612
  %5765 = vmatpush2.bf16.msra.mxu0 %v5611
  %5766 = vmatprep.subr.bf16.mxu0 %v5608
  %5767 = vmatpush2.bf16.msra.mxu0 %v5607
  %5768 = vmatprep.subr.bf16.mxu0 %v5604
  %5769 = vmatpush2.bf16.msra.mxu0 %v5603
  %5770 = vmatprep.mubr.bf16.mxu0 %v5312
  %5771 = vmatmul.mubr.bf16.gmra.mxu0 %v5311
  %v5772 = vpop.f32.mrf.mxu0
  %v5773 = vadd.f32 %v31, %v5772
  %v5774 = vpop.f32.mrf.mxu0
  %v5775 = vadd.f32 %v35, %v5774
  %v5776 = vpop.f32.mrf.mxu0
  %v5777 = vpop.f32.mrf.mxu0
  %5778 = vdwg.mxu0
  %v5779 = vxor.u32 %v5732, 2147483648
  %v5780 = vmul.f32 %v5779, 1.442695
  %v5781 = vpow.pop %v5780
  %v5782 = vadd.f32 %v5781, 1.0
  %v5783 = vrcp.pop %v5782
  %v5784 = vmul.f32 1.0, %v5783
  %v5785 = vxor.u32 %v5734, 2147483648
  %v5786 = vmul.f32 %v5785, 1.442695
  %v5787 = vpow.pop %v5786
  %v5788 = vadd.f32 %v5787, 1.0
  %v5789 = vrcp.pop %v5788
  %v5790 = vmul.f32 1.0, %v5789
  %v5791 = vtanh.pop %v5773
  %v5792 = vxor.u32 %v5775, 2147483648
  %v5793 = vmul.f32 %v5792, 1.442695
  %v5794 = vpow.pop %v5793
  %v5795 = vadd.f32 %v5794, 1.0
  %v5796 = vrcp.pop %v5795
  %v5797 = vmul.f32 1.0, %v5796
  %v5798 = vmul.f32 %v5790, %v4976
  %v5799 = vmul.f32 %v5784, %v5791
  %v5800 = vadd.f32 %v5798, %v5799
  %v5801 = vtanh.pop %v5800
  %v5802 = vmul.f32 %v5797, %v5801
  %s5803 = scalar_lea.vmem %s4, 12
  %5804 = vst [vmem:[%s5803] sm:$0x3] %v5802
  %s5805 = scalar_lea.vmem %s0, 56
  %v5806 = vld [vmem:[%s5805] sm:$0xff]
  %v5807 = vld [vmem:[%s1] sm:$0xff]
  %v5808 = vld [vmem:[%s1 + $0x8] sm:$0xff]
  %v5809 = vld [vmem:[%s1 + $0x10] sm:$0xff]
  %v5810 = vld [vmem:[%s1 + $0x18] sm:$0xff]
  %v5811 = vld [vmem:[%s1 + $0x20] sm:$0xff]
  %v5812 = vld [vmem:[%s1 + $0x28] sm:$0xff]
  %v5813 = vld [vmem:[%s1 + $0x30] sm:$0xff]
  %v5814 = vld [vmem:[%s1 + $0x38] sm:$0xff]
  %v5815 = vld [vmem:[%s1 + $0x40] sm:$0xff]
  %v5816 = vld [vmem:[%s1 + $0x48] sm:$0xff]
  %v5817 = vld [vmem:[%s1 + $0x50] sm:$0xff]
  %v5818 = vld [vmem:[%s1 + $0x58] sm:$0xff]
  %v5819 = vld [vmem:[%s1 + $0x60] sm:$0xff]
  %v5820 = vld [vmem:[%s1 + $0x68] sm:$0xff]
  %v5821 = vld [vmem:[%s1 + $0x70] sm:$0xff]
  %v5822 = vld [vmem:[%s1 + $0x78] sm:$0xff]
  %v5823 = vld [vmem:[%s1 + $0x80] sm:$0xff]
  %v5824 = vld [vmem:[%s1 + $0x88] sm:$0xff]
  %v5825 = vld [vmem:[%s1 + $0x90] sm:$0xff]
  %v5826 = vld [vmem:[%s1 + $0x98] sm:$0xff]
  %v5827 = vld [vmem:[%s1 + $0xa0] sm:$0xff]
  %v5828 = vld [vmem:[%s1 + $0xa8] sm:$0xff]
  %v5829 = vld [vmem:[%s1 + $0xb0] sm:$0xff]
  %v5830 = vld [vmem:[%s1 + $0xb8] sm:$0xff]
  %v5831 = vld [vmem:[%s1 + $0xc0] sm:$0xff]
  %v5832 = vld [vmem:[%s1 + $0xc8] sm:$0xff]
  %v5833 = vld [vmem:[%s1 + $0xd0] sm:$0xff]
  %v5834 = vld [vmem:[%s1 + $0xd8] sm:$0xff]
  %v5835 = vld [vmem:[%s1 + $0xe0] sm:$0xff]
  %v5836 = vld [vmem:[%s1 + $0xe8] sm:$0xff]
  %v5837 = vld [vmem:[%s1 + $0xf0] sm:$0xff]
  %v5838 = vld [vmem:[%s1 + $0xf8] sm:$0xff]
  %v5871 = vunpack.c.l.b16 %v5807
  %v5872 = vunpack.c.h.b16 %v5807
  %v5873 = vunpack.c.l.b16 %v5808
  %v5874 = vunpack.c.h.b16 %v5808
  %v5875 = vunpack.c.l.b16 %v5809
  %v5876 = vunpack.c.h.b16 %v5809
  %v5877 = vunpack.c.l.b16 %v5810
  %v5878 = vunpack.c.h.b16 %v5810
  %v5879 = vunpack.c.l.b16 %v5811
  %v5880 = vunpack.c.h.b16 %v5811
  %v5881 = vunpack.c.l.b16 %v5812
  %v5882 = vunpack.c.h.b16 %v5812
  %v5883 = vunpack.c.l.b16 %v5813
  %v5884 = vunpack.c.h.b16 %v5813
  %v5885 = vunpack.c.l.b16 %v5814
  %v5886 = vunpack.c.h.b16 %v5814
  %v5887 = vunpack.c.l.b16 %v5815
  %v5888 = vunpack.c.h.b16 %v5815
  %v5889 = vunpack.c.l.b16 %v5816
  %v5890 = vunpack.c.h.b16 %v5816
  %v5891 = vunpack.c.l.b16 %v5817
  %v5892 = vunpack.c.h.b16 %v5817
  %v5893 = vunpack.c.l.b16 %v5818
  %v5894 = vunpack.c.h.b16 %v5818
  %v5895 = vunpack.c.l.b16 %v5819
  %v5896 = vunpack.c.h.b16 %v5819
  %v5897 = vunpack.c.l.b16 %v5820
  %v5898 = vunpack.c.h.b16 %v5820
  %v5899 = vunpack.c.l.b16 %v5821
  %v5900 = vunpack.c.h.b16 %v5821
  %v5901 = vunpack.c.l.b16 %v5822
  %v5902 = vunpack.c.h.b16 %v5822
  %v5903 = vunpack.c.l.b16 %v5823
  %v5904 = vunpack.c.h.b16 %v5823
  %v5905 = vunpack.c.l.b16 %v5824
  %v5906 = vunpack.c.h.b16 %v5824
  %v5907 = vunpack.c.l.b16 %v5825
  %v5908 = vunpack.c.h.b16 %v5825
  %v5909 = vunpack.c.l.b16 %v5826
  %v5910 = vunpack.c.h.b16 %v5826
  %v5911 = vunpack.c.l.b16 %v5827
  %v5912 = vunpack.c.h.b16 %v5827
  %v5913 = vunpack.c.l.b16 %v5828
  %v5914 = vunpack.c.h.b16 %v5828
  %v5915 = vunpack.c.l.b16 %v5829
  %v5916 = vunpack.c.h.b16 %v5829
  %v5917 = vunpack.c.l.b16 %v5830
  %v5918 = vunpack.c.h.b16 %v5830
  %v5919 = vunpack.c.l.b16 %v5831
  %v5920 = vunpack.c.h.b16 %v5831
  %v5921 = vunpack.c.l.b16 %v5832
  %v5922 = vunpack.c.h.b16 %v5832
  %v5923 = vunpack.c.l.b16 %v5833
  %v5924 = vunpack.c.h.b16 %v5833
  %v5925 = vunpack.c.l.b16 %v5834
  %v5926 = vunpack.c.h.b16 %v5834
  %v5927 = vunpack.c.l.b16 %v5835
  %v5928 = vunpack.c.h.b16 %v5835
  %v5929 = vunpack.c.l.b16 %v5836
  %v5930 = vunpack.c.h.b16 %v5836
  %v5931 = vunpack.c.l.b16 %v5837
  %v5932 = vunpack.c.h.b16 %v5837
  %v5933 = vunpack.c.l.b16 %v5838
  %v5934 = vunpack.c.h.b16 %v5838
  %v5935 = vpack.c.b16 %v5875, %v5871
  %v5936 = vpack.c.b16 %v5876, %v5872
  %v5937 = vpack.c.b16 %v5877, %v5873
  %v5938 = vpack.c.b16 %v5878, %v5874
  %v5939 = vpack.c.b16 %v5883, %v5879
  %v5940 = vpack.c.b16 %v5884, %v5880
  %v5941 = vpack.c.b16 %v5885, %v5881
  %v5942 = vpack.c.b16 %v5886, %v5882
  %v5943 = vpack.c.b16 %v5891, %v5887
  %v5944 = vpack.c.b16 %v5892, %v5888
  %v5945 = vpack.c.b16 %v5893, %v5889
  %v5946 = vpack.c.b16 %v5894, %v5890
  %v5947 = vpack.c.b16 %v5899, %v5895
  %v5948 = vpack.c.b16 %v5900, %v5896
  %v5949 = vpack.c.b16 %v5901, %v5897
  %v5950 = vpack.c.b16 %v5902, %v5898
  %v5951 = vpack.c.b16 %v5907, %v5903
  %v5952 = vpack.c.b16 %v5908, %v5904
  %v5953 = vpack.c.b16 %v5909, %v5905
  %v5954 = vpack.c.b16 %v5910, %v5906
  %v5955 = vpack.c.b16 %v5915, %v5911
  %v5956 = vpack.c.b16 %v5916, %v5912
  %v5957 = vpack.c.b16 %v5917, %v5913
  %v5958 = vpack.c.b16 %v5918, %v5914
  %v5959 = vpack.c.b16 %v5923, %v5919
  %v5960 = vpack.c.b16 %v5924, %v5920
  %v5961 = vpack.c.b16 %v5925, %v5921
  %v5962 = vpack.c.b16 %v5926, %v5922
  %v5963 = vpack.c.b16 %v5931, %v5927
  %v5964 = vpack.c.b16 %v5932, %v5928
  %v5965 = vpack.c.b16 %v5933, %v5929
  %v5966 = vpack.c.b16 %v5934, %v5930
  %5999 = vmatprep.subr.bf16.mxu0 %v5964
  %6000 = vmatpush1.bf16.msra.mxu0 %v5963
  %6001 = vmatprep.subr.bf16.mxu0 %v5960
  %6002 = vmatpush1.bf16.msra.mxu0 %v5959
  %6003 = vmatprep.subr.bf16.mxu0 %v5956
  %6004 = vmatpush1.bf16.msra.mxu0 %v5955
  %6005 = vmatprep.subr.bf16.mxu0 %v5952
  %6006 = vmatpush1.bf16.msra.mxu0 %v5951
  %6007 = vmatprep.subr.bf16.mxu0 %v5948
  %6008 = vmatpush1.bf16.msra.mxu0 %v5947
  %6009 = vmatprep.subr.bf16.mxu0 %v5944
  %6010 = vmatpush1.bf16.msra.mxu0 %v5943
  %6011 = vmatprep.subr.bf16.mxu0 %v5940
  %6012 = vmatpush1.bf16.msra.mxu0 %v5939
  %6013 = vmatprep.subr.bf16.mxu0 %v5936
  %6014 = vmatpush1.bf16.msra.mxu0 %v5935
  %6015 = vmatprep.subr.bf16.mxu0 0
  %6016 = vmatpush2.bf16.msra.mxu0 0
  %6017 = vmatprep.subr.bf16.mxu0 0
  %6018 = vmatpush2.bf16.msra.mxu0 0
  %6019 = vmatprep.subr.bf16.mxu0 0
  %6020 = vmatpush2.bf16.msra.mxu0 0
  %6021 = vmatprep.subr.bf16.mxu0 0
  %6022 = vmatpush2.bf16.msra.mxu0 0
  %6023 = vmatprep.subr.bf16.mxu0 0
  %6024 = vmatpush2.bf16.msra.mxu0 0
  %6025 = vmatprep.subr.bf16.mxu0 0
  %6026 = vmatpush2.bf16.msra.mxu0 0
  %6027 = vmatprep.subr.bf16.mxu0 0
  %6028 = vmatpush2.bf16.msra.mxu0 0
  %6029 = vmatprep.subr.bf16.mxu0 0
  %6030 = vmatpush2.bf16.msra.mxu0 0
  %6031 = vmatprep.mubr.bf16.mxu0 0
  %6032 = vmatmul.mubr.bf16.gmra.mxu0 %v5311
  %v6033 = vpop.f32.mrf.mxu0
  %v6034 = vadd.f32 0.0, %v6033
  %v6035 = vpop.f32.mrf.mxu0
  %v6036 = vadd.f32 0.0, %v6035
  %v6037 = vpop.f32.mrf.mxu0
  %v6038 = vpop.f32.mrf.mxu0
  %6039 = vdwg.mxu0
  %6040 = vmatprep.subr.bf16.mxu0 %v5966
  %6041 = vmatpush1.bf16.msra.mxu0 %v5965
  %6042 = vmatprep.subr.bf16.mxu0 %v5962
  %6043 = vmatpush1.bf16.msra.mxu0 %v5961
  %6044 = vmatprep.subr.bf16.mxu0 %v5958
  %6045 = vmatpush1.bf16.msra.mxu0 %v5957
  %6046 = vmatprep.subr.bf16.mxu0 %v5954
  %6047 = vmatpush1.bf16.msra.mxu0 %v5953
  %6048 = vmatprep.subr.bf16.mxu0 %v5950
  %6049 = vmatpush1.bf16.msra.mxu0 %v5949
  %6050 = vmatprep.subr.bf16.mxu0 %v5946
  %6051 = vmatpush1.bf16.msra.mxu0 %v5945
  %6052 = vmatprep.subr.bf16.mxu0 %v5942
  %6053 = vmatpush1.bf16.msra.mxu0 %v5941
  %6054 = vmatprep.subr.bf16.mxu0 %v5938
  %6055 = vmatpush1.bf16.msra.mxu0 %v5937
  %6056 = vmatprep.subr.bf16.mxu0 0
  %6057 = vmatpush2.bf16.msra.mxu0 0
  %6058 = vmatprep.subr.bf16.mxu0 0
  %6059 = vmatpush2.bf16.msra.mxu0 0
  %6060 = vmatprep.subr.bf16.mxu0 0
  %6061 = vmatpush2.bf16.msra.mxu0 0
  %6062 = vmatprep.subr.bf16.mxu0 0
  %6063 = vmatpush2.bf16.msra.mxu0 0
  %6064 = vmatprep.subr.bf16.mxu0 0
  %6065 = vmatpush2.bf16.msra.mxu0 0
  %6066 = vmatprep.subr.bf16.mxu0 0
  %6067 = vmatpush2.bf16.msra.mxu0 0
  %6068 = vmatprep.subr.bf16.mxu0 0
  %6069 = vmatpush2.bf16.msra.mxu0 0
  %6070 = vmatprep.subr.bf16.mxu0 0
  %6071 = vmatpush2.bf16.msra.mxu0 0
  %6072 = vmatprep.mubr.bf16.mxu0 0
  %6073 = vmatmul.mubr.bf16.gmra.mxu0 %v5311
  %v6074 = vpop.f32.mrf.mxu0
  %v6075 = vadd.f32 0.0, %v6074
  %v6076 = vpop.f32.mrf.mxu0
  %v6077 = vadd.f32 0.0, %v6076
  %v6078 = vpop.f32.mrf.mxu0
  %v6079 = vpop.f32.mrf.mxu0
  %6080 = vdwg.mxu0
  %v6085 = vcombine.low %v6034, %v6036
  %v6086 = vcombine.low %v6075, %v6077
  %v6088 = vunpack.c.l.s4 1983009808
  %v6089 = vunpack.c.0.s8 %v6088
  %v6090 = vlaneseq
  %v6091 = vshrl.u32 %v6090, 7
  %v6092 = vsub.s32 %v6089, %v6091
  %v6093 = vrot.slane %v6085, %v6092
  %v6095 = vunpack.c.l.s4 1983009808
  %v6096 = vunpack.c.0.s8 %v6095
  %v6097 = vlaneseq
  %v6098 = vshrl.u32 %v6097, 7
  %v6099 = vsub.s32 %v6096, %v6098
  %v6100 = vrot.slane %v6086, %v6099
  %v6101 = vcombine.low %v6093, %v6100
  %v6103 = vadd.f32 %v5806, %v6101
  %v6104 = vxor.u32 %v6103, 2147483648
  %v6105 = vmul.f32 %v6104, 1.442695
  %v6106 = vpow.pop %v6105
  %v6107 = vadd.f32 %v6106, 1.0
  %v6108 = vrcp.pop %v6107
  %v6109 = vmul.f32 1.0, %v6108
  %v6111 = vrot.slane %v6103, 2
  %v6113 = vxor.u32 %v6111, 2147483648
  %v6114 = vmul.f32 %v6113, 1.442695
  %v6115 = vpow.pop %v6114
  %v6116 = vadd.f32 %v6115, 1.0
  %v6117 = vrcp.pop %v6116
  %v6118 = vmul.f32 1.0, %v6117
  %v6119 = vrot.slane %v6103, 4
  %v6121 = vtanh.pop %v6119
  %v6122 = vrot.slane %v6103, 6
  %v6124 = vxor.u32 %v6122, 2147483648
  %v6125 = vmul.f32 %v6124, 1.442695
  %v6126 = vpow.pop %v6125
  %v6127 = vadd.f32 %v6126, 1.0
  %v6128 = vrcp.pop %v6127
  %v6129 = vmul.f32 1.0, %v6128
  %v6130 = vmul.f32 %v6118, %v5308
  %v6131 = vmul.f32 %v6109, %v6121
  %v6132 = vadd.f32 %v6130, %v6131
  %v6133 = vtanh.pop %v6132
  %v6134 = vmul.f32 %v6129, %v6133
  %v6135 = vpack.c.bf16 %v6134, %v6134
  %v6136 = vpack.c.bf16 %v5802, %v5802
  %v6137 = vld [vmem:[%s2] sm:$0xff]
  %v6138 = vld [vmem:[%s2 + $0x8] sm:$0xff]
  %v6139 = vld [vmem:[%s2 + $0x10] sm:$0xff]
  %v6140 = vld [vmem:[%s2 + $0x18] sm:$0xff]
  %v6141 = vld [vmem:[%s2 + $0x20] sm:$0xff]
  %v6142 = vld [vmem:[%s2 + $0x28] sm:$0xff]
  %v6143 = vld [vmem:[%s2 + $0x30] sm:$0xff]
  %v6144 = vld [vmem:[%s2 + $0x38] sm:$0xff]
  %v6145 = vld [vmem:[%s2 + $0x40] sm:$0xff]
  %v6146 = vld [vmem:[%s2 + $0x48] sm:$0xff]
  %v6147 = vld [vmem:[%s2 + $0x50] sm:$0xff]
  %v6148 = vld [vmem:[%s2 + $0x58] sm:$0xff]
  %v6149 = vld [vmem:[%s2 + $0x60] sm:$0xff]
  %v6150 = vld [vmem:[%s2 + $0x68] sm:$0xff]
  %v6151 = vld [vmem:[%s2 + $0x70] sm:$0xff]
  %v6152 = vld [vmem:[%s2 + $0x78] sm:$0xff]
  %v6153 = vld [vmem:[%s2 + $0x80] sm:$0xff]
  %v6154 = vld [vmem:[%s2 + $0x88] sm:$0xff]
  %v6155 = vld [vmem:[%s2 + $0x90] sm:$0xff]
  %v6156 = vld [vmem:[%s2 + $0x98] sm:$0xff]
  %v6157 = vld [vmem:[%s2 + $0xa0] sm:$0xff]
  %v6158 = vld [vmem:[%s2 + $0xa8] sm:$0xff]
  %v6159 = vld [vmem:[%s2 + $0xb0] sm:$0xff]
  %v6160 = vld [vmem:[%s2 + $0xb8] sm:$0xff]
  %v6161 = vld [vmem:[%s2 + $0xc0] sm:$0xff]
  %v6162 = vld [vmem:[%s2 + $0xc8] sm:$0xff]
  %v6163 = vld [vmem:[%s2 + $0xd0] sm:$0xff]
  %v6164 = vld [vmem:[%s2 + $0xd8] sm:$0xff]
  %v6165 = vld [vmem:[%s2 + $0xe0] sm:$0xff]
  %v6166 = vld [vmem:[%s2 + $0xe8] sm:$0xff]
  %v6167 = vld [vmem:[%s2 + $0xf0] sm:$0xff]
  %v6168 = vld [vmem:[%s2 + $0xf8] sm:$0xff]
  %v6169 = vld [vmem:[%s2 + $0x100] sm:$0xff]
  %v6170 = vld [vmem:[%s2 + $0x108] sm:$0xff]
  %v6171 = vld [vmem:[%s2 + $0x110] sm:$0xff]
  %v6172 = vld [vmem:[%s2 + $0x118] sm:$0xff]
  %v6173 = vld [vmem:[%s2 + $0x120] sm:$0xff]
  %v6174 = vld [vmem:[%s2 + $0x128] sm:$0xff]
  %v6175 = vld [vmem:[%s2 + $0x130] sm:$0xff]
  %v6176 = vld [vmem:[%s2 + $0x138] sm:$0xff]
  %v6177 = vld [vmem:[%s2 + $0x140] sm:$0xff]
  %v6178 = vld [vmem:[%s2 + $0x148] sm:$0xff]
  %v6179 = vld [vmem:[%s2 + $0x150] sm:$0xff]
  %v6180 = vld [vmem:[%s2 + $0x158] sm:$0xff]
  %v6181 = vld [vmem:[%s2 + $0x160] sm:$0xff]
  %v6182 = vld [vmem:[%s2 + $0x168] sm:$0xff]
  %v6183 = vld [vmem:[%s2 + $0x170] sm:$0xff]
  %v6184 = vld [vmem:[%s2 + $0x178] sm:$0xff]
  %v6185 = vld [vmem:[%s2 + $0x180] sm:$0xff]
  %v6186 = vld [vmem:[%s2 + $0x188] sm:$0xff]
  %v6187 = vld [vmem:[%s2 + $0x190] sm:$0xff]
  %v6188 = vld [vmem:[%s2 + $0x198] sm:$0xff]
  %v6189 = vld [vmem:[%s2 + $0x1a0] sm:$0xff]
  %v6190 = vld [vmem:[%s2 + $0x1a8] sm:$0xff]
  %v6191 = vld [vmem:[%s2 + $0x1b0] sm:$0xff]
  %v6192 = vld [vmem:[%s2 + $0x1b8] sm:$0xff]
  %v6193 = vld [vmem:[%s2 + $0x1c0] sm:$0xff]
  %v6194 = vld [vmem:[%s2 + $0x1c8] sm:$0xff]
  %v6195 = vld [vmem:[%s2 + $0x1d0] sm:$0xff]
  %v6196 = vld [vmem:[%s2 + $0x1d8] sm:$0xff]
  %v6197 = vld [vmem:[%s2 + $0x1e0] sm:$0xff]
  %v6198 = vld [vmem:[%s2 + $0x1e8] sm:$0xff]
  %v6199 = vld [vmem:[%s2 + $0x1f0] sm:$0xff]
  %v6200 = vld [vmem:[%s2 + $0x1f8] sm:$0xff]
  %v6265 = vunpack.c.l.b16 %v6137
  %v6266 = vunpack.c.h.b16 %v6137
  %v6267 = vunpack.c.l.b16 %v6138
  %v6268 = vunpack.c.h.b16 %v6138
  %v6269 = vunpack.c.l.b16 %v6139
  %v6270 = vunpack.c.h.b16 %v6139
  %v6271 = vunpack.c.l.b16 %v6140
  %v6272 = vunpack.c.h.b16 %v6140
  %v6273 = vunpack.c.l.b16 %v6141
  %v6274 = vunpack.c.h.b16 %v6141
  %v6275 = vunpack.c.l.b16 %v6142
  %v6276 = vunpack.c.h.b16 %v6142
  %v6277 = vunpack.c.l.b16 %v6143
  %v6278 = vunpack.c.h.b16 %v6143
  %v6279 = vunpack.c.l.b16 %v6144
  %v6280 = vunpack.c.h.b16 %v6144
  %v6281 = vunpack.c.l.b16 %v6145
  %v6282 = vunpack.c.h.b16 %v6145
  %v6283 = vunpack.c.l.b16 %v6146
  %v6284 = vunpack.c.h.b16 %v6146
  %v6285 = vunpack.c.l.b16 %v6147
  %v6286 = vunpack.c.h.b16 %v6147
  %v6287 = vunpack.c.l.b16 %v6148
  %v6288 = vunpack.c.h.b16 %v6148
  %v6289 = vunpack.c.l.b16 %v6149
  %v6290 = vunpack.c.h.b16 %v6149
  %v6291 = vunpack.c.l.b16 %v6150
  %v6292 = vunpack.c.h.b16 %v6150
  %v6293 = vunpack.c.l.b16 %v6151
  %v6294 = vunpack.c.h.b16 %v6151
  %v6295 = vunpack.c.l.b16 %v6152
  %v6296 = vunpack.c.h.b16 %v6152
  %v6297 = vunpack.c.l.b16 %v6153
  %v6298 = vunpack.c.h.b16 %v6153
  %v6299 = vunpack.c.l.b16 %v6154
  %v6300 = vunpack.c.h.b16 %v6154
  %v6301 = vunpack.c.l.b16 %v6155
  %v6302 = vunpack.c.h.b16 %v6155
  %v6303 = vunpack.c.l.b16 %v6156
  %v6304 = vunpack.c.h.b16 %v6156
  %v6305 = vunpack.c.l.b16 %v6157
  %v6306 = vunpack.c.h.b16 %v6157
  %v6307 = vunpack.c.l.b16 %v6158
  %v6308 = vunpack.c.h.b16 %v6158
  %v6309 = vunpack.c.l.b16 %v6159
  %v6310 = vunpack.c.h.b16 %v6159
  %v6311 = vunpack.c.l.b16 %v6160
  %v6312 = vunpack.c.h.b16 %v6160
  %v6313 = vunpack.c.l.b16 %v6161
  %v6314 = vunpack.c.h.b16 %v6161
  %v6315 = vunpack.c.l.b16 %v6162
  %v6316 = vunpack.c.h.b16 %v6162
  %v6317 = vunpack.c.l.b16 %v6163
  %v6318 = vunpack.c.h.b16 %v6163
  %v6319 = vunpack.c.l.b16 %v6164
  %v6320 = vunpack.c.h.b16 %v6164
  %v6321 = vunpack.c.l.b16 %v6165
  %v6322 = vunpack.c.h.b16 %v6165
  %v6323 = vunpack.c.l.b16 %v6166
  %v6324 = vunpack.c.h.b16 %v6166
  %v6325 = vunpack.c.l.b16 %v6167
  %v6326 = vunpack.c.h.b16 %v6167
  %v6327 = vunpack.c.l.b16 %v6168
  %v6328 = vunpack.c.h.b16 %v6168
  %v6329 = vunpack.c.l.b16 %v6169
  %v6330 = vunpack.c.h.b16 %v6169
  %v6331 = vunpack.c.l.b16 %v6170
  %v6332 = vunpack.c.h.b16 %v6170
  %v6333 = vunpack.c.l.b16 %v6171
  %v6334 = vunpack.c.h.b16 %v6171
  %v6335 = vunpack.c.l.b16 %v6172
  %v6336 = vunpack.c.h.b16 %v6172
  %v6337 = vunpack.c.l.b16 %v6173
  %v6338 = vunpack.c.h.b16 %v6173
  %v6339 = vunpack.c.l.b16 %v6174
  %v6340 = vunpack.c.h.b16 %v6174
  %v6341 = vunpack.c.l.b16 %v6175
  %v6342 = vunpack.c.h.b16 %v6175
  %v6343 = vunpack.c.l.b16 %v6176
  %v6344 = vunpack.c.h.b16 %v6176
  %v6345 = vunpack.c.l.b16 %v6177
  %v6346 = vunpack.c.h.b16 %v6177
  %v6347 = vunpack.c.l.b16 %v6178
  %v6348 = vunpack.c.h.b16 %v6178
  %v6349 = vunpack.c.l.b16 %v6179
  %v6350 = vunpack.c.h.b16 %v6179
  %v6351 = vunpack.c.l.b16 %v6180
  %v6352 = vunpack.c.h.b16 %v6180
  %v6353 = vunpack.c.l.b16 %v6181
  %v6354 = vunpack.c.h.b16 %v6181
  %v6355 = vunpack.c.l.b16 %v6182
  %v6356 = vunpack.c.h.b16 %v6182
  %v6357 = vunpack.c.l.b16 %v6183
  %v6358 = vunpack.c.h.b16 %v6183
  %v6359 = vunpack.c.l.b16 %v6184
  %v6360 = vunpack.c.h.b16 %v6184
  %v6361 = vunpack.c.l.b16 %v6185
  %v6362 = vunpack.c.h.b16 %v6185
  %v6363 = vunpack.c.l.b16 %v6186
  %v6364 = vunpack.c.h.b16 %v6186
  %v6365 = vunpack.c.l.b16 %v6187
  %v6366 = vunpack.c.h.b16 %v6187
  %v6367 = vunpack.c.l.b16 %v6188
  %v6368 = vunpack.c.h.b16 %v6188
  %v6369 = vunpack.c.l.b16 %v6189
  %v6370 = vunpack.c.h.b16 %v6189
  %v6371 = vunpack.c.l.b16 %v6190
  %v6372 = vunpack.c.h.b16 %v6190
  %v6373 = vunpack.c.l.b16 %v6191
  %v6374 = vunpack.c.h.b16 %v6191
  %v6375 = vunpack.c.l.b16 %v6192
  %v6376 = vunpack.c.h.b16 %v6192
  %v6377 = vunpack.c.l.b16 %v6193
  %v6378 = vunpack.c.h.b16 %v6193
  %v6379 = vunpack.c.l.b16 %v6194
  %v6380 = vunpack.c.h.b16 %v6194
  %v6381 = vunpack.c.l.b16 %v6195
  %v6382 = vunpack.c.h.b16 %v6195
  %v6383 = vunpack.c.l.b16 %v6196
  %v6384 = vunpack.c.h.b16 %v6196
  %v6385 = vunpack.c.l.b16 %v6197
  %v6386 = vunpack.c.h.b16 %v6197
  %v6387 = vunpack.c.l.b16 %v6198
  %v6388 = vunpack.c.h.b16 %v6198
  %v6389 = vunpack.c.l.b16 %v6199
  %v6390 = vunpack.c.h.b16 %v6199
  %v6391 = vunpack.c.l.b16 %v6200
  %v6392 = vunpack.c.h.b16 %v6200
  %v6393 = vpack.c.b16 %v6269, %v6265
  %v6394 = vpack.c.b16 %v6270, %v6266
  %v6395 = vpack.c.b16 %v6271, %v6267
  %v6396 = vpack.c.b16 %v6272, %v6268
  %v6397 = vpack.c.b16 %v6277, %v6273
  %v6398 = vpack.c.b16 %v6278, %v6274
  %v6399 = vpack.c.b16 %v6279, %v6275
  %v6400 = vpack.c.b16 %v6280, %v6276
  %v6401 = vpack.c.b16 %v6285, %v6281
  %v6402 = vpack.c.b16 %v6286, %v6282
  %v6403 = vpack.c.b16 %v6287, %v6283
  %v6404 = vpack.c.b16 %v6288, %v6284
  %v6405 = vpack.c.b16 %v6293, %v6289
  %v6406 = vpack.c.b16 %v6294, %v6290
  %v6407 = vpack.c.b16 %v6295, %v6291
  %v6408 = vpack.c.b16 %v6296, %v6292
  %v6409 = vpack.c.b16 %v6301, %v6297
  %v6410 = vpack.c.b16 %v6302, %v6298
  %v6411 = vpack.c.b16 %v6303, %v6299
  %v6412 = vpack.c.b16 %v6304, %v6300
  %v6413 = vpack.c.b16 %v6309, %v6305
  %v6414 = vpack.c.b16 %v6310, %v6306
  %v6415 = vpack.c.b16 %v6311, %v6307
  %v6416 = vpack.c.b16 %v6312, %v6308
  %v6417 = vpack.c.b16 %v6317, %v6313
  %v6418 = vpack.c.b16 %v6318, %v6314
  %v6419 = vpack.c.b16 %v6319, %v6315
  %v6420 = vpack.c.b16 %v6320, %v6316
  %v6421 = vpack.c.b16 %v6325, %v6321
  %v6422 = vpack.c.b16 %v6326, %v6322
  %v6423 = vpack.c.b16 %v6327, %v6323
  %v6424 = vpack.c.b16 %v6328, %v6324
  %v6425 = vpack.c.b16 %v6333, %v6329
  %v6426 = vpack.c.b16 %v6334, %v6330
  %v6427 = vpack.c.b16 %v6335, %v6331
  %v6428 = vpack.c.b16 %v6336, %v6332
  %v6429 = vpack.c.b16 %v6341, %v6337
  %v6430 = vpack.c.b16 %v6342, %v6338
  %v6431 = vpack.c.b16 %v6343, %v6339
  %v6432 = vpack.c.b16 %v6344, %v6340
  %v6433 = vpack.c.b16 %v6349, %v6345
  %v6434 = vpack.c.b16 %v6350, %v6346
  %v6435 = vpack.c.b16 %v6351, %v6347
  %v6436 = vpack.c.b16 %v6352, %v6348
  %v6437 = vpack.c.b16 %v6357, %v6353
  %v6438 = vpack.c.b16 %v6358, %v6354
  %v6439 = vpack.c.b16 %v6359, %v6355
  %v6440 = vpack.c.b16 %v6360, %v6356
  %v6441 = vpack.c.b16 %v6365, %v6361
  %v6442 = vpack.c.b16 %v6366, %v6362
  %v6443 = vpack.c.b16 %v6367, %v6363
  %v6444 = vpack.c.b16 %v6368, %v6364
  %v6445 = vpack.c.b16 %v6373, %v6369
  %v6446 = vpack.c.b16 %v6374, %v6370
  %v6447 = vpack.c.b16 %v6375, %v6371
  %v6448 = vpack.c.b16 %v6376, %v6372
  %v6449 = vpack.c.b16 %v6381, %v6377
  %v6450 = vpack.c.b16 %v6382, %v6378
  %v6451 = vpack.c.b16 %v6383, %v6379
  %v6452 = vpack.c.b16 %v6384, %v6380
  %v6453 = vpack.c.b16 %v6389, %v6385
  %v6454 = vpack.c.b16 %v6390, %v6386
  %v6455 = vpack.c.b16 %v6391, %v6387
  %v6456 = vpack.c.b16 %v6392, %v6388
  %6521 = vmatprep.subr.bf16.mxu0 %v6422
  %6522 = vmatpush1.bf16.msra.mxu0 %v6421
  %6523 = vmatprep.subr.bf16.mxu0 %v6418
  %6524 = vmatpush1.bf16.msra.mxu0 %v6417
  %6525 = vmatprep.subr.bf16.mxu0 %v6414
  %6526 = vmatpush1.bf16.msra.mxu0 %v6413
  %6527 = vmatprep.subr.bf16.mxu0 %v6410
  %6528 = vmatpush1.bf16.msra.mxu0 %v6409
  %6529 = vmatprep.subr.bf16.mxu0 %v6406
  %6530 = vmatpush1.bf16.msra.mxu0 %v6405
  %6531 = vmatprep.subr.bf16.mxu0 %v6402
  %6532 = vmatpush1.bf16.msra.mxu0 %v6401
  %6533 = vmatprep.subr.bf16.mxu0 %v6398
  %6534 = vmatpush1.bf16.msra.mxu0 %v6397
  %6535 = vmatprep.subr.bf16.mxu0 %v6394
  %6536 = vmatpush1.bf16.msra.mxu0 %v6393
  %6537 = vmatprep.subr.bf16.mxu0 %v6454
  %6538 = vmatpush2.bf16.msra.mxu0 %v6453
  %6539 = vmatprep.subr.bf16.mxu0 %v6450
  %6540 = vmatpush2.bf16.msra.mxu0 %v6449
  %6541 = vmatprep.subr.bf16.mxu0 %v6446
  %6542 = vmatpush2.bf16.msra.mxu0 %v6445
  %6543 = vmatprep.subr.bf16.mxu0 %v6442
  %6544 = vmatpush2.bf16.msra.mxu0 %v6441
  %6545 = vmatprep.subr.bf16.mxu0 %v6438
  %6546 = vmatpush2.bf16.msra.mxu0 %v6437
  %6547 = vmatprep.subr.bf16.mxu0 %v6434
  %6548 = vmatpush2.bf16.msra.mxu0 %v6433
  %6549 = vmatprep.subr.bf16.mxu0 %v6430
  %6550 = vmatpush2.bf16.msra.mxu0 %v6429
  %6551 = vmatprep.subr.bf16.mxu0 %v6426
  %6552 = vmatpush2.bf16.msra.mxu0 %v6425
  %6553 = vmatprep.mubr.bf16.mxu0 %v6136
  %6554 = vmatmul.mubr.bf16.gmra.mxu0 %v6135
  %v6555 = vpop.f32.mrf.mxu0
  %v6556 = vadd.f32 %v23, %v6555
  %v6557 = vpop.f32.mrf.mxu0
  %v6558 = vadd.f32 %v27, %v6557
  %v6559 = vpop.f32.mrf.mxu0
  %v6560 = vpop.f32.mrf.mxu0
  %6561 = vdwg.mxu0
  %6562 = vmatprep.subr.bf16.mxu0 %v6424
  %6563 = vmatpush1.bf16.msra.mxu0 %v6423
  %6564 = vmatprep.subr.bf16.mxu0 %v6420
  %6565 = vmatpush1.bf16.msra.mxu0 %v6419
  %6566 = vmatprep.subr.bf16.mxu0 %v6416
  %6567 = vmatpush1.bf16.msra.mxu0 %v6415
  %6568 = vmatprep.subr.bf16.mxu0 %v6412
  %6569 = vmatpush1.bf16.msra.mxu0 %v6411
  %6570 = vmatprep.subr.bf16.mxu0 %v6408
  %6571 = vmatpush1.bf16.msra.mxu0 %v6407
  %6572 = vmatprep.subr.bf16.mxu0 %v6404
  %6573 = vmatpush1.bf16.msra.mxu0 %v6403
  %6574 = vmatprep.subr.bf16.mxu0 %v6400
  %6575 = vmatpush1.bf16.msra.mxu0 %v6399
  %6576 = vmatprep.subr.bf16.mxu0 %v6396
  %6577 = vmatpush1.bf16.msra.mxu0 %v6395
  %6578 = vmatprep.subr.bf16.mxu0 %v6456
  %6579 = vmatpush2.bf16.msra.mxu0 %v6455
  %6580 = vmatprep.subr.bf16.mxu0 %v6452
  %6581 = vmatpush2.bf16.msra.mxu0 %v6451
  %6582 = vmatprep.subr.bf16.mxu0 %v6448
  %6583 = vmatpush2.bf16.msra.mxu0 %v6447
  %6584 = vmatprep.subr.bf16.mxu0 %v6444
  %6585 = vmatpush2.bf16.msra.mxu0 %v6443
  %6586 = vmatprep.subr.bf16.mxu0 %v6440
  %6587 = vmatpush2.bf16.msra.mxu0 %v6439
  %6588 = vmatprep.subr.bf16.mxu0 %v6436
  %6589 = vmatpush2.bf16.msra.mxu0 %v6435
  %6590 = vmatprep.subr.bf16.mxu0 %v6432
  %6591 = vmatpush2.bf16.msra.mxu0 %v6431
  %6592 = vmatprep.subr.bf16.mxu0 %v6428
  %6593 = vmatpush2.bf16.msra.mxu0 %v6427
  %6594 = vmatprep.mubr.bf16.mxu0 %v6136
  %6595 = vmatmul.mubr.bf16.gmra.mxu0 %v6135
  %v6596 = vpop.f32.mrf.mxu0
  %v6597 = vadd.f32 %v31, %v6596
  %v6598 = vpop.f32.mrf.mxu0
  %v6599 = vadd.f32 %v35, %v6598
  %v6600 = vpop.f32.mrf.mxu0
  %v6601 = vpop.f32.mrf.mxu0
  %6602 = vdwg.mxu0
  %v6603 = vxor.u32 %v6556, 2147483648
  %v6604 = vmul.f32 %v6603, 1.442695
  %v6605 = vpow.pop %v6604
  %v6606 = vadd.f32 %v6605, 1.0
  %v6607 = vrcp.pop %v6606
  %v6608 = vmul.f32 1.0, %v6607
  %v6609 = vxor.u32 %v6558, 2147483648
  %v6610 = vmul.f32 %v6609, 1.442695
  %v6611 = vpow.pop %v6610
  %v6612 = vadd.f32 %v6611, 1.0
  %v6613 = vrcp.pop %v6612
  %v6614 = vmul.f32 1.0, %v6613
  %v6615 = vtanh.pop %v6597
  %v6616 = vxor.u32 %v6599, 2147483648
  %v6617 = vmul.f32 %v6616, 1.442695
  %v6618 = vpow.pop %v6617
  %v6619 = vadd.f32 %v6618, 1.0
  %v6620 = vrcp.pop %v6619
  %v6621 = vmul.f32 1.0, %v6620
  %v6622 = vmul.f32 %v6614, %v5800
  %v6623 = vmul.f32 %v6608, %v6615
  %v6624 = vadd.f32 %v6622, %v6623
  %v6625 = vtanh.pop %v6624
  %v6626 = vmul.f32 %v6621, %v6625
  %s6627 = scalar_lea.vmem %s4, 14
  %6628 = vst [vmem:[%s6627] sm:$0x3] %v6626
  // Predicated region
  $region18: #{quantile_lstm_forward.1} parent=0 // pred_check
    _
  $region19: #{quantile_lstm_forward.1} parent=0 // pred_check_branch
    %6630 = sbr.rel (0) target = $region21
  $region20: #{quantile_lstm_forward.1} parent=0 // pred_region
    _
  $region21: #{quantile_lstm_forward.1} parent=0 // pred_fallthru
    _
  // Predicated region
  $region22: #{quantile_lstm_forward.1} parent=0 // pred_check
    _
  $region23: #{quantile_lstm_forward.1} parent=0 // pred_check_branch
    %6632 = sbr.rel (0) target = $region25
  $region24: #{quantile_lstm_forward.1} parent=0 // pred_region
    _
  $region25: #{quantile_lstm_forward.1} parent=0 // pred_fallthru
    _

</llo_original>
